<compile_context>
chip_gen: v6e
topology: v6e:2x2x1
jax: 0.10.0
libtpu: 0.0.40
codegen_flags: <defaults>
</compile_context>

<pallas_src>
import functools

import jax
import jax.numpy as jnp
from jax.experimental import pallas as pl
from jax.experimental.pallas import tpu as pltpu


def _attention_downsample_kernel(patches_ref, lin_w_ref, lin_b_ref, w_ref, b_ref,
                                 drop_ref, out_ref, *, use_mxu):
    patches = patches_ref[...]                       # (TN, P, C), bf16 (or f32)
    tn, p, c = patches.shape
    lin_b = lin_b_ref[0, 0]                          # f32 scalar from SMEM

    # attention_net: Linear(C -> 1) -> logits[n, p]
    # (nn.Dropout(p=0.2) inside attention_net is eval-mode identity here.)
    if use_mxu:
        # (TN*P, C) @ (C, 1) on the MXU, f32 accumulate; reshape is layout-cheap
        # because P % 8 == 0.
        logits = jnp.dot(patches.reshape(tn * p, c), lin_w_ref[...],
                         preferred_element_type=jnp.float32).reshape(tn, p)
    else:
        lw = lin_w_ref[...].astype(jnp.float32)       # (1, C)
        logits = jnp.sum(patches.astype(jnp.float32) * lw[None, :, :], axis=-1)
    logits = logits + lin_b                           # (TN, P) f32

    # forward() dropout mask (0/1, no 1/keep rescale -- matches the reference),
    # per-patch affine (w, b), softmax over the P patch positions.
    att = logits * drop_ref[...] * w_ref[...] + b_ref[...]          # (TN, P)
    m = jnp.max(att, axis=-1, keepdims=True)
    e = jnp.exp(att - m)
    attn = e * pl.reciprocal(jnp.sum(e, axis=-1, keepdims=True), approx=True)

    # downsampled[n, c] = sum_p patches[n, p, c] * attn[n, p]
    acc = jnp.sum(patches.astype(jnp.float32) * attn[:, :, None], axis=1)
    out_ref[...] = acc.astype(out_ref.dtype)


def _run_pallas(patches_flat, lin_w, lin_b, w_flat, b_flat, drop_flat, tile_n=None):
    N, P, C = patches_flat.shape
    in_itemsize = patches_flat.dtype.itemsize

    # Padded per-row VMEM footprint (sublane/lane padding included).
    sub_pack = max(1, 4 // in_itemsize) * 8                 # 8 rows f32, 16 rows bf16
    p_pad = -(-P // sub_pack) * sub_pack
    c_pad = -(-C // 128) * 128
    per_row = p_pad * c_pad * in_itemsize + c_pad * 4 + 128 * 4   # in + out + drop

    if tile_n is None:
        budget = 36 * 1024 * 1024                           # double-buffered working set
        tile_n = budget // (2 * per_row)
    tile_n = int(max(1, min(tile_n, N, 1024)))
    if tile_n != N:
        tile_n = max(8, (tile_n // 8) * 8)                  # sublane multiple for sub-blocks
        if tile_n >= N:
            tile_n = N

    grid = (pl.cdiv(N, tile_n),)

    use_mxu = (P % 8 == 0)
    lin_w_arg = (lin_w.reshape(C, 1) if use_mxu else lin_w.reshape(1, C))
    lin_w_arg = lin_w_arg.astype(patches_flat.dtype)

    vmem_limit = int(min(48 * 1024 * 1024,
                         max(16 * 1024 * 1024, 2 * per_row * tile_n + 4 * 1024 * 1024)))

    kernel = functools.partial(_attention_downsample_kernel, use_mxu=use_mxu)
    return pl.pallas_call(
        kernel,
        out_shape=jax.ShapeDtypeStruct((N, C), jnp.float32),
        grid=grid,
        in_specs=[
            pl.BlockSpec((tile_n, P, C), lambda i: (i, 0, 0)),                 # patches
            pl.BlockSpec(lin_w_arg.shape, lambda i: (0, 0)),                   # lin_w
            pl.BlockSpec(memory_space=pltpu.MemorySpace.SMEM),                 # lin_b
            pl.BlockSpec((1, P), lambda i: (0, 0)),                            # w
            pl.BlockSpec((1, P), lambda i: (0, 0)),                            # b
            pl.BlockSpec((tile_n, 1), lambda i: (i, 0)),                       # dropout
        ],
        out_specs=pl.BlockSpec((tile_n, C), lambda i: (i, 0)),
        compiler_params=pltpu.CompilerParams(
            dimension_semantics=("parallel",),
            vmem_limit_bytes=vmem_limit),
    )(patches_flat, lin_w_arg, lin_b, w_flat, b_flat, drop_flat)


def init_params(key, dim, kernel_size):
    k1, k2, k3, k4 = jax.random.split(key, 4)
    return {
        # attention_net = Sequential(Dropout(0.2), Linear(dim, 1))
        "lin_w": (0.02 * jax.random.normal(k1, (dim,))).astype(jnp.float32),
        "lin_b": (0.02 * jax.random.normal(k2, ())).astype(jnp.float32),
        # self.w = ones(k,k) + 0.01*randn ; self.b = zeros(k,k) + 0.01*randn
        "w": (jnp.ones((kernel_size, kernel_size))
              + 0.01 * jax.random.normal(k3, (kernel_size, kernel_size))).astype(jnp.float32),
        "b": (jnp.zeros((kernel_size, kernel_size))
              + 0.01 * jax.random.normal(k4, (kernel_size, kernel_size))).astype(jnp.float32),
    }


def attention_downsampler_forward(hr_feats, params, kernel_size, final_size,
                                  blur_attn, drop_key, tile_n=None,
                                  compute_dtype=jnp.bfloat16):
    """hr_feats: NCHW float32. Returns NCHW (b, c, final_size, final_size*(w//h))."""
    b, c, h, w = hr_feats.shape
    if blur_attn:
        # TODO(synk): gaussian_blur2d(kernel=5, sigma=(1.0,1.0)) not implemented;
        # run with blur_attn=False.
        raise NotImplementedError("blur_attn path not implemented")
    if final_size <= 1:
        raise ValueError("final_size must be > 1 (reference module divides by final_size-1)")

    k = kernel_size
    stride = (h - k) // (final_size - 1)
    if stride < 1:
        raise ValueError(f"invalid stride {stride} for h={h}, k={k}, final_size={final_size}")
    Ho = final_size
    Wo = final_size * (w // h)

    # Validate unfold geometry so the gather matches torch.nn.Unfold exactly.
    n_h = (h - k) // stride + 1
    n_w = (w - k) // stride + 1
    if n_h != Ho or n_w != Wo:
        raise ValueError(f"Unfold positions ({n_h},{n_w}) != expected output ({Ho},{Wo})")

    # One NCHW -> NHWC transpose so C is the contiguous lane dim for gather + kernel;
    # ship the patch stream as bf16 (kernel upcasts to f32 for softmax/accumulation).
    nhwc = jnp.transpose(hr_feats, (0, 2, 3, 1)).astype(compute_dtype)

    idx_h = (jnp.arange(Ho) * stride)[:, None] + jnp.arange(k)[None, :]   # (Ho, k)
    idx_w = (jnp.arange(Wo) * stride)[:, None] + jnp.arange(k)[None, :]   # (Wo, k)
    # TODO(synk): fuse this unfold into the kernel (manual row-strip DMA) to remove
    # the k^2-expanded HBM intermediate; kept as an XLA gather here for robustness.
    patches = nhwc[:, idx_h[:, None, :, None], idx_w[None, :, None, :], :]  # (b,Ho,Wo,k,k,C)
    patches_flat = patches.reshape(b * Ho * Wo, k * k, c)                   # p = ki*k + kj

    # explicit dropout mask from forward(): torch.rand(b, h, w, 1) > 0.2
    # (intentionally no 1/keep_prob rescale -- matches the reference forward)
    drop_mask = (jax.random.uniform(drop_key, (b, Ho, Wo, 1)) > 0.2).astype(jnp.float32)
    drop_flat = drop_mask.reshape(b * Ho * Wo, 1)

    lin_b = params["lin_b"].reshape(1, 1).astype(jnp.float32)
    w_flat = params["w"].reshape(1, k * k).astype(jnp.float32)
    b_flat = params["b"].reshape(1, k * k).astype(jnp.float32)

    out_flat = _run_pallas(patches_flat, params["lin_w"], lin_b, w_flat, b_flat,
                           drop_flat, tile_n=tile_n)

    # einsum('bhwpc,bhwp->bchw') result, then [:, :c, :, :] (c == in_dim -> no-op slice)
    out = out_flat.reshape(b, Ho, Wo, c).transpose(0, 3, 1, 2)
    return out[:, :c, :, :], (patches_flat, drop_flat)


def _reference(patches_flat, lin_w, lin_b, w_flat, b_flat, drop_flat):
    logits = jnp.einsum("npc,c->np", patches_flat, lin_w) + lin_b
    attn_logits = logits * drop_flat * w_flat[None, :] + b_flat[None, :]
    attn = jax.nn.softmax(attn_logits, axis=-1)
    return jnp.einsum("npc,np->nc", patches_flat, attn)


if __name__ == "__main__":
    batch = 2
    dim = 128          # lane-dense C (multiple of 128); FeatUp production uses 384/512
    kernel_size = 4
    final_size = 8
    H = W = 32

    key = jax.random.PRNGKey(0)
    k_feat, k_param, k_drop = jax.random.split(key, 3)

    hr_feats = jax.random.normal(k_feat, (batch, dim, H, W), dtype=jnp.float32)
    params = init_params(k_param, dim, kernel_size)

    # tile_n=32 -> N=128 rows split into a 4-step pipelined grid (exercises BlockSpec
    # double-buffering); leave tile_n=None in production to auto-size from VMEM budget.
    out, (patches_flat, drop_flat) = attention_downsampler_forward(
        hr_feats, params, kernel_size, final_size, blur_attn=False,
        drop_key=k_drop, tile_n=32)
    out = jax.block_until_ready(out)

    assert out.shape == (batch, dim, final_size, final_size * (W // H)), out.shape

    # correctness check: pure-JAX reference on the same bf16-cast patch stream
    ref = _reference(patches_flat.astype(jnp.float32),
                     params["lin_w"], params["lin_b"],
                     params["w"].reshape(-1), params["b"].reshape(-1), drop_flat)
    ref = ref.reshape(batch, final_size, final_size * (W // H), dim).transpose(0, 3, 1, 2)
    max_err = float(jnp.max(jnp.abs(out - ref)))
    assert jnp.allclose(out, ref, atol=5e-3, rtol=5e-3), max_err

    print("KERNEL_OK")
</pallas_src>

<mosaic_0001>
module attributes {stable_mosaic.version = 11 : i64} {
  func.func @_attention_downsample_kernel(%arg0: i32, %arg1: memref<32x16x128xbf16, #tpu.memory_space<vmem>>, %arg2: memref<128x1xbf16, #tpu.memory_space<vmem>>, %arg3: memref<1x1xf32, #tpu.memory_space<smem>>, %arg4: memref<1x16xf32, #tpu.memory_space<vmem>>, %arg5: memref<1x16xf32, #tpu.memory_space<vmem>>, %arg6: memref<32x1xf32, #tpu.memory_space<vmem>>, %arg7: memref<32x128xf32, #tpu.memory_space<vmem>>) attributes {dimension_semantics = [#tpu.dimension_semantics<parallel>], iteration_bounds = array<i64: 4>, scalar_prefetch = 0 : i64, scratch_operands = 0 : i64, tpu.core_type = #tpu.core_type<tc>, window_params = [{transform_indices = @transform_0, window_bounds = array<i64: 32, 16, 128>}, {pipeline_mode = #tpu.pipeline_mode<synchronous>, transform_indices = @transform_1, window_bounds = array<i64: 128, 1>}, {transform_indices = @transform_2, window_bounds = array<i64: 1, 1>}, {pipeline_mode = #tpu.pipeline_mode<synchronous>, transform_indices = @transform_3, window_bounds = array<i64: 1, 16>}, {pipeline_mode = #tpu.pipeline_mode<synchronous>, transform_indices = @transform_4, window_bounds = array<i64: 1, 16>}, {transform_indices = @transform_5, window_bounds = array<i64: 32, 1>}, {transform_indices = @transform_6, window_bounds = array<i64: 32, 128>}]} {
    %c0 = arith.constant 0 : index
    %c0_0 = arith.constant 0 : index
    %c0_1 = arith.constant 0 : index
    %0 = vector.load %arg1[%c0, %c0_0, %c0_1] : memref<32x16x128xbf16, #tpu.memory_space<vmem>>, vector<32x16x128xbf16>
    %c0_2 = arith.constant 0 : index
    %c0_3 = arith.constant 0 : index
    %1 = memref.load %arg3[%c0_2, %c0_3] : memref<1x1xf32, #tpu.memory_space<smem>>
    %2 = vector.shape_cast %0 : vector<32x16x128xbf16> to vector<512x128xbf16>
    %c0_4 = arith.constant 0 : index
    %c0_5 = arith.constant 0 : index
    %3 = vector.load %arg2[%c0_4, %c0_5] : memref<128x1xbf16, #tpu.memory_space<vmem>>, vector<128x1xbf16>
    %cst = arith.constant dense<0.000000e+00> : vector<512x1xf32>
    %4 = tpu.matmul %2, %3, %cst {dimension_numbers = #tpu.dot_dimension_numbers<[1], [0], [0], [1], [0, 0, 1, 1], [], []>} : vector<512x128xbf16>, vector<128x1xbf16>, vector<512x1xf32> -> vector<512x1xf32>
    %5 = vector.shape_cast %4 : vector<512x1xf32> to vector<32x16xf32>
    %6 = vector.broadcast %1 : f32 to vector<32x16xf32>
    %7 = arith.addf %5, %6 : vector<32x16xf32>
    %c0_6 = arith.constant 0 : index
    %c0_7 = arith.constant 0 : index
    %8 = vector.load %arg6[%c0_6, %c0_7] : memref<32x1xf32, #tpu.memory_space<vmem>>, vector<32x1xf32>
    %9 = vector.broadcast %8 : vector<32x1xf32> to vector<32x16xf32>
    %10 = arith.mulf %7, %9 : vector<32x16xf32>
    %c0_8 = arith.constant 0 : index
    %c0_9 = arith.constant 0 : index
    %11 = vector.load %arg4[%c0_8, %c0_9] : memref<1x16xf32, #tpu.memory_space<vmem>>, vector<1x16xf32>
    %12 = vector.broadcast %11 : vector<1x16xf32> to vector<32x16xf32>
    %13 = arith.mulf %10, %12 : vector<32x16xf32>
    %c0_10 = arith.constant 0 : index
    %c0_11 = arith.constant 0 : index
    %14 = vector.load %arg5[%c0_10, %c0_11] : memref<1x16xf32, #tpu.memory_space<vmem>>, vector<1x16xf32>
    %15 = vector.broadcast %14 : vector<1x16xf32> to vector<32x16xf32>
    %16 = arith.addf %13, %15 : vector<32x16xf32>
    %cst_12 = arith.constant dense<0xFF800000> : vector<32xf32>
    %17 = vector.multi_reduction <maximumf>, %16, %cst_12 [1] : vector<32x16xf32> to vector<32xf32>
    %18 = vector.shape_cast %17 : vector<32xf32> to vector<32x1xf32>
    %19 = vector.broadcast %18 : vector<32x1xf32> to vector<32x16xf32>
    %20 = arith.subf %16, %19 : vector<32x16xf32>
    %21 = math.exp %20 : vector<32x16xf32>
    %cst_13 = arith.constant dense<0.000000e+00> : vector<32xf32>
    %22 = vector.multi_reduction <add>, %21, %cst_13 [1] : vector<32x16xf32> to vector<32xf32>
    %23 = vector.shape_cast %22 : vector<32xf32> to vector<32x1xf32>
    %24 = tpu.reciprocal %23 {approx = true} : vector<32x1xf32> -> vector<32x1xf32>
    %25 = vector.broadcast %24 : vector<32x1xf32> to vector<32x16xf32>
    %26 = arith.mulf %21, %25 : vector<32x16xf32>
    %27 = arith.extf %0 : vector<32x16x128xbf16> to vector<32x16x128xf32>
    %28 = vector.shape_cast %26 : vector<32x16xf32> to vector<32x16x1xf32>
    %29 = vector.broadcast %28 : vector<32x16x1xf32> to vector<32x16x128xf32>
    %30 = arith.mulf %27, %29 : vector<32x16x128xf32>
    %cst_14 = arith.constant dense<0.000000e+00> : vector<32x128xf32>
    %31 = vector.multi_reduction <add>, %30, %cst_14 [1] : vector<32x16x128xf32> to vector<32x128xf32>
    %c0_15 = arith.constant 0 : index
    %c0_16 = arith.constant 0 : index
    %32 = vector.load %arg7[%c0_15, %c0_16] : memref<32x128xf32, #tpu.memory_space<vmem>>, vector<32x128xf32>
    tpu.vector_store %arg7[%c0_15, %c0_16], %31 {strides = array<i32>} : memref<32x128xf32, #tpu.memory_space<vmem>>, vector<32x128xf32>,
    return
  }
  func.func @transform_0(%arg0: i32) -> (i32, i32, i32) {
    %c0_i32 = arith.constant 0 : i32
    %c0_i32_0 = arith.constant 0 : i32
    %c0_i32_1 = arith.constant 0 : i32
    return %arg0, %c0_i32, %c0_i32_0 : i32, i32, i32
  }
  func.func @transform_1(%arg0: i32) -> (i32, i32) {
    %c0_i32 = arith.constant 0 : i32
    %c0_i32_0 = arith.constant 0 : i32
    %c0_i32_1 = arith.constant 0 : i32
    return %c0_i32, %c0_i32_0 : i32, i32
  }
  func.func @transform_2(%arg0: i32) -> (i32, i32) {
    %c0_i32 = arith.constant 0 : i32
    %c0_i32_0 = arith.constant 0 : i32
    %c0_i32_1 = arith.constant 0 : i32
    return %c0_i32, %c0_i32_0 : i32, i32
  }
  func.func @transform_3(%arg0: i32) -> (i32, i32) {
    %c0_i32 = arith.constant 0 : i32
    %c0_i32_0 = arith.constant 0 : i32
    %c0_i32_1 = arith.constant 0 : i32
    return %c0_i32, %c0_i32_0 : i32, i32
  }
  func.func @transform_4(%arg0: i32) -> (i32, i32) {
    %c0_i32 = arith.constant 0 : i32
    %c0_i32_0 = arith.constant 0 : i32
    %c0_i32_1 = arith.constant 0 : i32
    return %c0_i32, %c0_i32_0 : i32, i32
  }
  func.func @transform_5(%arg0: i32) -> (i32, i32) {
    %c0_i32 = arith.constant 0 : i32
    %c0_i32_0 = arith.constant 0 : i32
    return %arg0, %c0_i32 : i32, i32
  }
  func.func @transform_6(%arg0: i32) -> (i32, i32) {
    %c0_i32 = arith.constant 0 : i32
    %c0_i32_0 = arith.constant 0 : i32
    return %arg0, %c0_i32 : i32, i32
  }
}

</mosaic_0001>

<llo_original>
// kernel: tpu_custom_call.1
$region0: #{tpu_custom_call.1}
  #allocation0 [shape = 'u32[]', space=smem, size = 0x4, offset = 0x4, fixed_abs, tag = 'smem constant byte address 0x4 - core index']
  #allocation1 [shape = 'u32[144,128]{1,0:T(1,128)}', space=vmem, size = 0x12000, scoped, tag = 'internal scratch']
  #allocation2 [shape = 'f32[1,1]{1,0:T(1,128)S(6)}', space=smem, size = 0x200, scoped, tag = 'scoped memory for tpu_custom_call.1']
  %s0 = inlined_call_operand.hbm [shape: bf16[128,16,128], index: 0, kind: input, shape index: {}]
  %s1 = inlined_call_operand.vmem [shape: bf16[128,1], index: 1, kind: input, shape index: {}]
  %s2 = inlined_call_operand.<no memory space> [shape: f32[1,1], index: 2, kind: input, shape index: {}]
  %s3 = inlined_call_operand.vmem [shape: f32[1,16], index: 3, kind: input, shape index: {}]
  %s4 = inlined_call_operand.vmem [shape: f32[1,16], index: 4, kind: input, shape index: {}]
  %s5 = inlined_call_operand.vmem [shape: f32[128,1], index: 5, kind: input, shape index: {}]
  %s6 = inlined_call_operand.hbm [shape: f32[128,128], index: 6, kind: output, shape index: {}]
  %s7 = sld [smem:[#allocation0]]
  $region61: #{tpu_custom_call.1} parent=0
    _
  %s9 = ssub.s32 1, %s7
  %s10 = scalar_select 0, %s9, %s7
  %11 = sst [smem:[#allocation2]] %s2
  $region1: #{tpu_custom_call.1} parent=0
    #allocation3 [shape = 'u8[262144]{0}', space=vmem, size = 0x40000, scoped, tag = 'input window, operand 0']
    #allocation4 [shape = 's32[2]{0}', space=sflag, size = 0x8, scoped, tag = 'scoped memory for tpu_custom_call.1']
    #allocation5 [shape = 's32[2]{0}', space=sflag, size = 0x8, scoped, tag = 'scoped memory for tpu_custom_call.1']
    #allocation6 [shape = 'u8[32768]{0}', space=vmem, size = 0x8000, scoped, tag = 'output window, operand 0']
    %12 = vsyncpa [#allocation4], 0
    %s13 = scalar_lea.sflag [#allocation4], 1
    %14 = vsyncpa %s13, 0
    %15 = vsyncpa [#allocation5], 0
    %s16 = scalar_lea.sflag [#allocation5], 1
    %17 = vsyncpa %s16, 0
    loop: start=0, step=1, limit=6
    $region2: #{tpu_custom_call.1} parent=1 // loop_pre_header
      _
    $region3: #{tpu_custom_call.1} parent=1 // loop_header
      %s19 = sphi 0, %s23
      %p20 = scmp.ge.s32.totalorder %s19, 6
      %s29 = sphi 0, %s31
      %s32 = sphi 0, %s29
      %s33 = sphi 0, %s32
      %s49 = sphi 0, %s33
      %s53 = sphi 0, %s53
      %s55 = sphi 0, %s53
      %s56 = sphi 0, %s55
      %s70 = sphi 0, %s56
      %s74 = sphi 0, %s74
      %s76 = sphi 0, %s74
      %s77 = sphi 0, %s76
      %s91 = sphi 0, %s77
      %s95 = sphi 0, %s95
      %s97 = sphi 0, %s95
      %s98 = sphi 0, %s97
      %s112 = sphi 0, %s98
      %s116 = sphi 0, %s116
      %s118 = sphi 0, %s116
      %s119 = sphi 0, %s118
      %s133 = sphi 0, %s119
      %s139 = sphi 0, %s141
      %s142 = sphi 0, %s139
      %s143 = sphi 0, %s142
      %s159 = sphi 0, %s143
      %s165 = sphi 0, %s167
      %s168 = sphi 0, %s165
      %s169 = sphi 0, %s168
      %s185 = sphi 0, %s169
    $region4: #{tpu_custom_call.1} parent=1 // loop_header_branch
      %22 = sbr.rel (%p20) target = $region8
    $region5: #{tpu_custom_call.1} parent=1 // loop_body
      %s24 = ssub.s32 %s19, 1
      %s25 = ssub.s32 %s19, 2
      %s26 = sadd.s32 %s19, 1
      %s27 = ssub.s32 %s19, %s26
      %p28 = scmp.eq.s32.totalorder %s27, 0
      %s30 = sadd.s32 %s29, 1
      %s31 = scalar_select %p28, %s29, %s30
      %p34 = pneg %p28
      %p35 = scmp.eq.s32.totalorder %s19, 3
      %p36 = por %p34, %p35
      %p37 = scmp.ne.s32.totalorder %s29, %s32
      %p38 = scmp.eq.s32.totalorder %s19, 0
      %p39 = por %p37, %p38
      %p40 = scmp.ne.s32.totalorder %s29, %s32
      %p41 = scmp.eq.s32.totalorder %s24, 3
      %p42 = por %p40, %p41
      %p43 = scmp.ne.s32.totalorder %s32, %s33
      %p44 = scmp.eq.s32.totalorder %s24, 0
      %p45 = por %p43, %p44
      %p46 = scmp.ne.s32.totalorder %s32, %s33
      %p47 = scmp.eq.s32.totalorder %s25, 3
      %p48 = por %p46, %p47
      %p50 = scmp.ne.s32.totalorder %s33, %s49
      %p51 = scmp.eq.s32.totalorder %s25, 0
      %p52 = por %p50, %p51
      %s54 = sadd.s32 %s53, 1
      %p57 = scmp.eq.s32.totalorder %s19, 3
      %p58 = scmp.ne.s32.totalorder %s53, %s55
      %p59 = scmp.eq.s32.totalorder %s19, 0
      %p60 = por %p58, %p59
      %p61 = scmp.ne.s32.totalorder %s53, %s55
      %p62 = scmp.eq.s32.totalorder %s24, 3
      %p63 = por %p61, %p62
      %p64 = scmp.ne.s32.totalorder %s55, %s56
      %p65 = scmp.eq.s32.totalorder %s24, 0
      %p66 = por %p64, %p65
      %p67 = scmp.ne.s32.totalorder %s55, %s56
      %p68 = scmp.eq.s32.totalorder %s25, 3
      %p69 = por %p67, %p68
      %p71 = scmp.ne.s32.totalorder %s56, %s70
      %p72 = scmp.eq.s32.totalorder %s25, 0
      %p73 = por %p71, %p72
      %s75 = sadd.s32 %s74, 1
      %p78 = scmp.eq.s32.totalorder %s19, 3
      %p79 = scmp.ne.s32.totalorder %s74, %s76
      %p80 = scmp.eq.s32.totalorder %s19, 0
      %p81 = por %p79, %p80
      %p82 = scmp.ne.s32.totalorder %s74, %s76
      %p83 = scmp.eq.s32.totalorder %s24, 3
      %p84 = por %p82, %p83
      %p85 = scmp.ne.s32.totalorder %s76, %s77
      %p86 = scmp.eq.s32.totalorder %s24, 0
      %p87 = por %p85, %p86
      %p88 = scmp.ne.s32.totalorder %s76, %s77
      %p89 = scmp.eq.s32.totalorder %s25, 3
      %p90 = por %p88, %p89
      %p92 = scmp.ne.s32.totalorder %s77, %s91
      %p93 = scmp.eq.s32.totalorder %s25, 0
      %p94 = por %p92, %p93
      %s96 = sadd.s32 %s95, 1
      %p99 = scmp.eq.s32.totalorder %s19, 3
      %p100 = scmp.ne.s32.totalorder %s95, %s97
      %p101 = scmp.eq.s32.totalorder %s19, 0
      %p102 = por %p100, %p101
      %p103 = scmp.ne.s32.totalorder %s95, %s97
      %p104 = scmp.eq.s32.totalorder %s24, 3
      %p105 = por %p103, %p104
      %p106 = scmp.ne.s32.totalorder %s97, %s98
      %p107 = scmp.eq.s32.totalorder %s24, 0
      %p108 = por %p106, %p107
      %p109 = scmp.ne.s32.totalorder %s97, %s98
      %p110 = scmp.eq.s32.totalorder %s25, 3
      %p111 = por %p109, %p110
      %p113 = scmp.ne.s32.totalorder %s98, %s112
      %p114 = scmp.eq.s32.totalorder %s25, 0
      %p115 = por %p113, %p114
      %s117 = sadd.s32 %s116, 1
      %p120 = scmp.eq.s32.totalorder %s19, 3
      %p121 = scmp.ne.s32.totalorder %s116, %s118
      %p122 = scmp.eq.s32.totalorder %s19, 0
      %p123 = por %p121, %p122
      %p124 = scmp.ne.s32.totalorder %s116, %s118
      %p125 = scmp.eq.s32.totalorder %s24, 3
      %p126 = por %p124, %p125
      %p127 = scmp.ne.s32.totalorder %s118, %s119
      %p128 = scmp.eq.s32.totalorder %s24, 0
      %p129 = por %p127, %p128
      %p130 = scmp.ne.s32.totalorder %s118, %s119
      %p131 = scmp.eq.s32.totalorder %s25, 3
      %p132 = por %p130, %p131
      %p134 = scmp.ne.s32.totalorder %s119, %s133
      %p135 = scmp.eq.s32.totalorder %s25, 0
      %p136 = por %p134, %p135
      %s137 = ssub.s32 %s19, %s26
      %p138 = scmp.eq.s32.totalorder %s137, 0
      %s140 = sadd.s32 %s139, 1
      %s141 = scalar_select %p138, %s139, %s140
      %p144 = pneg %p138
      %p145 = scmp.eq.s32.totalorder %s19, 3
      %p146 = por %p144, %p145
      %p147 = scmp.ne.s32.totalorder %s139, %s142
      %p148 = scmp.eq.s32.totalorder %s19, 0
      %p149 = por %p147, %p148
      %p150 = scmp.ne.s32.totalorder %s139, %s142
      %p151 = scmp.eq.s32.totalorder %s24, 3
      %p152 = por %p150, %p151
      %p153 = scmp.ne.s32.totalorder %s142, %s143
      %p154 = scmp.eq.s32.totalorder %s24, 0
      %p155 = por %p153, %p154
      %p156 = scmp.ne.s32.totalorder %s142, %s143
      %p157 = scmp.eq.s32.totalorder %s25, 3
      %p158 = por %p156, %p157
      %p160 = scmp.ne.s32.totalorder %s143, %s159
      %p161 = scmp.eq.s32.totalorder %s25, 0
      %p162 = por %p160, %p161
      %s163 = ssub.s32 %s19, %s26
      %p164 = scmp.eq.s32.totalorder %s163, 0
      %s166 = sadd.s32 %s165, 1
      %s167 = scalar_select %p164, %s165, %s166
      %p170 = pneg %p164
      %p171 = scmp.eq.s32.totalorder %s19, 3
      %p172 = por %p170, %p171
      %p173 = scmp.ne.s32.totalorder %s165, %s168
      %p174 = scmp.eq.s32.totalorder %s19, 0
      %p175 = por %p173, %p174
      %p176 = scmp.ne.s32.totalorder %s165, %s168
      %p177 = scmp.eq.s32.totalorder %s24, 3
      %p178 = por %p176, %p177
      %p179 = scmp.ne.s32.totalorder %s168, %s169
      %p180 = scmp.eq.s32.totalorder %s24, 0
      %p181 = por %p179, %p180
      %p182 = scmp.ne.s32.totalorder %s168, %s169
      %p183 = scmp.eq.s32.totalorder %s25, 3
      %p184 = por %p182, %p183
      %p186 = scmp.ne.s32.totalorder %s169, %s185
      %p187 = scmp.eq.s32.totalorder %s25, 0
      %p188 = por %p186, %p187
      %p189 = scmp.le.s32.totalorder 1, %s19
      %p190 = scmp.lt.s32.totalorder %s19, 5
      %p191 = pnand %p189, %p190
      %p192 = pneg %p191
      // Predicated region
      $region9: #{tpu_custom_call.1} parent=5 // pred_check
        _
      $region10: #{tpu_custom_call.1} parent=5 // pred_check_branch
        %194 = sbr.rel (%p191) target = $region12
      $region11: #{tpu_custom_call.1} parent=5 // pred_region
        %s195 = ssub.s32 %s19, 1
        // Predicated region
        $region13: #{tpu_custom_call.1} parent=11 // pred_check
          %p196 = pneg %p66
        $region14: #{tpu_custom_call.1} parent=11 // pred_check_branch
          %198 = sbr.rel (%p196) target = $region16
        $region15: #{tpu_custom_call.1} parent=11 // pred_region
          _
        $region16: #{tpu_custom_call.1} parent=11 // pred_fallthru
          _
        // Predicated region
        $region17: #{tpu_custom_call.1} parent=11 // pred_check
          %p199 = pneg %p87
        $region18: #{tpu_custom_call.1} parent=11 // pred_check_branch
          %201 = sbr.rel (%p199) target = $region20
        $region19: #{tpu_custom_call.1} parent=11 // pred_region
          _
        $region20: #{tpu_custom_call.1} parent=11 // pred_fallthru
          _
        // Predicated region
        $region21: #{tpu_custom_call.1} parent=11 // pred_check
          %p202 = pneg %p108
        $region22: #{tpu_custom_call.1} parent=11 // pred_check_branch
          %204 = sbr.rel (%p202) target = $region24
        $region23: #{tpu_custom_call.1} parent=11 // pred_region
          _
        $region24: #{tpu_custom_call.1} parent=11 // pred_fallthru
          _
        // Predicated region
        $region25: #{tpu_custom_call.1} parent=11 // pred_check
          %p205 = pneg %p129
        $region26: #{tpu_custom_call.1} parent=11 // pred_check_branch
          %207 = sbr.rel (%p205) target = $region28
        $region27: #{tpu_custom_call.1} parent=11 // pred_region
          _
        $region28: #{tpu_custom_call.1} parent=11 // pred_fallthru
          _
      $region12: #{tpu_custom_call.1} parent=5 // pred_fallthru
        _
      %p208 = scmp.lt.s32.totalorder %s19, 4
      // Predicated region
      $region29: #{tpu_custom_call.1} parent=5 // pred_check
        %p209 = pneg %p208
      $region30: #{tpu_custom_call.1} parent=5 // pred_check_branch
        %211 = sbr.rel (%p209) target = $region32
      $region31: #{tpu_custom_call.1} parent=5 // pred_region
        // Predicated region
        $region33: #{tpu_custom_call.1} parent=31 // pred_check
          %p212 = pneg %p39
        $region34: #{tpu_custom_call.1} parent=31 // pred_check_branch
          %214 = sbr.rel (%p212) target = $region36
        $region35: #{tpu_custom_call.1} parent=31 // pred_region
          %s215 = sand.u32 %s29, 1
          %s216 = scalar_lea.sflag [#allocation4], %s215
          %s217 = sand.u32 %s29, 1
          %s218 = smul.addr %s217, 256
          %s219 = scalar_lea.vmem [#allocation3], %s218
          %s220 = smul.u32 32, %s19
          %s222 = ssub.s32 4096, 4096
          %223 = vsyncadd %s216, %s222
          %s224 = smul.addr %s220, 2
          %s225 = smul.addr %s224, 64
          %s226 = scalar_lea.hbm %s0, %s225
          %s227 = sshll.u32 %s219, 4
          %s228 = int_to_ptr.vmem [resolvable:$true] %s227
          %233 = dma.hbm_to_vmem [thread:$0]  %s226, 4096, %s228, %s216, 64, 64, 4
        $region36: #{tpu_custom_call.1} parent=31 // pred_fallthru
          _
        // Predicated region
        $region37: #{tpu_custom_call.1} parent=31 // pred_check
          %p234 = pneg %p149
        $region38: #{tpu_custom_call.1} parent=31 // pred_check_branch
          %236 = sbr.rel (%p234) target = $region40
        $region39: #{tpu_custom_call.1} parent=31 // pred_region
          %s237 = smul.u32 4, %s19
          %p238 = scmp.lt.s32.totalorder %s237, 15
          %s239 = scalar_select %p238, %s237, 15
          %s240 = smul.addr %s239, 8
          %s241 = scalar_lea.vmem %s5, %s240
          %s242 = smul.u32 4, %s19
        $region40: #{tpu_custom_call.1} parent=31 // pred_fallthru
          _
      $region32: #{tpu_custom_call.1} parent=5 // pred_fallthru
        _
      %p243 = scmp.le.s32.totalorder 1, %s19
      %p244 = scmp.lt.s32.totalorder %s19, 5
      %p245 = pnand %p243, %p244
      %p246 = pneg %p245
      // Predicated region
      $region41: #{tpu_custom_call.1} parent=5 // pred_check
        _
      $region42: #{tpu_custom_call.1} parent=5 // pred_check_branch
        %248 = sbr.rel (%p245) target = $region44
      $region43: #{tpu_custom_call.1} parent=5 // pred_region
        %s249 = ssub.s32 %s19, 1
        %s250 = sand.u32 %s32, 1
        %s251 = scalar_lea.sflag [#allocation4], %s250
        %s252 = sand.u32 %s32, 1
        %s253 = smul.addr %s252, 256
        %s254 = scalar_lea.vmem [#allocation3], %s253
        // Predicated region
        $region45: #{tpu_custom_call.1} parent=43 // pred_check
          %p255 = pneg %p45
        $region46: #{tpu_custom_call.1} parent=43 // pred_check_branch
          %257 = sbr.rel (%p255) target = $region48
        $region47: #{tpu_custom_call.1} parent=43 // pred_region
          %258 = dma.done %s251, 4096
        $region48: #{tpu_custom_call.1} parent=43 // pred_fallthru
          _
        %s259 = sand.u32 %s32, 1
        %s260 = scalar_lea.sflag [#allocation4], %s259
        %s261 = sand.u32 %s32, 1
        %s262 = smul.addr %s261, 256
        %s263 = scalar_lea.vmem [#allocation3], %s262
        %p264 = pneg %p45
        %p265 = pneg %p42
        %p266 = pneg %p66
        %p267 = pneg %p63
        %p268 = pneg %p87
        %p269 = pneg %p84
        %p270 = pneg %p108
        %p271 = pneg %p105
        %p272 = pneg %p129
        %p273 = pneg %p126
        %s274 = smul.u32 4, %s24
        %p275 = scmp.lt.s32.totalorder %s274, 15
        %s276 = scalar_select %p275, %s274, 15
        %s277 = smul.addr %s276, 8
        %s278 = scalar_lea.vmem %s5, %s277
        %p279 = pneg %p155
        %p280 = pneg %p152
        %p281 = pneg %p181
        %p282 = pneg %p178
        %s283 = sand.u32 %s168, 1
        %s284 = scalar_lea.sflag [#allocation5], %s283
        %s285 = sand.u32 %s168, 1
        %s286 = smul.addr %s285, 32
        %s287 = scalar_lea.vmem [#allocation6], %s286
        %s288 = smul.u32 32, %s24
        %s289 = smul.u32 4, %s24
        %p290 = scmp.lt.s32.totalorder %s289, 15
        %s291 = scalar_select %p290, %s289, 15
        %s292 = smul.addr %s291, 8
        %s293 = scalar_lea.vmem %s5, %s292
        %s294 = smul.u32 4, %s24
        %s295 = smul.u32 4, %s24
        %v297 = vld [vmem:[%s254] sm:$0xf]
        %v298 = vld [vmem:[%s254 + $0x4] sm:$0xf]
        %v299 = vld [vmem:[%s254 + $0x8] sm:$0xf]
        %v300 = vld [vmem:[%s254 + $0xc] sm:$0xf]
        %v301 = vld [vmem:[%s254 + $0x10] sm:$0xf]
        %v302 = vld [vmem:[%s254 + $0x14] sm:$0xf]
        %v303 = vld [vmem:[%s254 + $0x18] sm:$0xf]
        %v304 = vld [vmem:[%s254 + $0x1c] sm:$0xf]
        %v305 = vld [vmem:[%s254 + $0x20] sm:$0xf]
        %v306 = vld [vmem:[%s254 + $0x24] sm:$0xf]
        %v307 = vld [vmem:[%s254 + $0x28] sm:$0xf]
        %v308 = vld [vmem:[%s254 + $0x2c] sm:$0xf]
        %v309 = vld [vmem:[%s254 + $0x30] sm:$0xf]
        %v310 = vld [vmem:[%s254 + $0x34] sm:$0xf]
        %v311 = vld [vmem:[%s254 + $0x38] sm:$0xf]
        %v312 = vld [vmem:[%s254 + $0x3c] sm:$0xf]
        %v313 = vld [vmem:[%s254 + $0x40] sm:$0xf]
        %v314 = vld [vmem:[%s254 + $0x44] sm:$0xf]
        %v315 = vld [vmem:[%s254 + $0x48] sm:$0xf]
        %v316 = vld [vmem:[%s254 + $0x4c] sm:$0xf]
        %v317 = vld [vmem:[%s254 + $0x50] sm:$0xf]
        %v318 = vld [vmem:[%s254 + $0x54] sm:$0xf]
        %v319 = vld [vmem:[%s254 + $0x58] sm:$0xf]
        %v320 = vld [vmem:[%s254 + $0x5c] sm:$0xf]
        %v321 = vld [vmem:[%s254 + $0x60] sm:$0xf]
        %v322 = vld [vmem:[%s254 + $0x64] sm:$0xf]
        %v323 = vld [vmem:[%s254 + $0x68] sm:$0xf]
        %v324 = vld [vmem:[%s254 + $0x6c] sm:$0xf]
        %v325 = vld [vmem:[%s254 + $0x70] sm:$0xf]
        %v326 = vld [vmem:[%s254 + $0x74] sm:$0xf]
        %v327 = vld [vmem:[%s254 + $0x78] sm:$0xf]
        %v328 = vld [vmem:[%s254 + $0x7c] sm:$0xf]
        %v329 = vld [vmem:[%s254 + $0x80] sm:$0xf]
        %v330 = vld [vmem:[%s254 + $0x84] sm:$0xf]
        %v331 = vld [vmem:[%s254 + $0x88] sm:$0xf]
        %v332 = vld [vmem:[%s254 + $0x8c] sm:$0xf]
        %v333 = vld [vmem:[%s254 + $0x90] sm:$0xf]
        %v334 = vld [vmem:[%s254 + $0x94] sm:$0xf]
        %v335 = vld [vmem:[%s254 + $0x98] sm:$0xf]
        %v336 = vld [vmem:[%s254 + $0x9c] sm:$0xf]
        %v337 = vld [vmem:[%s254 + $0xa0] sm:$0xf]
        %v338 = vld [vmem:[%s254 + $0xa4] sm:$0xf]
        %v339 = vld [vmem:[%s254 + $0xa8] sm:$0xf]
        %v340 = vld [vmem:[%s254 + $0xac] sm:$0xf]
        %v341 = vld [vmem:[%s254 + $0xb0] sm:$0xf]
        %v342 = vld [vmem:[%s254 + $0xb4] sm:$0xf]
        %v343 = vld [vmem:[%s254 + $0xb8] sm:$0xf]
        %v344 = vld [vmem:[%s254 + $0xbc] sm:$0xf]
        %v345 = vld [vmem:[%s254 + $0xc0] sm:$0xf]
        %v346 = vld [vmem:[%s254 + $0xc4] sm:$0xf]
        %v347 = vld [vmem:[%s254 + $0xc8] sm:$0xf]
        %v348 = vld [vmem:[%s254 + $0xcc] sm:$0xf]
        %v349 = vld [vmem:[%s254 + $0xd0] sm:$0xf]
        %v350 = vld [vmem:[%s254 + $0xd4] sm:$0xf]
        %v351 = vld [vmem:[%s254 + $0xd8] sm:$0xf]
        %v352 = vld [vmem:[%s254 + $0xdc] sm:$0xf]
        %v353 = vld [vmem:[%s254 + $0xe0] sm:$0xf]
        %v354 = vld [vmem:[%s254 + $0xe4] sm:$0xf]
        %v355 = vld [vmem:[%s254 + $0xe8] sm:$0xf]
        %v356 = vld [vmem:[%s254 + $0xec] sm:$0xf]
        %v357 = vld [vmem:[%s254 + $0xf0] sm:$0xf]
        %v358 = vld [vmem:[%s254 + $0xf4] sm:$0xf]
        %v359 = vld [vmem:[%s254 + $0xf8] sm:$0xf]
        %v360 = vld [vmem:[%s254 + $0xfc] sm:$0xf]
        %s361 = sld [smem:[#allocation2]]
        %v362 = vld [vmem:[%s1] sm:$0xf]
        %v363 = vld [vmem:[%s1 + $0x4] sm:$0xf]
        %v364 = vld [vmem:[%s1 + $0x8] sm:$0xf]
        %v365 = vld [vmem:[%s1 + $0xc] sm:$0xf]
        %v366 = vld [vmem:[%s1 + $0x10] sm:$0xf]
        %v367 = vld [vmem:[%s1 + $0x14] sm:$0xf]
        %v368 = vld [vmem:[%s1 + $0x18] sm:$0xf]
        %v369 = vld [vmem:[%s1 + $0x1c] sm:$0xf]
        %v370 = vld [vmem:[%s1 + $0x20] sm:$0xf]
        %v371 = vld [vmem:[%s1 + $0x24] sm:$0xf]
        %v372 = vld [vmem:[%s1 + $0x28] sm:$0xf]
        %v373 = vld [vmem:[%s1 + $0x2c] sm:$0xf]
        %v374 = vld [vmem:[%s1 + $0x30] sm:$0xf]
        %v375 = vld [vmem:[%s1 + $0x34] sm:$0xf]
        %v376 = vld [vmem:[%s1 + $0x38] sm:$0xf]
        %v377 = vld [vmem:[%s1 + $0x3c] sm:$0xf]
        %v442 = vunpack.c.l.b16 %v297
        %v443 = vunpack.c.l.b16 %v298
        %v444 = vunpack.c.l.b16 %v299
        %v445 = vunpack.c.l.b16 %v300
        %v446 = vunpack.c.l.b16 %v301
        %v447 = vunpack.c.l.b16 %v302
        %v448 = vunpack.c.l.b16 %v303
        %v449 = vunpack.c.l.b16 %v304
        %v450 = vunpack.c.l.b16 %v305
        %v451 = vunpack.c.l.b16 %v306
        %v452 = vunpack.c.l.b16 %v307
        %v453 = vunpack.c.l.b16 %v308
        %v454 = vunpack.c.l.b16 %v309
        %v455 = vunpack.c.l.b16 %v310
        %v456 = vunpack.c.l.b16 %v311
        %v457 = vunpack.c.l.b16 %v312
        %v458 = vunpack.c.l.b16 %v313
        %v459 = vunpack.c.l.b16 %v314
        %v460 = vunpack.c.l.b16 %v315
        %v461 = vunpack.c.l.b16 %v316
        %v462 = vunpack.c.l.b16 %v317
        %v463 = vunpack.c.l.b16 %v318
        %v464 = vunpack.c.l.b16 %v319
        %v465 = vunpack.c.l.b16 %v320
        %v466 = vunpack.c.l.b16 %v321
        %v467 = vunpack.c.l.b16 %v322
        %v468 = vunpack.c.l.b16 %v323
        %v469 = vunpack.c.l.b16 %v324
        %v470 = vunpack.c.l.b16 %v325
        %v471 = vunpack.c.l.b16 %v326
        %v472 = vunpack.c.l.b16 %v327
        %v473 = vunpack.c.l.b16 %v328
        %v474 = vunpack.c.l.b16 %v329
        %v475 = vunpack.c.l.b16 %v330
        %v476 = vunpack.c.l.b16 %v331
        %v477 = vunpack.c.l.b16 %v332
        %v478 = vunpack.c.l.b16 %v333
        %v479 = vunpack.c.l.b16 %v334
        %v480 = vunpack.c.l.b16 %v335
        %v481 = vunpack.c.l.b16 %v336
        %v482 = vunpack.c.l.b16 %v337
        %v483 = vunpack.c.l.b16 %v338
        %v484 = vunpack.c.l.b16 %v339
        %v485 = vunpack.c.l.b16 %v340
        %v486 = vunpack.c.l.b16 %v341
        %v487 = vunpack.c.l.b16 %v342
        %v488 = vunpack.c.l.b16 %v343
        %v489 = vunpack.c.l.b16 %v344
        %v490 = vunpack.c.l.b16 %v345
        %v491 = vunpack.c.l.b16 %v346
        %v492 = vunpack.c.l.b16 %v347
        %v493 = vunpack.c.l.b16 %v348
        %v494 = vunpack.c.l.b16 %v349
        %v495 = vunpack.c.l.b16 %v350
        %v496 = vunpack.c.l.b16 %v351
        %v497 = vunpack.c.l.b16 %v352
        %v498 = vunpack.c.l.b16 %v353
        %v499 = vunpack.c.l.b16 %v354
        %v500 = vunpack.c.l.b16 %v355
        %v501 = vunpack.c.l.b16 %v356
        %v502 = vunpack.c.l.b16 %v357
        %v503 = vunpack.c.l.b16 %v358
        %v504 = vunpack.c.l.b16 %v359
        %v505 = vunpack.c.l.b16 %v360
        %v506 = vpack.c.b16 %v443, %v442
        %v507 = vpack.c.b16 %v445, %v444
        %v508 = vpack.c.b16 %v447, %v446
        %v509 = vpack.c.b16 %v449, %v448
        %v510 = vpack.c.b16 %v451, %v450
        %v511 = vpack.c.b16 %v453, %v452
        %v512 = vpack.c.b16 %v455, %v454
        %v513 = vpack.c.b16 %v457, %v456
        %v514 = vpack.c.b16 %v459, %v458
        %v515 = vpack.c.b16 %v461, %v460
        %v516 = vpack.c.b16 %v463, %v462
        %v517 = vpack.c.b16 %v465, %v464
        %v518 = vpack.c.b16 %v467, %v466
        %v519 = vpack.c.b16 %v469, %v468
        %v520 = vpack.c.b16 %v471, %v470
        %v521 = vpack.c.b16 %v473, %v472
        %v522 = vpack.c.b16 %v475, %v474
        %v523 = vpack.c.b16 %v477, %v476
        %v524 = vpack.c.b16 %v479, %v478
        %v525 = vpack.c.b16 %v481, %v480
        %v526 = vpack.c.b16 %v483, %v482
        %v527 = vpack.c.b16 %v485, %v484
        %v528 = vpack.c.b16 %v487, %v486
        %v529 = vpack.c.b16 %v489, %v488
        %v530 = vpack.c.b16 %v491, %v490
        %v531 = vpack.c.b16 %v493, %v492
        %v532 = vpack.c.b16 %v495, %v494
        %v533 = vpack.c.b16 %v497, %v496
        %v534 = vpack.c.b16 %v499, %v498
        %v535 = vpack.c.b16 %v501, %v500
        %v536 = vpack.c.b16 %v503, %v502
        %v537 = vpack.c.b16 %v505, %v504
        %v586 = vunpack.c.l.b16 %v362
        %v587 = vunpack.c.l.b16 %v363
        %v588 = vunpack.c.l.b16 %v364
        %v589 = vunpack.c.l.b16 %v365
        %v590 = vunpack.c.l.b16 %v366
        %v591 = vunpack.c.l.b16 %v367
        %v592 = vunpack.c.l.b16 %v368
        %v593 = vunpack.c.l.b16 %v369
        %v594 = vunpack.c.l.b16 %v370
        %v595 = vunpack.c.l.b16 %v371
        %v596 = vunpack.c.l.b16 %v372
        %v597 = vunpack.c.l.b16 %v373
        %v598 = vunpack.c.l.b16 %v374
        %v599 = vunpack.c.l.b16 %v375
        %v600 = vunpack.c.l.b16 %v376
        %v601 = vunpack.c.l.b16 %v377
        %v602 = vpack.c.b16 %v587, %v586
        %v603 = vpack.c.b16 %v589, %v588
        %v604 = vpack.c.b16 %v591, %v590
        %v605 = vpack.c.b16 %v593, %v592
        %v606 = vpack.c.b16 %v595, %v594
        %v607 = vpack.c.b16 %v597, %v596
        %v608 = vpack.c.b16 %v599, %v598
        %v609 = vpack.c.b16 %v601, %v600
        %618 = vmatprep.subr.bf16.mxu0 0
        %619 = vmatpush1.bf16.msra.mxu0 %v609
        %620 = vmatprep.subr.bf16.mxu0 0
        %621 = vmatpush1.bf16.msra.mxu0 %v608
        %622 = vmatprep.subr.bf16.mxu0 0
        %623 = vmatpush1.bf16.msra.mxu0 %v607
        %624 = vmatprep.subr.bf16.mxu0 0
        %625 = vmatpush1.bf16.msra.mxu0 %v606
        %626 = vmatprep.subr.bf16.mxu0 0
        %627 = vmatpush1.bf16.msra.mxu0 %v605
        %628 = vmatprep.subr.bf16.mxu0 0
        %629 = vmatpush1.bf16.msra.mxu0 %v604
        %630 = vmatprep.subr.bf16.mxu0 0
        %631 = vmatpush1.bf16.msra.mxu0 %v603
        %632 = vmatprep.subr.bf16.mxu0 0
        %633 = vmatpush1.bf16.msra.mxu0 %v602
        %634 = vmatprep.subr.bf16.mxu0 0
        %635 = vmatpush2.bf16.msra.mxu0 0
        %636 = vmatprep.subr.bf16.mxu0 0
        %637 = vmatpush2.bf16.msra.mxu0 0
        %638 = vmatprep.subr.bf16.mxu0 0
        %639 = vmatpush2.bf16.msra.mxu0 0
        %640 = vmatprep.subr.bf16.mxu0 0
        %641 = vmatpush2.bf16.msra.mxu0 0
        %642 = vmatprep.subr.bf16.mxu0 0
        %643 = vmatpush2.bf16.msra.mxu0 0
        %644 = vmatprep.subr.bf16.mxu0 0
        %645 = vmatpush2.bf16.msra.mxu0 0
        %646 = vmatprep.subr.bf16.mxu0 0
        %647 = vmatpush2.bf16.msra.mxu0 0
        %648 = vmatprep.subr.bf16.mxu0 0
        %649 = vmatpush2.bf16.msra.mxu0 0
        %650 = vmatprep.mubr.bf16.mxu0 0
        %651 = vmatmul.mubr.bf16.gmra.mxu0 %v506
        %v652 = vpop.f32.mrf.mxu0
        %v653 = vadd.f32 0.0, %v652
        %v654 = vpop.f32.mrf.mxu0
        %v655 = vpop.f32.mrf.mxu0
        %v656 = vadd.f32 0.0, %v655
        %v657 = vpop.f32.mrf.mxu0
        %658 = vmatprep.mubr.bf16.mxu0 0
        %659 = vmatmul.mubr.bf16.gmra.mxu0 %v507
        %v660 = vpop.f32.mrf.mxu0
        %v661 = vadd.f32 0.0, %v660
        %v662 = vpop.f32.mrf.mxu0
        %v663 = vpop.f32.mrf.mxu0
        %v664 = vadd.f32 0.0, %v663
        %v665 = vpop.f32.mrf.mxu0
        %666 = vmatprep.mubr.bf16.mxu0 0
        %667 = vmatmul.mubr.bf16.gmra.mxu0 %v508
        %v668 = vpop.f32.mrf.mxu0
        %v669 = vadd.f32 0.0, %v668
        %v670 = vpop.f32.mrf.mxu0
        %v671 = vpop.f32.mrf.mxu0
        %v672 = vadd.f32 0.0, %v671
        %v673 = vpop.f32.mrf.mxu0
        %674 = vmatprep.mubr.bf16.mxu0 0
        %675 = vmatmul.mubr.bf16.gmra.mxu0 %v509
        %v676 = vpop.f32.mrf.mxu0
        %v677 = vadd.f32 0.0, %v676
        %v678 = vpop.f32.mrf.mxu0
        %v679 = vpop.f32.mrf.mxu0
        %v680 = vadd.f32 0.0, %v679
        %v681 = vpop.f32.mrf.mxu0
        %682 = vmatprep.mubr.bf16.mxu0 0
        %683 = vmatmul.mubr.bf16.gmra.mxu0 %v510
        %v684 = vpop.f32.mrf.mxu0
        %v685 = vadd.f32 0.0, %v684
        %v686 = vpop.f32.mrf.mxu0
        %v687 = vpop.f32.mrf.mxu0
        %v688 = vadd.f32 0.0, %v687
        %v689 = vpop.f32.mrf.mxu0
        %690 = vmatprep.mubr.bf16.mxu0 0
        %691 = vmatmul.mubr.bf16.gmra.mxu0 %v511
        %v692 = vpop.f32.mrf.mxu0
        %v693 = vadd.f32 0.0, %v692
        %v694 = vpop.f32.mrf.mxu0
        %v695 = vpop.f32.mrf.mxu0
        %v696 = vadd.f32 0.0, %v695
        %v697 = vpop.f32.mrf.mxu0
        %698 = vmatprep.mubr.bf16.mxu0 0
        %699 = vmatmul.mubr.bf16.gmra.mxu0 %v512
        %v700 = vpop.f32.mrf.mxu0
        %v701 = vadd.f32 0.0, %v700
        %v702 = vpop.f32.mrf.mxu0
        %v703 = vpop.f32.mrf.mxu0
        %v704 = vadd.f32 0.0, %v703
        %v705 = vpop.f32.mrf.mxu0
        %706 = vmatprep.mubr.bf16.mxu0 0
        %707 = vmatmul.mubr.bf16.gmra.mxu0 %v513
        %v708 = vpop.f32.mrf.mxu0
        %v709 = vadd.f32 0.0, %v708
        %v710 = vpop.f32.mrf.mxu0
        %v711 = vpop.f32.mrf.mxu0
        %v712 = vadd.f32 0.0, %v711
        %v713 = vpop.f32.mrf.mxu0
        %714 = vmatprep.mubr.bf16.mxu0 0
        %715 = vmatmul.mubr.bf16.gmra.mxu0 %v514
        %v716 = vpop.f32.mrf.mxu0
        %v717 = vadd.f32 0.0, %v716
        %v718 = vpop.f32.mrf.mxu0
        %v719 = vpop.f32.mrf.mxu0
        %v720 = vadd.f32 0.0, %v719
        %v721 = vpop.f32.mrf.mxu0
        %722 = vmatprep.mubr.bf16.mxu0 0
        %723 = vmatmul.mubr.bf16.gmra.mxu0 %v515
        %v724 = vpop.f32.mrf.mxu0
        %v725 = vadd.f32 0.0, %v724
        %v726 = vpop.f32.mrf.mxu0
        %v727 = vpop.f32.mrf.mxu0
        %v728 = vadd.f32 0.0, %v727
        %v729 = vpop.f32.mrf.mxu0
        %730 = vmatprep.mubr.bf16.mxu0 0
        %731 = vmatmul.mubr.bf16.gmra.mxu0 %v516
        %v732 = vpop.f32.mrf.mxu0
        %v733 = vadd.f32 0.0, %v732
        %v734 = vpop.f32.mrf.mxu0
        %v735 = vpop.f32.mrf.mxu0
        %v736 = vadd.f32 0.0, %v735
        %v737 = vpop.f32.mrf.mxu0
        %738 = vmatprep.mubr.bf16.mxu0 0
        %739 = vmatmul.mubr.bf16.gmra.mxu0 %v517
        %v740 = vpop.f32.mrf.mxu0
        %v741 = vadd.f32 0.0, %v740
        %v742 = vpop.f32.mrf.mxu0
        %v743 = vpop.f32.mrf.mxu0
        %v744 = vadd.f32 0.0, %v743
        %v745 = vpop.f32.mrf.mxu0
        %746 = vmatprep.mubr.bf16.mxu0 0
        %747 = vmatmul.mubr.bf16.gmra.mxu0 %v518
        %v748 = vpop.f32.mrf.mxu0
        %v749 = vadd.f32 0.0, %v748
        %v750 = vpop.f32.mrf.mxu0
        %v751 = vpop.f32.mrf.mxu0
        %v752 = vadd.f32 0.0, %v751
        %v753 = vpop.f32.mrf.mxu0
        %754 = vmatprep.mubr.bf16.mxu0 0
        %755 = vmatmul.mubr.bf16.gmra.mxu0 %v519
        %v756 = vpop.f32.mrf.mxu0
        %v757 = vadd.f32 0.0, %v756
        %v758 = vpop.f32.mrf.mxu0
        %v759 = vpop.f32.mrf.mxu0
        %v760 = vadd.f32 0.0, %v759
        %v761 = vpop.f32.mrf.mxu0
        %762 = vmatprep.mubr.bf16.mxu0 0
        %763 = vmatmul.mubr.bf16.gmra.mxu0 %v520
        %v764 = vpop.f32.mrf.mxu0
        %v765 = vadd.f32 0.0, %v764
        %v766 = vpop.f32.mrf.mxu0
        %v767 = vpop.f32.mrf.mxu0
        %v768 = vadd.f32 0.0, %v767
        %v769 = vpop.f32.mrf.mxu0
        %770 = vmatprep.mubr.bf16.mxu0 0
        %771 = vmatmul.mubr.bf16.gmra.mxu0 %v521
        %v772 = vpop.f32.mrf.mxu0
        %v773 = vadd.f32 0.0, %v772
        %v774 = vpop.f32.mrf.mxu0
        %v775 = vpop.f32.mrf.mxu0
        %v776 = vadd.f32 0.0, %v775
        %v777 = vpop.f32.mrf.mxu0
        %778 = vmatprep.mubr.bf16.mxu0 0
        %779 = vmatmul.mubr.bf16.gmra.mxu0 %v522
        %v780 = vpop.f32.mrf.mxu0
        %v781 = vadd.f32 0.0, %v780
        %v782 = vpop.f32.mrf.mxu0
        %v783 = vpop.f32.mrf.mxu0
        %v784 = vadd.f32 0.0, %v783
        %v785 = vpop.f32.mrf.mxu0
        %786 = vmatprep.mubr.bf16.mxu0 0
        %787 = vmatmul.mubr.bf16.gmra.mxu0 %v523
        %v788 = vpop.f32.mrf.mxu0
        %v789 = vadd.f32 0.0, %v788
        %v790 = vpop.f32.mrf.mxu0
        %v791 = vpop.f32.mrf.mxu0
        %v792 = vadd.f32 0.0, %v791
        %v793 = vpop.f32.mrf.mxu0
        %794 = vmatprep.mubr.bf16.mxu0 0
        %795 = vmatmul.mubr.bf16.gmra.mxu0 %v524
        %v796 = vpop.f32.mrf.mxu0
        %v797 = vadd.f32 0.0, %v796
        %v798 = vpop.f32.mrf.mxu0
        %v799 = vpop.f32.mrf.mxu0
        %v800 = vadd.f32 0.0, %v799
        %v801 = vpop.f32.mrf.mxu0
        %802 = vmatprep.mubr.bf16.mxu0 0
        %803 = vmatmul.mubr.bf16.gmra.mxu0 %v525
        %v804 = vpop.f32.mrf.mxu0
        %v805 = vadd.f32 0.0, %v804
        %v806 = vpop.f32.mrf.mxu0
        %v807 = vpop.f32.mrf.mxu0
        %v808 = vadd.f32 0.0, %v807
        %v809 = vpop.f32.mrf.mxu0
        %810 = vmatprep.mubr.bf16.mxu0 0
        %811 = vmatmul.mubr.bf16.gmra.mxu0 %v526
        %v812 = vpop.f32.mrf.mxu0
        %v813 = vadd.f32 0.0, %v812
        %v814 = vpop.f32.mrf.mxu0
        %v815 = vpop.f32.mrf.mxu0
        %v816 = vadd.f32 0.0, %v815
        %v817 = vpop.f32.mrf.mxu0
        %818 = vmatprep.mubr.bf16.mxu0 0
        %819 = vmatmul.mubr.bf16.gmra.mxu0 %v527
        %v820 = vpop.f32.mrf.mxu0
        %v821 = vadd.f32 0.0, %v820
        %v822 = vpop.f32.mrf.mxu0
        %v823 = vpop.f32.mrf.mxu0
        %v824 = vadd.f32 0.0, %v823
        %v825 = vpop.f32.mrf.mxu0
        %826 = vmatprep.mubr.bf16.mxu0 0
        %827 = vmatmul.mubr.bf16.gmra.mxu0 %v528
        %v828 = vpop.f32.mrf.mxu0
        %v829 = vadd.f32 0.0, %v828
        %v830 = vpop.f32.mrf.mxu0
        %v831 = vpop.f32.mrf.mxu0
        %v832 = vadd.f32 0.0, %v831
        %v833 = vpop.f32.mrf.mxu0
        %834 = vmatprep.mubr.bf16.mxu0 0
        %835 = vmatmul.mubr.bf16.gmra.mxu0 %v529
        %v836 = vpop.f32.mrf.mxu0
        %v837 = vadd.f32 0.0, %v836
        %v838 = vpop.f32.mrf.mxu0
        %v839 = vpop.f32.mrf.mxu0
        %v840 = vadd.f32 0.0, %v839
        %v841 = vpop.f32.mrf.mxu0
        %842 = vmatprep.mubr.bf16.mxu0 0
        %843 = vmatmul.mubr.bf16.gmra.mxu0 %v530
        %v844 = vpop.f32.mrf.mxu0
        %v845 = vadd.f32 0.0, %v844
        %v846 = vpop.f32.mrf.mxu0
        %v847 = vpop.f32.mrf.mxu0
        %v848 = vadd.f32 0.0, %v847
        %v849 = vpop.f32.mrf.mxu0
        %850 = vmatprep.mubr.bf16.mxu0 0
        %851 = vmatmul.mubr.bf16.gmra.mxu0 %v531
        %v852 = vpop.f32.mrf.mxu0
        %v853 = vadd.f32 0.0, %v852
        %v854 = vpop.f32.mrf.mxu0
        %v855 = vpop.f32.mrf.mxu0
        %v856 = vadd.f32 0.0, %v855
        %v857 = vpop.f32.mrf.mxu0
        %858 = vmatprep.mubr.bf16.mxu0 0
        %859 = vmatmul.mubr.bf16.gmra.mxu0 %v532
        %v860 = vpop.f32.mrf.mxu0
        %v861 = vadd.f32 0.0, %v860
        %v862 = vpop.f32.mrf.mxu0
        %v863 = vpop.f32.mrf.mxu0
        %v864 = vadd.f32 0.0, %v863
        %v865 = vpop.f32.mrf.mxu0
        %866 = vmatprep.mubr.bf16.mxu0 0
        %867 = vmatmul.mubr.bf16.gmra.mxu0 %v533
        %v868 = vpop.f32.mrf.mxu0
        %v869 = vadd.f32 0.0, %v868
        %v870 = vpop.f32.mrf.mxu0
        %v871 = vpop.f32.mrf.mxu0
        %v872 = vadd.f32 0.0, %v871
        %v873 = vpop.f32.mrf.mxu0
        %874 = vmatprep.mubr.bf16.mxu0 0
        %875 = vmatmul.mubr.bf16.gmra.mxu0 %v534
        %v876 = vpop.f32.mrf.mxu0
        %v877 = vadd.f32 0.0, %v876
        %v878 = vpop.f32.mrf.mxu0
        %v879 = vpop.f32.mrf.mxu0
        %v880 = vadd.f32 0.0, %v879
        %v881 = vpop.f32.mrf.mxu0
        %882 = vmatprep.mubr.bf16.mxu0 0
        %883 = vmatmul.mubr.bf16.gmra.mxu0 %v535
        %v884 = vpop.f32.mrf.mxu0
        %v885 = vadd.f32 0.0, %v884
        %v886 = vpop.f32.mrf.mxu0
        %v887 = vpop.f32.mrf.mxu0
        %v888 = vadd.f32 0.0, %v887
        %v889 = vpop.f32.mrf.mxu0
        %890 = vmatprep.mubr.bf16.mxu0 0
        %891 = vmatmul.mubr.bf16.gmra.mxu0 %v536
        %v892 = vpop.f32.mrf.mxu0
        %v893 = vadd.f32 0.0, %v892
        %v894 = vpop.f32.mrf.mxu0
        %v895 = vpop.f32.mrf.mxu0
        %v896 = vadd.f32 0.0, %v895
        %v897 = vpop.f32.mrf.mxu0
        %898 = vmatprep.mubr.bf16.mxu0 0
        %899 = vmatmul.mubr.bf16.gmra.mxu0 %v537
        %v900 = vpop.f32.mrf.mxu0
        %v901 = vadd.f32 0.0, %v900
        %v902 = vpop.f32.mrf.mxu0
        %v903 = vpop.f32.mrf.mxu0
        %v904 = vadd.f32 0.0, %v903
        %v905 = vpop.f32.mrf.mxu0
        %906 = vdwg.mxu0
        %v907 = vstv %s361
        %v908 = vadd.f32 %v653, %v907
        %v909 = vadd.f32 %v656, %v907
        %v910 = vadd.f32 %v661, %v907
        %v911 = vadd.f32 %v664, %v907
        %v912 = vadd.f32 %v669, %v907
        %v913 = vadd.f32 %v672, %v907
        %v914 = vadd.f32 %v677, %v907
        %v915 = vadd.f32 %v680, %v907
        %v916 = vadd.f32 %v685, %v907
        %v917 = vadd.f32 %v688, %v907
        %v918 = vadd.f32 %v693, %v907
        %v919 = vadd.f32 %v696, %v907
        %v920 = vadd.f32 %v701, %v907
        %v921 = vadd.f32 %v704, %v907
        %v922 = vadd.f32 %v709, %v907
        %v923 = vadd.f32 %v712, %v907
        %v924 = vadd.f32 %v717, %v907
        %v925 = vadd.f32 %v720, %v907
        %v926 = vadd.f32 %v725, %v907
        %v927 = vadd.f32 %v728, %v907
        %v928 = vadd.f32 %v733, %v907
        %v929 = vadd.f32 %v736, %v907
        %v930 = vadd.f32 %v741, %v907
        %v931 = vadd.f32 %v744, %v907
        %v932 = vadd.f32 %v749, %v907
        %v933 = vadd.f32 %v752, %v907
        %v934 = vadd.f32 %v757, %v907
        %v935 = vadd.f32 %v760, %v907
        %v936 = vadd.f32 %v765, %v907
        %v937 = vadd.f32 %v768, %v907
        %v938 = vadd.f32 %v773, %v907
        %v939 = vadd.f32 %v776, %v907
        %v940 = vadd.f32 %v781, %v907
        %v941 = vadd.f32 %v784, %v907
        %v942 = vadd.f32 %v789, %v907
        %v943 = vadd.f32 %v792, %v907
        %v944 = vadd.f32 %v797, %v907
        %v945 = vadd.f32 %v800, %v907
        %v946 = vadd.f32 %v805, %v907
        %v947 = vadd.f32 %v808, %v907
        %v948 = vadd.f32 %v813, %v907
        %v949 = vadd.f32 %v816, %v907
        %v950 = vadd.f32 %v821, %v907
        %v951 = vadd.f32 %v824, %v907
        %v952 = vadd.f32 %v829, %v907
        %v953 = vadd.f32 %v832, %v907
        %v954 = vadd.f32 %v837, %v907
        %v955 = vadd.f32 %v840, %v907
        %v956 = vadd.f32 %v845, %v907
        %v957 = vadd.f32 %v848, %v907
        %v958 = vadd.f32 %v853, %v907
        %v959 = vadd.f32 %v856, %v907
        %v960 = vadd.f32 %v861, %v907
        %v961 = vadd.f32 %v864, %v907
        %v962 = vadd.f32 %v869, %v907
        %v963 = vadd.f32 %v872, %v907
        %v964 = vadd.f32 %v877, %v907
        %v965 = vadd.f32 %v880, %v907
        %v966 = vadd.f32 %v885, %v907
        %v967 = vadd.f32 %v888, %v907
        %v968 = vadd.f32 %v893, %v907
        %v969 = vadd.f32 %v896, %v907
        %v970 = vadd.f32 %v901, %v907
        %v971 = vadd.f32 %v904, %v907
        %v972 = vld [vmem:[%s293] sm:$0xff]
        %v973 = vld [vmem:[%s293 + $0x8] sm:$0xff]
        %v974 = vld [vmem:[%s293 + $0x10] sm:$0xff]
        %v975 = vld [vmem:[%s293 + $0x18] sm:$0xff]
        %977 = vset.pattern.permute.xlu0 0
        %978 = vperm.xlu0 %977, %v972
        %v979 = vpop.permute.xlu0 %978
        %981 = vset.pattern.permute.xlu0 0
        %982 = vperm.xlu0 %981, %v973
        %v983 = vpop.permute.xlu0 %982
        %985 = vset.pattern.permute.xlu0 0
        %986 = vperm.xlu0 %985, %v974
        %v987 = vpop.permute.xlu0 %986
        %989 = vset.pattern.permute.xlu0 0
        %990 = vperm.xlu0 %989, %v975
        %v991 = vpop.permute.xlu0 %990
        %v992 = vlaneseq
        %v993 = vshrl.u32 %v992, 7
        %v994 = vsub.s32 0, %v993
        %v995 = vrot.slane %v979, %v994
        %v996 = vlaneseq
        %v997 = vshrl.u32 %v996, 7
        %v998 = vsub.s32 1, %v997
        %v999 = vrot.slane %v979, %v998
        %v1000 = vlaneseq
        %v1001 = vshrl.u32 %v1000, 7
        %v1002 = vsub.s32 2, %v1001
        %v1003 = vrot.slane %v979, %v1002
        %v1004 = vlaneseq
        %v1005 = vshrl.u32 %v1004, 7
        %v1006 = vsub.s32 3, %v1005
        %v1007 = vrot.slane %v979, %v1006
        %v1008 = vlaneseq
        %v1009 = vshrl.u32 %v1008, 7
        %v1010 = vsub.s32 4, %v1009
        %v1011 = vrot.slane %v979, %v1010
        %v1012 = vlaneseq
        %v1013 = vshrl.u32 %v1012, 7
        %v1014 = vsub.s32 5, %v1013
        %v1015 = vrot.slane %v979, %v1014
        %v1016 = vlaneseq
        %v1017 = vshrl.u32 %v1016, 7
        %v1018 = vsub.s32 6, %v1017
        %v1019 = vrot.slane %v979, %v1018
        %v1020 = vlaneseq
        %v1021 = vshrl.u32 %v1020, 7
        %v1022 = vsub.s32 7, %v1021
        %v1023 = vrot.slane %v979, %v1022
        %v1024 = vlaneseq
        %v1025 = vshrl.u32 %v1024, 7
        %v1026 = vsub.s32 0, %v1025
        %v1027 = vrot.slane %v983, %v1026
        %v1028 = vlaneseq
        %v1029 = vshrl.u32 %v1028, 7
        %v1030 = vsub.s32 1, %v1029
        %v1031 = vrot.slane %v983, %v1030
        %v1032 = vlaneseq
        %v1033 = vshrl.u32 %v1032, 7
        %v1034 = vsub.s32 2, %v1033
        %v1035 = vrot.slane %v983, %v1034
        %v1036 = vlaneseq
        %v1037 = vshrl.u32 %v1036, 7
        %v1038 = vsub.s32 3, %v1037
        %v1039 = vrot.slane %v983, %v1038
        %v1040 = vlaneseq
        %v1041 = vshrl.u32 %v1040, 7
        %v1042 = vsub.s32 4, %v1041
        %v1043 = vrot.slane %v983, %v1042
        %v1044 = vlaneseq
        %v1045 = vshrl.u32 %v1044, 7
        %v1046 = vsub.s32 5, %v1045
        %v1047 = vrot.slane %v983, %v1046
        %v1048 = vlaneseq
        %v1049 = vshrl.u32 %v1048, 7
        %v1050 = vsub.s32 6, %v1049
        %v1051 = vrot.slane %v983, %v1050
        %v1052 = vlaneseq
        %v1053 = vshrl.u32 %v1052, 7
        %v1054 = vsub.s32 7, %v1053
        %v1055 = vrot.slane %v983, %v1054
        %v1056 = vlaneseq
        %v1057 = vshrl.u32 %v1056, 7
        %v1058 = vsub.s32 0, %v1057
        %v1059 = vrot.slane %v987, %v1058
        %v1060 = vlaneseq
        %v1061 = vshrl.u32 %v1060, 7
        %v1062 = vsub.s32 1, %v1061
        %v1063 = vrot.slane %v987, %v1062
        %v1064 = vlaneseq
        %v1065 = vshrl.u32 %v1064, 7
        %v1066 = vsub.s32 2, %v1065
        %v1067 = vrot.slane %v987, %v1066
        %v1068 = vlaneseq
        %v1069 = vshrl.u32 %v1068, 7
        %v1070 = vsub.s32 3, %v1069
        %v1071 = vrot.slane %v987, %v1070
        %v1072 = vlaneseq
        %v1073 = vshrl.u32 %v1072, 7
        %v1074 = vsub.s32 4, %v1073
        %v1075 = vrot.slane %v987, %v1074
        %v1076 = vlaneseq
        %v1077 = vshrl.u32 %v1076, 7
        %v1078 = vsub.s32 5, %v1077
        %v1079 = vrot.slane %v987, %v1078
        %v1080 = vlaneseq
        %v1081 = vshrl.u32 %v1080, 7
        %v1082 = vsub.s32 6, %v1081
        %v1083 = vrot.slane %v987, %v1082
        %v1084 = vlaneseq
        %v1085 = vshrl.u32 %v1084, 7
        %v1086 = vsub.s32 7, %v1085
        %v1087 = vrot.slane %v987, %v1086
        %v1088 = vlaneseq
        %v1089 = vshrl.u32 %v1088, 7
        %v1090 = vsub.s32 0, %v1089
        %v1091 = vrot.slane %v991, %v1090
        %v1092 = vlaneseq
        %v1093 = vshrl.u32 %v1092, 7
        %v1094 = vsub.s32 1, %v1093
        %v1095 = vrot.slane %v991, %v1094
        %v1096 = vlaneseq
        %v1097 = vshrl.u32 %v1096, 7
        %v1098 = vsub.s32 2, %v1097
        %v1099 = vrot.slane %v991, %v1098
        %v1100 = vlaneseq
        %v1101 = vshrl.u32 %v1100, 7
        %v1102 = vsub.s32 3, %v1101
        %v1103 = vrot.slane %v991, %v1102
        %v1104 = vlaneseq
        %v1105 = vshrl.u32 %v1104, 7
        %v1106 = vsub.s32 4, %v1105
        %v1107 = vrot.slane %v991, %v1106
        %v1108 = vlaneseq
        %v1109 = vshrl.u32 %v1108, 7
        %v1110 = vsub.s32 5, %v1109
        %v1111 = vrot.slane %v991, %v1110
        %v1112 = vlaneseq
        %v1113 = vshrl.u32 %v1112, 7
        %v1114 = vsub.s32 6, %v1113
        %v1115 = vrot.slane %v991, %v1114
        %v1116 = vlaneseq
        %v1117 = vshrl.u32 %v1116, 7
        %v1118 = vsub.s32 7, %v1117
        %v1119 = vrot.slane %v991, %v1118
        %v1152 = vmul.f32 %v908, %v995
        %v1153 = vmul.f32 %v909, %v995
        %v1154 = vmul.f32 %v910, %v999
        %v1155 = vmul.f32 %v911, %v999
        %v1156 = vmul.f32 %v912, %v1003
        %v1157 = vmul.f32 %v913, %v1003
        %v1158 = vmul.f32 %v914, %v1007
        %v1159 = vmul.f32 %v915, %v1007
        %v1160 = vmul.f32 %v916, %v1011
        %v1161 = vmul.f32 %v917, %v1011
        %v1162 = vmul.f32 %v918, %v1015
        %v1163 = vmul.f32 %v919, %v1015
        %v1164 = vmul.f32 %v920, %v1019
        %v1165 = vmul.f32 %v921, %v1019
        %v1166 = vmul.f32 %v922, %v1023
        %v1167 = vmul.f32 %v923, %v1023
        %v1168 = vmul.f32 %v924, %v1027
        %v1169 = vmul.f32 %v925, %v1027
        %v1170 = vmul.f32 %v926, %v1031
        %v1171 = vmul.f32 %v927, %v1031
        %v1172 = vmul.f32 %v928, %v1035
        %v1173 = vmul.f32 %v929, %v1035
        %v1174 = vmul.f32 %v930, %v1039
        %v1175 = vmul.f32 %v931, %v1039
        %v1176 = vmul.f32 %v932, %v1043
        %v1177 = vmul.f32 %v933, %v1043
        %v1178 = vmul.f32 %v934, %v1047
        %v1179 = vmul.f32 %v935, %v1047
        %v1180 = vmul.f32 %v936, %v1051
        %v1181 = vmul.f32 %v937, %v1051
        %v1182 = vmul.f32 %v938, %v1055
        %v1183 = vmul.f32 %v939, %v1055
        %v1184 = vmul.f32 %v940, %v1059
        %v1185 = vmul.f32 %v941, %v1059
        %v1186 = vmul.f32 %v942, %v1063
        %v1187 = vmul.f32 %v943, %v1063
        %v1188 = vmul.f32 %v944, %v1067
        %v1189 = vmul.f32 %v945, %v1067
        %v1190 = vmul.f32 %v946, %v1071
        %v1191 = vmul.f32 %v947, %v1071
        %v1192 = vmul.f32 %v948, %v1075
        %v1193 = vmul.f32 %v949, %v1075
        %v1194 = vmul.f32 %v950, %v1079
        %v1195 = vmul.f32 %v951, %v1079
        %v1196 = vmul.f32 %v952, %v1083
        %v1197 = vmul.f32 %v953, %v1083
        %v1198 = vmul.f32 %v954, %v1087
        %v1199 = vmul.f32 %v955, %v1087
        %v1200 = vmul.f32 %v956, %v1091
        %v1201 = vmul.f32 %v957, %v1091
        %v1202 = vmul.f32 %v958, %v1095
        %v1203 = vmul.f32 %v959, %v1095
        %v1204 = vmul.f32 %v960, %v1099
        %v1205 = vmul.f32 %v961, %v1099
        %v1206 = vmul.f32 %v962, %v1103
        %v1207 = vmul.f32 %v963, %v1103
        %v1208 = vmul.f32 %v964, %v1107
        %v1209 = vmul.f32 %v965, %v1107
        %v1210 = vmul.f32 %v966, %v1111
        %v1211 = vmul.f32 %v967, %v1111
        %v1212 = vmul.f32 %v968, %v1115
        %v1213 = vmul.f32 %v969, %v1115
        %v1214 = vmul.f32 %v970, %v1119
        %v1215 = vmul.f32 %v971, %v1119
        %v1216 = vld [vmem:[%s3] sm:$0x1]
        %v1218 = vlaneseq
        %v1219 = vshrl.u32 %v1218, 7
        %v1220 = vsub.s32 0, %v1219
        %v1221 = vrot.slane %v1216, %v1220
        %1223 = vbcast.lane.b32.xlu0 %v1221, 256
        %v1224 = vpop.permute.xlu0 %1223
        %s1226 = sor.u32 256, 8
        %1227 = vbcast.lane.b32.xlu0 %v1221, %s1226
        %v1228 = vpop.permute.xlu0 %1227
        %v1231 = vmul.f32 %v1152, %v1224
        %v1232 = vmul.f32 %v1153, %v1228
        %v1233 = vmul.f32 %v1154, %v1224
        %v1234 = vmul.f32 %v1155, %v1228
        %v1235 = vmul.f32 %v1156, %v1224
        %v1236 = vmul.f32 %v1157, %v1228
        %v1237 = vmul.f32 %v1158, %v1224
        %v1238 = vmul.f32 %v1159, %v1228
        %v1239 = vmul.f32 %v1160, %v1224
        %v1240 = vmul.f32 %v1161, %v1228
        %v1241 = vmul.f32 %v1162, %v1224
        %v1242 = vmul.f32 %v1163, %v1228
        %v1243 = vmul.f32 %v1164, %v1224
        %v1244 = vmul.f32 %v1165, %v1228
        %v1245 = vmul.f32 %v1166, %v1224
        %v1246 = vmul.f32 %v1167, %v1228
        %v1247 = vmul.f32 %v1168, %v1224
        %v1248 = vmul.f32 %v1169, %v1228
        %v1249 = vmul.f32 %v1170, %v1224
        %v1250 = vmul.f32 %v1171, %v1228
        %v1251 = vmul.f32 %v1172, %v1224
        %v1252 = vmul.f32 %v1173, %v1228
        %v1253 = vmul.f32 %v1174, %v1224
        %v1254 = vmul.f32 %v1175, %v1228
        %v1255 = vmul.f32 %v1176, %v1224
        %v1256 = vmul.f32 %v1177, %v1228
        %v1257 = vmul.f32 %v1178, %v1224
        %v1258 = vmul.f32 %v1179, %v1228
        %v1259 = vmul.f32 %v1180, %v1224
        %v1260 = vmul.f32 %v1181, %v1228
        %v1261 = vmul.f32 %v1182, %v1224
        %v1262 = vmul.f32 %v1183, %v1228
        %v1263 = vmul.f32 %v1184, %v1224
        %v1264 = vmul.f32 %v1185, %v1228
        %v1265 = vmul.f32 %v1186, %v1224
        %v1266 = vmul.f32 %v1187, %v1228
        %v1267 = vmul.f32 %v1188, %v1224
        %v1268 = vmul.f32 %v1189, %v1228
        %v1269 = vmul.f32 %v1190, %v1224
        %v1270 = vmul.f32 %v1191, %v1228
        %v1271 = vmul.f32 %v1192, %v1224
        %v1272 = vmul.f32 %v1193, %v1228
        %v1273 = vmul.f32 %v1194, %v1224
        %v1274 = vmul.f32 %v1195, %v1228
        %v1275 = vmul.f32 %v1196, %v1224
        %v1276 = vmul.f32 %v1197, %v1228
        %v1277 = vmul.f32 %v1198, %v1224
        %v1278 = vmul.f32 %v1199, %v1228
        %v1279 = vmul.f32 %v1200, %v1224
        %v1280 = vmul.f32 %v1201, %v1228
        %v1281 = vmul.f32 %v1202, %v1224
        %v1282 = vmul.f32 %v1203, %v1228
        %v1283 = vmul.f32 %v1204, %v1224
        %v1284 = vmul.f32 %v1205, %v1228
        %v1285 = vmul.f32 %v1206, %v1224
        %v1286 = vmul.f32 %v1207, %v1228
        %v1287 = vmul.f32 %v1208, %v1224
        %v1288 = vmul.f32 %v1209, %v1228
        %v1289 = vmul.f32 %v1210, %v1224
        %v1290 = vmul.f32 %v1211, %v1228
        %v1291 = vmul.f32 %v1212, %v1224
        %v1292 = vmul.f32 %v1213, %v1228
        %v1293 = vmul.f32 %v1214, %v1224
        %v1294 = vmul.f32 %v1215, %v1228
        %v1295 = vld [vmem:[%s4] sm:$0x1]
        %v1297 = vlaneseq
        %v1298 = vshrl.u32 %v1297, 7
        %v1299 = vsub.s32 0, %v1298
        %v1300 = vrot.slane %v1295, %v1299
        %1302 = vbcast.lane.b32.xlu0 %v1300, 256
        %v1303 = vpop.permute.xlu0 %1302
        %s1305 = sor.u32 256, 8
        %1306 = vbcast.lane.b32.xlu0 %v1300, %s1305
        %v1307 = vpop.permute.xlu0 %1306
        %v1310 = vadd.f32 %v1231, %v1303
        %v1311 = vadd.f32 %v1232, %v1307
        %v1312 = vadd.f32 %v1233, %v1303
        %v1313 = vadd.f32 %v1234, %v1307
        %v1314 = vadd.f32 %v1235, %v1303
        %v1315 = vadd.f32 %v1236, %v1307
        %v1316 = vadd.f32 %v1237, %v1303
        %v1317 = vadd.f32 %v1238, %v1307
        %v1318 = vadd.f32 %v1239, %v1303
        %v1319 = vadd.f32 %v1240, %v1307
        %v1320 = vadd.f32 %v1241, %v1303
        %v1321 = vadd.f32 %v1242, %v1307
        %v1322 = vadd.f32 %v1243, %v1303
        %v1323 = vadd.f32 %v1244, %v1307
        %v1324 = vadd.f32 %v1245, %v1303
        %v1325 = vadd.f32 %v1246, %v1307
        %v1326 = vadd.f32 %v1247, %v1303
        %v1327 = vadd.f32 %v1248, %v1307
        %v1328 = vadd.f32 %v1249, %v1303
        %v1329 = vadd.f32 %v1250, %v1307
        %v1330 = vadd.f32 %v1251, %v1303
        %v1331 = vadd.f32 %v1252, %v1307
        %v1332 = vadd.f32 %v1253, %v1303
        %v1333 = vadd.f32 %v1254, %v1307
        %v1334 = vadd.f32 %v1255, %v1303
        %v1335 = vadd.f32 %v1256, %v1307
        %v1336 = vadd.f32 %v1257, %v1303
        %v1337 = vadd.f32 %v1258, %v1307
        %v1338 = vadd.f32 %v1259, %v1303
        %v1339 = vadd.f32 %v1260, %v1307
        %v1340 = vadd.f32 %v1261, %v1303
        %v1341 = vadd.f32 %v1262, %v1307
        %v1342 = vadd.f32 %v1263, %v1303
        %v1343 = vadd.f32 %v1264, %v1307
        %v1344 = vadd.f32 %v1265, %v1303
        %v1345 = vadd.f32 %v1266, %v1307
        %v1346 = vadd.f32 %v1267, %v1303
        %v1347 = vadd.f32 %v1268, %v1307
        %v1348 = vadd.f32 %v1269, %v1303
        %v1349 = vadd.f32 %v1270, %v1307
        %v1350 = vadd.f32 %v1271, %v1303
        %v1351 = vadd.f32 %v1272, %v1307
        %v1352 = vadd.f32 %v1273, %v1303
        %v1353 = vadd.f32 %v1274, %v1307
        %v1354 = vadd.f32 %v1275, %v1303
        %v1355 = vadd.f32 %v1276, %v1307
        %v1356 = vadd.f32 %v1277, %v1303
        %v1357 = vadd.f32 %v1278, %v1307
        %v1358 = vadd.f32 %v1279, %v1303
        %v1359 = vadd.f32 %v1280, %v1307
        %v1360 = vadd.f32 %v1281, %v1303
        %v1361 = vadd.f32 %v1282, %v1307
        %v1362 = vadd.f32 %v1283, %v1303
        %v1363 = vadd.f32 %v1284, %v1307
        %v1364 = vadd.f32 %v1285, %v1303
        %v1365 = vadd.f32 %v1286, %v1307
        %v1366 = vadd.f32 %v1287, %v1303
        %v1367 = vadd.f32 %v1288, %v1307
        %v1368 = vadd.f32 %v1289, %v1303
        %v1369 = vadd.f32 %v1290, %v1307
        %v1370 = vadd.f32 %v1291, %v1303
        %v1371 = vadd.f32 %v1292, %v1307
        %v1372 = vadd.f32 %v1293, %v1303
        %v1373 = vadd.f32 %v1294, %v1307
        %1438 = vset.pattern.permute.xlu0 0
        %1439 = vperm.xlu0 %1438, %v1310
        %v1440 = vpop.permute.xlu0 %1439
        %1441 = vset.pattern.permute.xlu0 0
        %1442 = vperm.xlu0 %1441, %v1311
        %v1443 = vpop.permute.xlu0 %1442
        %1444 = vset.pattern.permute.xlu0 0
        %1445 = vperm.xlu0 %1444, %v1312
        %v1446 = vpop.permute.xlu0 %1445
        %1447 = vset.pattern.permute.xlu0 0
        %1448 = vperm.xlu0 %1447, %v1313
        %v1449 = vpop.permute.xlu0 %1448
        %1450 = vset.pattern.permute.xlu0 0
        %1451 = vperm.xlu0 %1450, %v1314
        %v1452 = vpop.permute.xlu0 %1451
        %1453 = vset.pattern.permute.xlu0 0
        %1454 = vperm.xlu0 %1453, %v1315
        %v1455 = vpop.permute.xlu0 %1454
        %1456 = vset.pattern.permute.xlu0 0
        %1457 = vperm.xlu0 %1456, %v1316
        %v1458 = vpop.permute.xlu0 %1457
        %1459 = vset.pattern.permute.xlu0 0
        %1460 = vperm.xlu0 %1459, %v1317
        %v1461 = vpop.permute.xlu0 %1460
        %1462 = vset.pattern.permute.xlu0 0
        %1463 = vperm.xlu0 %1462, %v1318
        %v1464 = vpop.permute.xlu0 %1463
        %1465 = vset.pattern.permute.xlu0 0
        %1466 = vperm.xlu0 %1465, %v1319
        %v1467 = vpop.permute.xlu0 %1466
        %1468 = vset.pattern.permute.xlu0 0
        %1469 = vperm.xlu0 %1468, %v1320
        %v1470 = vpop.permute.xlu0 %1469
        %1471 = vset.pattern.permute.xlu0 0
        %1472 = vperm.xlu0 %1471, %v1321
        %v1473 = vpop.permute.xlu0 %1472
        %1474 = vset.pattern.permute.xlu0 0
        %1475 = vperm.xlu0 %1474, %v1322
        %v1476 = vpop.permute.xlu0 %1475
        %1477 = vset.pattern.permute.xlu0 0
        %1478 = vperm.xlu0 %1477, %v1323
        %v1479 = vpop.permute.xlu0 %1478
        %1480 = vset.pattern.permute.xlu0 0
        %1481 = vperm.xlu0 %1480, %v1324
        %v1482 = vpop.permute.xlu0 %1481
        %1483 = vset.pattern.permute.xlu0 0
        %1484 = vperm.xlu0 %1483, %v1325
        %v1485 = vpop.permute.xlu0 %1484
        %1486 = vset.pattern.permute.xlu0 0
        %1487 = vperm.xlu0 %1486, %v1326
        %v1488 = vpop.permute.xlu0 %1487
        %1489 = vset.pattern.permute.xlu0 0
        %1490 = vperm.xlu0 %1489, %v1327
        %v1491 = vpop.permute.xlu0 %1490
        %1492 = vset.pattern.permute.xlu0 0
        %1493 = vperm.xlu0 %1492, %v1328
        %v1494 = vpop.permute.xlu0 %1493
        %1495 = vset.pattern.permute.xlu0 0
        %1496 = vperm.xlu0 %1495, %v1329
        %v1497 = vpop.permute.xlu0 %1496
        %1498 = vset.pattern.permute.xlu0 0
        %1499 = vperm.xlu0 %1498, %v1330
        %v1500 = vpop.permute.xlu0 %1499
        %1501 = vset.pattern.permute.xlu0 0
        %1502 = vperm.xlu0 %1501, %v1331
        %v1503 = vpop.permute.xlu0 %1502
        %1504 = vset.pattern.permute.xlu0 0
        %1505 = vperm.xlu0 %1504, %v1332
        %v1506 = vpop.permute.xlu0 %1505
        %1507 = vset.pattern.permute.xlu0 0
        %1508 = vperm.xlu0 %1507, %v1333
        %v1509 = vpop.permute.xlu0 %1508
        %1510 = vset.pattern.permute.xlu0 0
        %1511 = vperm.xlu0 %1510, %v1334
        %v1512 = vpop.permute.xlu0 %1511
        %1513 = vset.pattern.permute.xlu0 0
        %1514 = vperm.xlu0 %1513, %v1335
        %v1515 = vpop.permute.xlu0 %1514
        %1516 = vset.pattern.permute.xlu0 0
        %1517 = vperm.xlu0 %1516, %v1336
        %v1518 = vpop.permute.xlu0 %1517
        %1519 = vset.pattern.permute.xlu0 0
        %1520 = vperm.xlu0 %1519, %v1337
        %v1521 = vpop.permute.xlu0 %1520
        %1522 = vset.pattern.permute.xlu0 0
        %1523 = vperm.xlu0 %1522, %v1338
        %v1524 = vpop.permute.xlu0 %1523
        %1525 = vset.pattern.permute.xlu0 0
        %1526 = vperm.xlu0 %1525, %v1339
        %v1527 = vpop.permute.xlu0 %1526
        %1528 = vset.pattern.permute.xlu0 0
        %1529 = vperm.xlu0 %1528, %v1340
        %v1530 = vpop.permute.xlu0 %1529
        %1531 = vset.pattern.permute.xlu0 0
        %1532 = vperm.xlu0 %1531, %v1341
        %v1533 = vpop.permute.xlu0 %1532
        %1534 = vset.pattern.permute.xlu0 0
        %1535 = vperm.xlu0 %1534, %v1342
        %v1536 = vpop.permute.xlu0 %1535
        %1537 = vset.pattern.permute.xlu0 0
        %1538 = vperm.xlu0 %1537, %v1343
        %v1539 = vpop.permute.xlu0 %1538
        %1540 = vset.pattern.permute.xlu0 0
        %1541 = vperm.xlu0 %1540, %v1344
        %v1542 = vpop.permute.xlu0 %1541
        %1543 = vset.pattern.permute.xlu0 0
        %1544 = vperm.xlu0 %1543, %v1345
        %v1545 = vpop.permute.xlu0 %1544
        %1546 = vset.pattern.permute.xlu0 0
        %1547 = vperm.xlu0 %1546, %v1346
        %v1548 = vpop.permute.xlu0 %1547
        %1549 = vset.pattern.permute.xlu0 0
        %1550 = vperm.xlu0 %1549, %v1347
        %v1551 = vpop.permute.xlu0 %1550
        %1552 = vset.pattern.permute.xlu0 0
        %1553 = vperm.xlu0 %1552, %v1348
        %v1554 = vpop.permute.xlu0 %1553
        %1555 = vset.pattern.permute.xlu0 0
        %1556 = vperm.xlu0 %1555, %v1349
        %v1557 = vpop.permute.xlu0 %1556
        %1558 = vset.pattern.permute.xlu0 0
        %1559 = vperm.xlu0 %1558, %v1350
        %v1560 = vpop.permute.xlu0 %1559
        %1561 = vset.pattern.permute.xlu0 0
        %1562 = vperm.xlu0 %1561, %v1351
        %v1563 = vpop.permute.xlu0 %1562
        %1564 = vset.pattern.permute.xlu0 0
        %1565 = vperm.xlu0 %1564, %v1352
        %v1566 = vpop.permute.xlu0 %1565
        %1567 = vset.pattern.permute.xlu0 0
        %1568 = vperm.xlu0 %1567, %v1353
        %v1569 = vpop.permute.xlu0 %1568
        %1570 = vset.pattern.permute.xlu0 0
        %1571 = vperm.xlu0 %1570, %v1354
        %v1572 = vpop.permute.xlu0 %1571
        %1573 = vset.pattern.permute.xlu0 0
        %1574 = vperm.xlu0 %1573, %v1355
        %v1575 = vpop.permute.xlu0 %1574
        %1576 = vset.pattern.permute.xlu0 0
        %1577 = vperm.xlu0 %1576, %v1356
        %v1578 = vpop.permute.xlu0 %1577
        %1579 = vset.pattern.permute.xlu0 0
        %1580 = vperm.xlu0 %1579, %v1357
        %v1581 = vpop.permute.xlu0 %1580
        %1582 = vset.pattern.permute.xlu0 0
        %1583 = vperm.xlu0 %1582, %v1358
        %v1584 = vpop.permute.xlu0 %1583
        %1585 = vset.pattern.permute.xlu0 0
        %1586 = vperm.xlu0 %1585, %v1359
        %v1587 = vpop.permute.xlu0 %1586
        %1588 = vset.pattern.permute.xlu0 0
        %1589 = vperm.xlu0 %1588, %v1360
        %v1590 = vpop.permute.xlu0 %1589
        %1591 = vset.pattern.permute.xlu0 0
        %1592 = vperm.xlu0 %1591, %v1361
        %v1593 = vpop.permute.xlu0 %1592
        %1594 = vset.pattern.permute.xlu0 0
        %1595 = vperm.xlu0 %1594, %v1362
        %v1596 = vpop.permute.xlu0 %1595
        %1597 = vset.pattern.permute.xlu0 0
        %1598 = vperm.xlu0 %1597, %v1363
        %v1599 = vpop.permute.xlu0 %1598
        %1600 = vset.pattern.permute.xlu0 0
        %1601 = vperm.xlu0 %1600, %v1364
        %v1602 = vpop.permute.xlu0 %1601
        %1603 = vset.pattern.permute.xlu0 0
        %1604 = vperm.xlu0 %1603, %v1365
        %v1605 = vpop.permute.xlu0 %1604
        %1606 = vset.pattern.permute.xlu0 0
        %1607 = vperm.xlu0 %1606, %v1366
        %v1608 = vpop.permute.xlu0 %1607
        %1609 = vset.pattern.permute.xlu0 0
        %1610 = vperm.xlu0 %1609, %v1367
        %v1611 = vpop.permute.xlu0 %1610
        %1612 = vset.pattern.permute.xlu0 0
        %1613 = vperm.xlu0 %1612, %v1368
        %v1614 = vpop.permute.xlu0 %1613
        %1615 = vset.pattern.permute.xlu0 0
        %1616 = vperm.xlu0 %1615, %v1369
        %v1617 = vpop.permute.xlu0 %1616
        %1618 = vset.pattern.permute.xlu0 0
        %1619 = vperm.xlu0 %1618, %v1370
        %v1620 = vpop.permute.xlu0 %1619
        %1621 = vset.pattern.permute.xlu0 0
        %1622 = vperm.xlu0 %1621, %v1371
        %v1623 = vpop.permute.xlu0 %1622
        %1624 = vset.pattern.permute.xlu0 0
        %1625 = vperm.xlu0 %1624, %v1372
        %v1626 = vpop.permute.xlu0 %1625
        %1627 = vset.pattern.permute.xlu0 0
        %1628 = vperm.xlu0 %1627, %v1373
        %v1629 = vpop.permute.xlu0 %1628
        %v1630 = vlaneseq
        %v1631 = vand.u32 %v1630, 127
        %v1632 = vlaneseq
        %v1633 = vshrl.u32 %v1632, 7
        %v1634 = vsub.s32 %v1631, %v1633
        %v1635 = vrot.slane %v1440, %v1634
        %v1636 = vadd.s32 %v1631, 4294967288
        %v1637 = vlaneseq
        %v1638 = vshrl.u32 %v1637, 7
        %v1639 = vsub.s32 %v1636, %v1638
        %v1640 = vrot.slane %v1443, %v1639
        %vm1641 = vcmask 130112
        %v1642 = vsel %vm1641, %v1640, %v1635
        %v1643 = vlaneseq
        %v1644 = vshrl.u32 %v1643, 7
        %v1645 = vsub.s32 %v1631, %v1644
        %v1646 = vrot.slane %v1446, %v1645
        %v1647 = vlaneseq
        %v1648 = vshrl.u32 %v1647, 7
        %v1649 = vsub.s32 %v1636, %v1648
        %v1650 = vrot.slane %v1449, %v1649
        %v1651 = vsel %vm1641, %v1650, %v1646
        %v1652 = vlaneseq
        %v1653 = vshrl.u32 %v1652, 7
        %v1654 = vsub.s32 %v1631, %v1653
        %v1655 = vrot.slane %v1452, %v1654
        %v1656 = vlaneseq
        %v1657 = vshrl.u32 %v1656, 7
        %v1658 = vsub.s32 %v1636, %v1657
        %v1659 = vrot.slane %v1455, %v1658
        %v1660 = vsel %vm1641, %v1659, %v1655
        %v1661 = vlaneseq
        %v1662 = vshrl.u32 %v1661, 7
        %v1663 = vsub.s32 %v1631, %v1662
        %v1664 = vrot.slane %v1458, %v1663
        %v1665 = vlaneseq
        %v1666 = vshrl.u32 %v1665, 7
        %v1667 = vsub.s32 %v1636, %v1666
        %v1668 = vrot.slane %v1461, %v1667
        %v1669 = vsel %vm1641, %v1668, %v1664
        %v1670 = vlaneseq
        %v1671 = vshrl.u32 %v1670, 7
        %v1672 = vsub.s32 %v1631, %v1671
        %v1673 = vrot.slane %v1464, %v1672
        %v1674 = vlaneseq
        %v1675 = vshrl.u32 %v1674, 7
        %v1676 = vsub.s32 %v1636, %v1675
        %v1677 = vrot.slane %v1467, %v1676
        %v1678 = vsel %vm1641, %v1677, %v1673
        %v1679 = vlaneseq
        %v1680 = vshrl.u32 %v1679, 7
        %v1681 = vsub.s32 %v1631, %v1680
        %v1682 = vrot.slane %v1470, %v1681
        %v1683 = vlaneseq
        %v1684 = vshrl.u32 %v1683, 7
        %v1685 = vsub.s32 %v1636, %v1684
        %v1686 = vrot.slane %v1473, %v1685
        %v1687 = vsel %vm1641, %v1686, %v1682
        %v1688 = vlaneseq
        %v1689 = vshrl.u32 %v1688, 7
        %v1690 = vsub.s32 %v1631, %v1689
        %v1691 = vrot.slane %v1476, %v1690
        %v1692 = vlaneseq
        %v1693 = vshrl.u32 %v1692, 7
        %v1694 = vsub.s32 %v1636, %v1693
        %v1695 = vrot.slane %v1479, %v1694
        %v1696 = vsel %vm1641, %v1695, %v1691
        %v1697 = vlaneseq
        %v1698 = vshrl.u32 %v1697, 7
        %v1699 = vsub.s32 %v1631, %v1698
        %v1700 = vrot.slane %v1482, %v1699
        %v1701 = vlaneseq
        %v1702 = vshrl.u32 %v1701, 7
        %v1703 = vsub.s32 %v1636, %v1702
        %v1704 = vrot.slane %v1485, %v1703
        %v1705 = vsel %vm1641, %v1704, %v1700
        %v1706 = vlaneseq
        %v1707 = vshrl.u32 %v1706, 7
        %v1708 = vsub.s32 %v1631, %v1707
        %v1709 = vrot.slane %v1488, %v1708
        %v1710 = vlaneseq
        %v1711 = vshrl.u32 %v1710, 7
        %v1712 = vsub.s32 %v1636, %v1711
        %v1713 = vrot.slane %v1491, %v1712
        %v1714 = vsel %vm1641, %v1713, %v1709
        %v1715 = vlaneseq
        %v1716 = vshrl.u32 %v1715, 7
        %v1717 = vsub.s32 %v1631, %v1716
        %v1718 = vrot.slane %v1494, %v1717
        %v1719 = vlaneseq
        %v1720 = vshrl.u32 %v1719, 7
        %v1721 = vsub.s32 %v1636, %v1720
        %v1722 = vrot.slane %v1497, %v1721
        %v1723 = vsel %vm1641, %v1722, %v1718
        %v1724 = vlaneseq
        %v1725 = vshrl.u32 %v1724, 7
        %v1726 = vsub.s32 %v1631, %v1725
        %v1727 = vrot.slane %v1500, %v1726
        %v1728 = vlaneseq
        %v1729 = vshrl.u32 %v1728, 7
        %v1730 = vsub.s32 %v1636, %v1729
        %v1731 = vrot.slane %v1503, %v1730
        %v1732 = vsel %vm1641, %v1731, %v1727
        %v1733 = vlaneseq
        %v1734 = vshrl.u32 %v1733, 7
        %v1735 = vsub.s32 %v1631, %v1734
        %v1736 = vrot.slane %v1506, %v1735
        %v1737 = vlaneseq
        %v1738 = vshrl.u32 %v1737, 7
        %v1739 = vsub.s32 %v1636, %v1738
        %v1740 = vrot.slane %v1509, %v1739
        %v1741 = vsel %vm1641, %v1740, %v1736
        %v1742 = vlaneseq
        %v1743 = vshrl.u32 %v1742, 7
        %v1744 = vsub.s32 %v1631, %v1743
        %v1745 = vrot.slane %v1512, %v1744
        %v1746 = vlaneseq
        %v1747 = vshrl.u32 %v1746, 7
        %v1748 = vsub.s32 %v1636, %v1747
        %v1749 = vrot.slane %v1515, %v1748
        %v1750 = vsel %vm1641, %v1749, %v1745
        %v1751 = vlaneseq
        %v1752 = vshrl.u32 %v1751, 7
        %v1753 = vsub.s32 %v1631, %v1752
        %v1754 = vrot.slane %v1518, %v1753
        %v1755 = vlaneseq
        %v1756 = vshrl.u32 %v1755, 7
        %v1757 = vsub.s32 %v1636, %v1756
        %v1758 = vrot.slane %v1521, %v1757
        %v1759 = vsel %vm1641, %v1758, %v1754
        %v1760 = vlaneseq
        %v1761 = vshrl.u32 %v1760, 7
        %v1762 = vsub.s32 %v1631, %v1761
        %v1763 = vrot.slane %v1524, %v1762
        %v1764 = vlaneseq
        %v1765 = vshrl.u32 %v1764, 7
        %v1766 = vsub.s32 %v1636, %v1765
        %v1767 = vrot.slane %v1527, %v1766
        %v1768 = vsel %vm1641, %v1767, %v1763
        %v1769 = vlaneseq
        %v1770 = vshrl.u32 %v1769, 7
        %v1771 = vsub.s32 %v1631, %v1770
        %v1772 = vrot.slane %v1530, %v1771
        %v1773 = vlaneseq
        %v1774 = vshrl.u32 %v1773, 7
        %v1775 = vsub.s32 %v1636, %v1774
        %v1776 = vrot.slane %v1533, %v1775
        %v1777 = vsel %vm1641, %v1776, %v1772
        %v1778 = vlaneseq
        %v1779 = vshrl.u32 %v1778, 7
        %v1780 = vsub.s32 %v1631, %v1779
        %v1781 = vrot.slane %v1536, %v1780
        %v1782 = vlaneseq
        %v1783 = vshrl.u32 %v1782, 7
        %v1784 = vsub.s32 %v1636, %v1783
        %v1785 = vrot.slane %v1539, %v1784
        %v1786 = vsel %vm1641, %v1785, %v1781
        %v1787 = vlaneseq
        %v1788 = vshrl.u32 %v1787, 7
        %v1789 = vsub.s32 %v1631, %v1788
        %v1790 = vrot.slane %v1542, %v1789
        %v1791 = vlaneseq
        %v1792 = vshrl.u32 %v1791, 7
        %v1793 = vsub.s32 %v1636, %v1792
        %v1794 = vrot.slane %v1545, %v1793
        %v1795 = vsel %vm1641, %v1794, %v1790
        %v1796 = vlaneseq
        %v1797 = vshrl.u32 %v1796, 7
        %v1798 = vsub.s32 %v1631, %v1797
        %v1799 = vrot.slane %v1548, %v1798
        %v1800 = vlaneseq
        %v1801 = vshrl.u32 %v1800, 7
        %v1802 = vsub.s32 %v1636, %v1801
        %v1803 = vrot.slane %v1551, %v1802
        %v1804 = vsel %vm1641, %v1803, %v1799
        %v1805 = vlaneseq
        %v1806 = vshrl.u32 %v1805, 7
        %v1807 = vsub.s32 %v1631, %v1806
        %v1808 = vrot.slane %v1554, %v1807
        %v1809 = vlaneseq
        %v1810 = vshrl.u32 %v1809, 7
        %v1811 = vsub.s32 %v1636, %v1810
        %v1812 = vrot.slane %v1557, %v1811
        %v1813 = vsel %vm1641, %v1812, %v1808
        %v1814 = vlaneseq
        %v1815 = vshrl.u32 %v1814, 7
        %v1816 = vsub.s32 %v1631, %v1815
        %v1817 = vrot.slane %v1560, %v1816
        %v1818 = vlaneseq
        %v1819 = vshrl.u32 %v1818, 7
        %v1820 = vsub.s32 %v1636, %v1819
        %v1821 = vrot.slane %v1563, %v1820
        %v1822 = vsel %vm1641, %v1821, %v1817
        %v1823 = vlaneseq
        %v1824 = vshrl.u32 %v1823, 7
        %v1825 = vsub.s32 %v1631, %v1824
        %v1826 = vrot.slane %v1566, %v1825
        %v1827 = vlaneseq
        %v1828 = vshrl.u32 %v1827, 7
        %v1829 = vsub.s32 %v1636, %v1828
        %v1830 = vrot.slane %v1569, %v1829
        %v1831 = vsel %vm1641, %v1830, %v1826
        %v1832 = vlaneseq
        %v1833 = vshrl.u32 %v1832, 7
        %v1834 = vsub.s32 %v1631, %v1833
        %v1835 = vrot.slane %v1572, %v1834
        %v1836 = vlaneseq
        %v1837 = vshrl.u32 %v1836, 7
        %v1838 = vsub.s32 %v1636, %v1837
        %v1839 = vrot.slane %v1575, %v1838
        %v1840 = vsel %vm1641, %v1839, %v1835
        %v1841 = vlaneseq
        %v1842 = vshrl.u32 %v1841, 7
        %v1843 = vsub.s32 %v1631, %v1842
        %v1844 = vrot.slane %v1578, %v1843
        %v1845 = vlaneseq
        %v1846 = vshrl.u32 %v1845, 7
        %v1847 = vsub.s32 %v1636, %v1846
        %v1848 = vrot.slane %v1581, %v1847
        %v1849 = vsel %vm1641, %v1848, %v1844
        %v1850 = vlaneseq
        %v1851 = vshrl.u32 %v1850, 7
        %v1852 = vsub.s32 %v1631, %v1851
        %v1853 = vrot.slane %v1584, %v1852
        %v1854 = vlaneseq
        %v1855 = vshrl.u32 %v1854, 7
        %v1856 = vsub.s32 %v1636, %v1855
        %v1857 = vrot.slane %v1587, %v1856
        %v1858 = vsel %vm1641, %v1857, %v1853
        %v1859 = vlaneseq
        %v1860 = vshrl.u32 %v1859, 7
        %v1861 = vsub.s32 %v1631, %v1860
        %v1862 = vrot.slane %v1590, %v1861
        %v1863 = vlaneseq
        %v1864 = vshrl.u32 %v1863, 7
        %v1865 = vsub.s32 %v1636, %v1864
        %v1866 = vrot.slane %v1593, %v1865
        %v1867 = vsel %vm1641, %v1866, %v1862
        %v1868 = vlaneseq
        %v1869 = vshrl.u32 %v1868, 7
        %v1870 = vsub.s32 %v1631, %v1869
        %v1871 = vrot.slane %v1596, %v1870
        %v1872 = vlaneseq
        %v1873 = vshrl.u32 %v1872, 7
        %v1874 = vsub.s32 %v1636, %v1873
        %v1875 = vrot.slane %v1599, %v1874
        %v1876 = vsel %vm1641, %v1875, %v1871
        %v1877 = vlaneseq
        %v1878 = vshrl.u32 %v1877, 7
        %v1879 = vsub.s32 %v1631, %v1878
        %v1880 = vrot.slane %v1602, %v1879
        %v1881 = vlaneseq
        %v1882 = vshrl.u32 %v1881, 7
        %v1883 = vsub.s32 %v1636, %v1882
        %v1884 = vrot.slane %v1605, %v1883
        %v1885 = vsel %vm1641, %v1884, %v1880
        %v1886 = vlaneseq
        %v1887 = vshrl.u32 %v1886, 7
        %v1888 = vsub.s32 %v1631, %v1887
        %v1889 = vrot.slane %v1608, %v1888
        %v1890 = vlaneseq
        %v1891 = vshrl.u32 %v1890, 7
        %v1892 = vsub.s32 %v1636, %v1891
        %v1893 = vrot.slane %v1611, %v1892
        %v1894 = vsel %vm1641, %v1893, %v1889
        %v1895 = vlaneseq
        %v1896 = vshrl.u32 %v1895, 7
        %v1897 = vsub.s32 %v1631, %v1896
        %v1898 = vrot.slane %v1614, %v1897
        %v1899 = vlaneseq
        %v1900 = vshrl.u32 %v1899, 7
        %v1901 = vsub.s32 %v1636, %v1900
        %v1902 = vrot.slane %v1617, %v1901
        %v1903 = vsel %vm1641, %v1902, %v1898
        %v1904 = vlaneseq
        %v1905 = vshrl.u32 %v1904, 7
        %v1906 = vsub.s32 %v1631, %v1905
        %v1907 = vrot.slane %v1620, %v1906
        %v1908 = vlaneseq
        %v1909 = vshrl.u32 %v1908, 7
        %v1910 = vsub.s32 %v1636, %v1909
        %v1911 = vrot.slane %v1623, %v1910
        %v1912 = vsel %vm1641, %v1911, %v1907
        %v1913 = vlaneseq
        %v1914 = vshrl.u32 %v1913, 7
        %v1915 = vsub.s32 %v1631, %v1914
        %v1916 = vrot.slane %v1626, %v1915
        %v1917 = vlaneseq
        %v1918 = vshrl.u32 %v1917, 7
        %v1919 = vsub.s32 %v1636, %v1918
        %v1920 = vrot.slane %v1629, %v1919
        %v1921 = vsel %vm1641, %v1920, %v1916
        %vm1922 = vcmask 1041409
        %v1923 = vsel %vm1922, %v1651, %v1642
        %vm1924 = vcmask 1042434
        %v1925 = vsel %vm1924, %v1660, %v1923
        %vm1926 = vcmask 1043459
        %v1927 = vsel %vm1926, %v1669, %v1925
        %vm1928 = vcmask 1044484
        %v1929 = vsel %vm1928, %v1678, %v1927
        %vm1930 = vcmask 1045509
        %v1931 = vsel %vm1930, %v1687, %v1929
        %vm1932 = vcmask 1046534
        %v1933 = vsel %vm1932, %v1696, %v1931
        %vm1934 = vcmask 1047559
        %v1935 = vsel %vm1934, %v1705, %v1933
        %v1936 = vsel %vm1922, %v1723, %v1714
        %v1937 = vsel %vm1924, %v1732, %v1936
        %v1938 = vsel %vm1926, %v1741, %v1937
        %v1939 = vsel %vm1928, %v1750, %v1938
        %v1940 = vsel %vm1930, %v1759, %v1939
        %v1941 = vsel %vm1932, %v1768, %v1940
        %v1942 = vsel %vm1934, %v1777, %v1941
        %v1943 = vsel %vm1922, %v1795, %v1786
        %v1944 = vsel %vm1924, %v1804, %v1943
        %v1945 = vsel %vm1926, %v1813, %v1944
        %v1946 = vsel %vm1928, %v1822, %v1945
        %v1947 = vsel %vm1930, %v1831, %v1946
        %v1948 = vsel %vm1932, %v1840, %v1947
        %v1949 = vsel %vm1934, %v1849, %v1948
        %v1950 = vsel %vm1922, %v1867, %v1858
        %v1951 = vsel %vm1924, %v1876, %v1950
        %v1952 = vsel %vm1926, %v1885, %v1951
        %v1953 = vsel %vm1928, %v1894, %v1952
        %v1954 = vsel %vm1930, %v1903, %v1953
        %v1955 = vsel %vm1932, %v1912, %v1954
        %v1956 = vsel %vm1934, %v1921, %v1955
        %vm1961 = vcmask 130048
        %v1962 = vsel %vm1961, %v1935, -inf
        %1963 = vmax.xlane.f32.xlu0 %v1962
        %v1964 = vpop.xlane.xlu0 %1963
        %v1965 = vsel %vm1961, %v1942, -inf
        %1966 = vmax.xlane.f32.xlu0 %v1965
        %v1967 = vpop.xlane.xlu0 %1966
        %v1968 = vsel %vm1961, %v1949, -inf
        %1969 = vmax.xlane.f32.xlu0 %v1968
        %v1970 = vpop.xlane.xlu0 %1969
        %v1971 = vsel %vm1961, %v1956, -inf
        %1972 = vmax.xlane.f32.xlu0 %v1971
        %v1973 = vpop.xlane.xlu0 %1972
        %v1978 = vlaneseq
        %v1979 = vshrl.u32 %v1978, 7
        %v1980 = vsub.s32 0, %v1979
        %v1981 = vrot.slane %v1964, %v1980
        %v1982 = vlaneseq
        %v1983 = vshrl.u32 %v1982, 7
        %v1984 = vsub.s32 1, %v1983
        %v1985 = vrot.slane %v1964, %v1984
        %v1986 = vlaneseq
        %v1987 = vshrl.u32 %v1986, 7
        %v1988 = vsub.s32 2, %v1987
        %v1989 = vrot.slane %v1964, %v1988
        %v1990 = vlaneseq
        %v1991 = vshrl.u32 %v1990, 7
        %v1992 = vsub.s32 3, %v1991
        %v1993 = vrot.slane %v1964, %v1992
        %v1994 = vlaneseq
        %v1995 = vshrl.u32 %v1994, 7
        %v1996 = vsub.s32 4, %v1995
        %v1997 = vrot.slane %v1964, %v1996
        %v1998 = vlaneseq
        %v1999 = vshrl.u32 %v1998, 7
        %v2000 = vsub.s32 5, %v1999
        %v2001 = vrot.slane %v1964, %v2000
        %v2002 = vlaneseq
        %v2003 = vshrl.u32 %v2002, 7
        %v2004 = vsub.s32 6, %v2003
        %v2005 = vrot.slane %v1964, %v2004
        %v2006 = vlaneseq
        %v2007 = vshrl.u32 %v2006, 7
        %v2008 = vsub.s32 7, %v2007
        %v2009 = vrot.slane %v1964, %v2008
        %v2010 = vlaneseq
        %v2011 = vshrl.u32 %v2010, 7
        %v2012 = vsub.s32 0, %v2011
        %v2013 = vrot.slane %v1967, %v2012
        %v2014 = vlaneseq
        %v2015 = vshrl.u32 %v2014, 7
        %v2016 = vsub.s32 1, %v2015
        %v2017 = vrot.slane %v1967, %v2016
        %v2018 = vlaneseq
        %v2019 = vshrl.u32 %v2018, 7
        %v2020 = vsub.s32 2, %v2019
        %v2021 = vrot.slane %v1967, %v2020
        %v2022 = vlaneseq
        %v2023 = vshrl.u32 %v2022, 7
        %v2024 = vsub.s32 3, %v2023
        %v2025 = vrot.slane %v1967, %v2024
        %v2026 = vlaneseq
        %v2027 = vshrl.u32 %v2026, 7
        %v2028 = vsub.s32 4, %v2027
        %v2029 = vrot.slane %v1967, %v2028
        %v2030 = vlaneseq
        %v2031 = vshrl.u32 %v2030, 7
        %v2032 = vsub.s32 5, %v2031
        %v2033 = vrot.slane %v1967, %v2032
        %v2034 = vlaneseq
        %v2035 = vshrl.u32 %v2034, 7
        %v2036 = vsub.s32 6, %v2035
        %v2037 = vrot.slane %v1967, %v2036
        %v2038 = vlaneseq
        %v2039 = vshrl.u32 %v2038, 7
        %v2040 = vsub.s32 7, %v2039
        %v2041 = vrot.slane %v1967, %v2040
        %v2042 = vlaneseq
        %v2043 = vshrl.u32 %v2042, 7
        %v2044 = vsub.s32 0, %v2043
        %v2045 = vrot.slane %v1970, %v2044
        %v2046 = vlaneseq
        %v2047 = vshrl.u32 %v2046, 7
        %v2048 = vsub.s32 1, %v2047
        %v2049 = vrot.slane %v1970, %v2048
        %v2050 = vlaneseq
        %v2051 = vshrl.u32 %v2050, 7
        %v2052 = vsub.s32 2, %v2051
        %v2053 = vrot.slane %v1970, %v2052
        %v2054 = vlaneseq
        %v2055 = vshrl.u32 %v2054, 7
        %v2056 = vsub.s32 3, %v2055
        %v2057 = vrot.slane %v1970, %v2056
        %v2058 = vlaneseq
        %v2059 = vshrl.u32 %v2058, 7
        %v2060 = vsub.s32 4, %v2059
        %v2061 = vrot.slane %v1970, %v2060
        %v2062 = vlaneseq
        %v2063 = vshrl.u32 %v2062, 7
        %v2064 = vsub.s32 5, %v2063
        %v2065 = vrot.slane %v1970, %v2064
        %v2066 = vlaneseq
        %v2067 = vshrl.u32 %v2066, 7
        %v2068 = vsub.s32 6, %v2067
        %v2069 = vrot.slane %v1970, %v2068
        %v2070 = vlaneseq
        %v2071 = vshrl.u32 %v2070, 7
        %v2072 = vsub.s32 7, %v2071
        %v2073 = vrot.slane %v1970, %v2072
        %v2074 = vlaneseq
        %v2075 = vshrl.u32 %v2074, 7
        %v2076 = vsub.s32 0, %v2075
        %v2077 = vrot.slane %v1973, %v2076
        %v2078 = vlaneseq
        %v2079 = vshrl.u32 %v2078, 7
        %v2080 = vsub.s32 1, %v2079
        %v2081 = vrot.slane %v1973, %v2080
        %v2082 = vlaneseq
        %v2083 = vshrl.u32 %v2082, 7
        %v2084 = vsub.s32 2, %v2083
        %v2085 = vrot.slane %v1973, %v2084
        %v2086 = vlaneseq
        %v2087 = vshrl.u32 %v2086, 7
        %v2088 = vsub.s32 3, %v2087
        %v2089 = vrot.slane %v1973, %v2088
        %v2090 = vlaneseq
        %v2091 = vshrl.u32 %v2090, 7
        %v2092 = vsub.s32 4, %v2091
        %v2093 = vrot.slane %v1973, %v2092
        %v2094 = vlaneseq
        %v2095 = vshrl.u32 %v2094, 7
        %v2096 = vsub.s32 5, %v2095
        %v2097 = vrot.slane %v1973, %v2096
        %v2098 = vlaneseq
        %v2099 = vshrl.u32 %v2098, 7
        %v2100 = vsub.s32 6, %v2099
        %v2101 = vrot.slane %v1973, %v2100
        %v2102 = vlaneseq
        %v2103 = vshrl.u32 %v2102, 7
        %v2104 = vsub.s32 7, %v2103
        %v2105 = vrot.slane %v1973, %v2104
        %v2138 = vsub.f32 %v1310, %v1981
        %v2139 = vsub.f32 %v1311, %v1981
        %v2140 = vsub.f32 %v1312, %v1985
        %v2141 = vsub.f32 %v1313, %v1985
        %v2142 = vsub.f32 %v1314, %v1989
        %v2143 = vsub.f32 %v1315, %v1989
        %v2144 = vsub.f32 %v1316, %v1993
        %v2145 = vsub.f32 %v1317, %v1993
        %v2146 = vsub.f32 %v1318, %v1997
        %v2147 = vsub.f32 %v1319, %v1997
        %v2148 = vsub.f32 %v1320, %v2001
        %v2149 = vsub.f32 %v1321, %v2001
        %v2150 = vsub.f32 %v1322, %v2005
        %v2151 = vsub.f32 %v1323, %v2005
        %v2152 = vsub.f32 %v1324, %v2009
        %v2153 = vsub.f32 %v1325, %v2009
        %v2154 = vsub.f32 %v1326, %v2013
        %v2155 = vsub.f32 %v1327, %v2013
        %v2156 = vsub.f32 %v1328, %v2017
        %v2157 = vsub.f32 %v1329, %v2017
        %v2158 = vsub.f32 %v1330, %v2021
        %v2159 = vsub.f32 %v1331, %v2021
        %v2160 = vsub.f32 %v1332, %v2025
        %v2161 = vsub.f32 %v1333, %v2025
        %v2162 = vsub.f32 %v1334, %v2029
        %v2163 = vsub.f32 %v1335, %v2029
        %v2164 = vsub.f32 %v1336, %v2033
        %v2165 = vsub.f32 %v1337, %v2033
        %v2166 = vsub.f32 %v1338, %v2037
        %v2167 = vsub.f32 %v1339, %v2037
        %v2168 = vsub.f32 %v1340, %v2041
        %v2169 = vsub.f32 %v1341, %v2041
        %v2170 = vsub.f32 %v1342, %v2045
        %v2171 = vsub.f32 %v1343, %v2045
        %v2172 = vsub.f32 %v1344, %v2049
        %v2173 = vsub.f32 %v1345, %v2049
        %v2174 = vsub.f32 %v1346, %v2053
        %v2175 = vsub.f32 %v1347, %v2053
        %v2176 = vsub.f32 %v1348, %v2057
        %v2177 = vsub.f32 %v1349, %v2057
        %v2178 = vsub.f32 %v1350, %v2061
        %v2179 = vsub.f32 %v1351, %v2061
        %v2180 = vsub.f32 %v1352, %v2065
        %v2181 = vsub.f32 %v1353, %v2065
        %v2182 = vsub.f32 %v1354, %v2069
        %v2183 = vsub.f32 %v1355, %v2069
        %v2184 = vsub.f32 %v1356, %v2073
        %v2185 = vsub.f32 %v1357, %v2073
        %v2186 = vsub.f32 %v1358, %v2077
        %v2187 = vsub.f32 %v1359, %v2077
        %v2188 = vsub.f32 %v1360, %v2081
        %v2189 = vsub.f32 %v1361, %v2081
        %v2190 = vsub.f32 %v1362, %v2085
        %v2191 = vsub.f32 %v1363, %v2085
        %v2192 = vsub.f32 %v1364, %v2089
        %v2193 = vsub.f32 %v1365, %v2089
        %v2194 = vsub.f32 %v1366, %v2093
        %v2195 = vsub.f32 %v1367, %v2093
        %v2196 = vsub.f32 %v1368, %v2097
        %v2197 = vsub.f32 %v1369, %v2097
        %v2198 = vsub.f32 %v1370, %v2101
        %v2199 = vsub.f32 %v1371, %v2101
        %v2200 = vsub.f32 %v1372, %v2105
        %v2201 = vsub.f32 %v1373, %v2105
        %v2202 = vmul.f32 %v2138, 1.442695
        %v2203 = vpow.pop %v2202
        %v2204 = vmul.f32 %v2139, 1.442695
        %v2205 = vpow.pop %v2204
        %v2206 = vmul.f32 %v2140, 1.442695
        %v2207 = vpow.pop %v2206
        %v2208 = vmul.f32 %v2141, 1.442695
        %v2209 = vpow.pop %v2208
        %v2210 = vmul.f32 %v2142, 1.442695
        %v2211 = vpow.pop %v2210
        %v2212 = vmul.f32 %v2143, 1.442695
        %v2213 = vpow.pop %v2212
        %v2214 = vmul.f32 %v2144, 1.442695
        %v2215 = vpow.pop %v2214
        %v2216 = vmul.f32 %v2145, 1.442695
        %v2217 = vpow.pop %v2216
        %v2218 = vmul.f32 %v2146, 1.442695
        %v2219 = vpow.pop %v2218
        %v2220 = vmul.f32 %v2147, 1.442695
        %v2221 = vpow.pop %v2220
        %v2222 = vmul.f32 %v2148, 1.442695
        %v2223 = vpow.pop %v2222
        %v2224 = vmul.f32 %v2149, 1.442695
        %v2225 = vpow.pop %v2224
        %v2226 = vmul.f32 %v2150, 1.442695
        %v2227 = vpow.pop %v2226
        %v2228 = vmul.f32 %v2151, 1.442695
        %v2229 = vpow.pop %v2228
        %v2230 = vmul.f32 %v2152, 1.442695
        %v2231 = vpow.pop %v2230
        %v2232 = vmul.f32 %v2153, 1.442695
        %v2233 = vpow.pop %v2232
        %v2234 = vmul.f32 %v2154, 1.442695
        %v2235 = vpow.pop %v2234
        %v2236 = vmul.f32 %v2155, 1.442695
        %v2237 = vpow.pop %v2236
        %v2238 = vmul.f32 %v2156, 1.442695
        %v2239 = vpow.pop %v2238
        %v2240 = vmul.f32 %v2157, 1.442695
        %v2241 = vpow.pop %v2240
        %v2242 = vmul.f32 %v2158, 1.442695
        %v2243 = vpow.pop %v2242
        %v2244 = vmul.f32 %v2159, 1.442695
        %v2245 = vpow.pop %v2244
        %v2246 = vmul.f32 %v2160, 1.442695
        %v2247 = vpow.pop %v2246
        %v2248 = vmul.f32 %v2161, 1.442695
        %v2249 = vpow.pop %v2248
        %v2250 = vmul.f32 %v2162, 1.442695
        %v2251 = vpow.pop %v2250
        %v2252 = vmul.f32 %v2163, 1.442695
        %v2253 = vpow.pop %v2252
        %v2254 = vmul.f32 %v2164, 1.442695
        %v2255 = vpow.pop %v2254
        %v2256 = vmul.f32 %v2165, 1.442695
        %v2257 = vpow.pop %v2256
        %v2258 = vmul.f32 %v2166, 1.442695
        %v2259 = vpow.pop %v2258
        %v2260 = vmul.f32 %v2167, 1.442695
        %v2261 = vpow.pop %v2260
        %v2262 = vmul.f32 %v2168, 1.442695
        %v2263 = vpow.pop %v2262
        %v2264 = vmul.f32 %v2169, 1.442695
        %v2265 = vpow.pop %v2264
        %v2266 = vmul.f32 %v2170, 1.442695
        %v2267 = vpow.pop %v2266
        %v2268 = vmul.f32 %v2171, 1.442695
        %v2269 = vpow.pop %v2268
        %v2270 = vmul.f32 %v2172, 1.442695
        %v2271 = vpow.pop %v2270
        %v2272 = vmul.f32 %v2173, 1.442695
        %v2273 = vpow.pop %v2272
        %v2274 = vmul.f32 %v2174, 1.442695
        %v2275 = vpow.pop %v2274
        %v2276 = vmul.f32 %v2175, 1.442695
        %v2277 = vpow.pop %v2276
        %v2278 = vmul.f32 %v2176, 1.442695
        %v2279 = vpow.pop %v2278
        %v2280 = vmul.f32 %v2177, 1.442695
        %v2281 = vpow.pop %v2280
        %v2282 = vmul.f32 %v2178, 1.442695
        %v2283 = vpow.pop %v2282
        %v2284 = vmul.f32 %v2179, 1.442695
        %v2285 = vpow.pop %v2284
        %v2286 = vmul.f32 %v2180, 1.442695
        %v2287 = vpow.pop %v2286
        %v2288 = vmul.f32 %v2181, 1.442695
        %v2289 = vpow.pop %v2288
        %v2290 = vmul.f32 %v2182, 1.442695
        %v2291 = vpow.pop %v2290
        %v2292 = vmul.f32 %v2183, 1.442695
        %v2293 = vpow.pop %v2292
        %v2294 = vmul.f32 %v2184, 1.442695
        %v2295 = vpow.pop %v2294
        %v2296 = vmul.f32 %v2185, 1.442695
        %v2297 = vpow.pop %v2296
        %v2298 = vmul.f32 %v2186, 1.442695
        %v2299 = vpow.pop %v2298
        %v2300 = vmul.f32 %v2187, 1.442695
        %v2301 = vpow.pop %v2300
        %v2302 = vmul.f32 %v2188, 1.442695
        %v2303 = vpow.pop %v2302
        %v2304 = vmul.f32 %v2189, 1.442695
        %v2305 = vpow.pop %v2304
        %v2306 = vmul.f32 %v2190, 1.442695
        %v2307 = vpow.pop %v2306
        %v2308 = vmul.f32 %v2191, 1.442695
        %v2309 = vpow.pop %v2308
        %v2310 = vmul.f32 %v2192, 1.442695
        %v2311 = vpow.pop %v2310
        %v2312 = vmul.f32 %v2193, 1.442695
        %v2313 = vpow.pop %v2312
        %v2314 = vmul.f32 %v2194, 1.442695
        %v2315 = vpow.pop %v2314
        %v2316 = vmul.f32 %v2195, 1.442695
        %v2317 = vpow.pop %v2316
        %v2318 = vmul.f32 %v2196, 1.442695
        %v2319 = vpow.pop %v2318
        %v2320 = vmul.f32 %v2197, 1.442695
        %v2321 = vpow.pop %v2320
        %v2322 = vmul.f32 %v2198, 1.442695
        %v2323 = vpow.pop %v2322
        %v2324 = vmul.f32 %v2199, 1.442695
        %v2325 = vpow.pop %v2324
        %v2326 = vmul.f32 %v2200, 1.442695
        %v2327 = vpow.pop %v2326
        %v2328 = vmul.f32 %v2201, 1.442695
        %v2329 = vpow.pop %v2328
        %2394 = vset.pattern.permute.xlu0 0
        %2395 = vperm.xlu0 %2394, %v2203
        %v2396 = vpop.permute.xlu0 %2395
        %2397 = vset.pattern.permute.xlu0 0
        %2398 = vperm.xlu0 %2397, %v2205
        %v2399 = vpop.permute.xlu0 %2398
        %2400 = vset.pattern.permute.xlu0 0
        %2401 = vperm.xlu0 %2400, %v2207
        %v2402 = vpop.permute.xlu0 %2401
        %2403 = vset.pattern.permute.xlu0 0
        %2404 = vperm.xlu0 %2403, %v2209
        %v2405 = vpop.permute.xlu0 %2404
        %2406 = vset.pattern.permute.xlu0 0
        %2407 = vperm.xlu0 %2406, %v2211
        %v2408 = vpop.permute.xlu0 %2407
        %2409 = vset.pattern.permute.xlu0 0
        %2410 = vperm.xlu0 %2409, %v2213
        %v2411 = vpop.permute.xlu0 %2410
        %2412 = vset.pattern.permute.xlu0 0
        %2413 = vperm.xlu0 %2412, %v2215
        %v2414 = vpop.permute.xlu0 %2413
        %2415 = vset.pattern.permute.xlu0 0
        %2416 = vperm.xlu0 %2415, %v2217
        %v2417 = vpop.permute.xlu0 %2416
        %2418 = vset.pattern.permute.xlu0 0
        %2419 = vperm.xlu0 %2418, %v2219
        %v2420 = vpop.permute.xlu0 %2419
        %2421 = vset.pattern.permute.xlu0 0
        %2422 = vperm.xlu0 %2421, %v2221
        %v2423 = vpop.permute.xlu0 %2422
        %2424 = vset.pattern.permute.xlu0 0
        %2425 = vperm.xlu0 %2424, %v2223
        %v2426 = vpop.permute.xlu0 %2425
        %2427 = vset.pattern.permute.xlu0 0
        %2428 = vperm.xlu0 %2427, %v2225
        %v2429 = vpop.permute.xlu0 %2428
        %2430 = vset.pattern.permute.xlu0 0
        %2431 = vperm.xlu0 %2430, %v2227
        %v2432 = vpop.permute.xlu0 %2431
        %2433 = vset.pattern.permute.xlu0 0
        %2434 = vperm.xlu0 %2433, %v2229
        %v2435 = vpop.permute.xlu0 %2434
        %2436 = vset.pattern.permute.xlu0 0
        %2437 = vperm.xlu0 %2436, %v2231
        %v2438 = vpop.permute.xlu0 %2437
        %2439 = vset.pattern.permute.xlu0 0
        %2440 = vperm.xlu0 %2439, %v2233
        %v2441 = vpop.permute.xlu0 %2440
        %2442 = vset.pattern.permute.xlu0 0
        %2443 = vperm.xlu0 %2442, %v2235
        %v2444 = vpop.permute.xlu0 %2443
        %2445 = vset.pattern.permute.xlu0 0
        %2446 = vperm.xlu0 %2445, %v2237
        %v2447 = vpop.permute.xlu0 %2446
        %2448 = vset.pattern.permute.xlu0 0
        %2449 = vperm.xlu0 %2448, %v2239
        %v2450 = vpop.permute.xlu0 %2449
        %2451 = vset.pattern.permute.xlu0 0
        %2452 = vperm.xlu0 %2451, %v2241
        %v2453 = vpop.permute.xlu0 %2452
        %2454 = vset.pattern.permute.xlu0 0
        %2455 = vperm.xlu0 %2454, %v2243
        %v2456 = vpop.permute.xlu0 %2455
        %2457 = vset.pattern.permute.xlu0 0
        %2458 = vperm.xlu0 %2457, %v2245
        %v2459 = vpop.permute.xlu0 %2458
        %2460 = vset.pattern.permute.xlu0 0
        %2461 = vperm.xlu0 %2460, %v2247
        %v2462 = vpop.permute.xlu0 %2461
        %2463 = vset.pattern.permute.xlu0 0
        %2464 = vperm.xlu0 %2463, %v2249
        %v2465 = vpop.permute.xlu0 %2464
        %2466 = vset.pattern.permute.xlu0 0
        %2467 = vperm.xlu0 %2466, %v2251
        %v2468 = vpop.permute.xlu0 %2467
        %2469 = vset.pattern.permute.xlu0 0
        %2470 = vperm.xlu0 %2469, %v2253
        %v2471 = vpop.permute.xlu0 %2470
        %2472 = vset.pattern.permute.xlu0 0
        %2473 = vperm.xlu0 %2472, %v2255
        %v2474 = vpop.permute.xlu0 %2473
        %2475 = vset.pattern.permute.xlu0 0
        %2476 = vperm.xlu0 %2475, %v2257
        %v2477 = vpop.permute.xlu0 %2476
        %2478 = vset.pattern.permute.xlu0 0
        %2479 = vperm.xlu0 %2478, %v2259
        %v2480 = vpop.permute.xlu0 %2479
        %2481 = vset.pattern.permute.xlu0 0
        %2482 = vperm.xlu0 %2481, %v2261
        %v2483 = vpop.permute.xlu0 %2482
        %2484 = vset.pattern.permute.xlu0 0
        %2485 = vperm.xlu0 %2484, %v2263
        %v2486 = vpop.permute.xlu0 %2485
        %2487 = vset.pattern.permute.xlu0 0
        %2488 = vperm.xlu0 %2487, %v2265
        %v2489 = vpop.permute.xlu0 %2488
        %2490 = vset.pattern.permute.xlu0 0
        %2491 = vperm.xlu0 %2490, %v2267
        %v2492 = vpop.permute.xlu0 %2491
        %2493 = vset.pattern.permute.xlu0 0
        %2494 = vperm.xlu0 %2493, %v2269
        %v2495 = vpop.permute.xlu0 %2494
        %2496 = vset.pattern.permute.xlu0 0
        %2497 = vperm.xlu0 %2496, %v2271
        %v2498 = vpop.permute.xlu0 %2497
        %2499 = vset.pattern.permute.xlu0 0
        %2500 = vperm.xlu0 %2499, %v2273
        %v2501 = vpop.permute.xlu0 %2500
        %2502 = vset.pattern.permute.xlu0 0
        %2503 = vperm.xlu0 %2502, %v2275
        %v2504 = vpop.permute.xlu0 %2503
        %2505 = vset.pattern.permute.xlu0 0
        %2506 = vperm.xlu0 %2505, %v2277
        %v2507 = vpop.permute.xlu0 %2506
        %2508 = vset.pattern.permute.xlu0 0
        %2509 = vperm.xlu0 %2508, %v2279
        %v2510 = vpop.permute.xlu0 %2509
        %2511 = vset.pattern.permute.xlu0 0
        %2512 = vperm.xlu0 %2511, %v2281
        %v2513 = vpop.permute.xlu0 %2512
        %2514 = vset.pattern.permute.xlu0 0
        %2515 = vperm.xlu0 %2514, %v2283
        %v2516 = vpop.permute.xlu0 %2515
        %2517 = vset.pattern.permute.xlu0 0
        %2518 = vperm.xlu0 %2517, %v2285
        %v2519 = vpop.permute.xlu0 %2518
        %2520 = vset.pattern.permute.xlu0 0
        %2521 = vperm.xlu0 %2520, %v2287
        %v2522 = vpop.permute.xlu0 %2521
        %2523 = vset.pattern.permute.xlu0 0
        %2524 = vperm.xlu0 %2523, %v2289
        %v2525 = vpop.permute.xlu0 %2524
        %2526 = vset.pattern.permute.xlu0 0
        %2527 = vperm.xlu0 %2526, %v2291
        %v2528 = vpop.permute.xlu0 %2527
        %2529 = vset.pattern.permute.xlu0 0
        %2530 = vperm.xlu0 %2529, %v2293
        %v2531 = vpop.permute.xlu0 %2530
        %2532 = vset.pattern.permute.xlu0 0
        %2533 = vperm.xlu0 %2532, %v2295
        %v2534 = vpop.permute.xlu0 %2533
        %2535 = vset.pattern.permute.xlu0 0
        %2536 = vperm.xlu0 %2535, %v2297
        %v2537 = vpop.permute.xlu0 %2536
        %2538 = vset.pattern.permute.xlu0 0
        %2539 = vperm.xlu0 %2538, %v2299
        %v2540 = vpop.permute.xlu0 %2539
        %2541 = vset.pattern.permute.xlu0 0
        %2542 = vperm.xlu0 %2541, %v2301
        %v2543 = vpop.permute.xlu0 %2542
        %2544 = vset.pattern.permute.xlu0 0
        %2545 = vperm.xlu0 %2544, %v2303
        %v2546 = vpop.permute.xlu0 %2545
        %2547 = vset.pattern.permute.xlu0 0
        %2548 = vperm.xlu0 %2547, %v2305
        %v2549 = vpop.permute.xlu0 %2548
        %2550 = vset.pattern.permute.xlu0 0
        %2551 = vperm.xlu0 %2550, %v2307
        %v2552 = vpop.permute.xlu0 %2551
        %2553 = vset.pattern.permute.xlu0 0
        %2554 = vperm.xlu0 %2553, %v2309
        %v2555 = vpop.permute.xlu0 %2554
        %2556 = vset.pattern.permute.xlu0 0
        %2557 = vperm.xlu0 %2556, %v2311
        %v2558 = vpop.permute.xlu0 %2557
        %2559 = vset.pattern.permute.xlu0 0
        %2560 = vperm.xlu0 %2559, %v2313
        %v2561 = vpop.permute.xlu0 %2560
        %2562 = vset.pattern.permute.xlu0 0
        %2563 = vperm.xlu0 %2562, %v2315
        %v2564 = vpop.permute.xlu0 %2563
        %2565 = vset.pattern.permute.xlu0 0
        %2566 = vperm.xlu0 %2565, %v2317
        %v2567 = vpop.permute.xlu0 %2566
        %2568 = vset.pattern.permute.xlu0 0
        %2569 = vperm.xlu0 %2568, %v2319
        %v2570 = vpop.permute.xlu0 %2569
        %2571 = vset.pattern.permute.xlu0 0
        %2572 = vperm.xlu0 %2571, %v2321
        %v2573 = vpop.permute.xlu0 %2572
        %2574 = vset.pattern.permute.xlu0 0
        %2575 = vperm.xlu0 %2574, %v2323
        %v2576 = vpop.permute.xlu0 %2575
        %2577 = vset.pattern.permute.xlu0 0
        %2578 = vperm.xlu0 %2577, %v2325
        %v2579 = vpop.permute.xlu0 %2578
        %2580 = vset.pattern.permute.xlu0 0
        %2581 = vperm.xlu0 %2580, %v2327
        %v2582 = vpop.permute.xlu0 %2581
        %2583 = vset.pattern.permute.xlu0 0
        %2584 = vperm.xlu0 %2583, %v2329
        %v2585 = vpop.permute.xlu0 %2584
        %v2586 = vlaneseq
        %v2587 = vshrl.u32 %v2586, 7
        %v2588 = vsub.s32 %v1631, %v2587
        %v2589 = vrot.slane %v2396, %v2588
        %v2590 = vlaneseq
        %v2591 = vshrl.u32 %v2590, 7
        %v2592 = vsub.s32 %v1636, %v2591
        %v2593 = vrot.slane %v2399, %v2592
        %v2594 = vsel %vm1641, %v2593, %v2589
        %v2595 = vlaneseq
        %v2596 = vshrl.u32 %v2595, 7
        %v2597 = vsub.s32 %v1631, %v2596
        %v2598 = vrot.slane %v2402, %v2597
        %v2599 = vlaneseq
        %v2600 = vshrl.u32 %v2599, 7
        %v2601 = vsub.s32 %v1636, %v2600
        %v2602 = vrot.slane %v2405, %v2601
        %v2603 = vsel %vm1641, %v2602, %v2598
        %v2604 = vlaneseq
        %v2605 = vshrl.u32 %v2604, 7
        %v2606 = vsub.s32 %v1631, %v2605
        %v2607 = vrot.slane %v2408, %v2606
        %v2608 = vlaneseq
        %v2609 = vshrl.u32 %v2608, 7
        %v2610 = vsub.s32 %v1636, %v2609
        %v2611 = vrot.slane %v2411, %v2610
        %v2612 = vsel %vm1641, %v2611, %v2607
        %v2613 = vlaneseq
        %v2614 = vshrl.u32 %v2613, 7
        %v2615 = vsub.s32 %v1631, %v2614
        %v2616 = vrot.slane %v2414, %v2615
        %v2617 = vlaneseq
        %v2618 = vshrl.u32 %v2617, 7
        %v2619 = vsub.s32 %v1636, %v2618
        %v2620 = vrot.slane %v2417, %v2619
        %v2621 = vsel %vm1641, %v2620, %v2616
        %v2622 = vlaneseq
        %v2623 = vshrl.u32 %v2622, 7
        %v2624 = vsub.s32 %v1631, %v2623
        %v2625 = vrot.slane %v2420, %v2624
        %v2626 = vlaneseq
        %v2627 = vshrl.u32 %v2626, 7
        %v2628 = vsub.s32 %v1636, %v2627
        %v2629 = vrot.slane %v2423, %v2628
        %v2630 = vsel %vm1641, %v2629, %v2625
        %v2631 = vlaneseq
        %v2632 = vshrl.u32 %v2631, 7
        %v2633 = vsub.s32 %v1631, %v2632
        %v2634 = vrot.slane %v2426, %v2633
        %v2635 = vlaneseq
        %v2636 = vshrl.u32 %v2635, 7
        %v2637 = vsub.s32 %v1636, %v2636
        %v2638 = vrot.slane %v2429, %v2637
        %v2639 = vsel %vm1641, %v2638, %v2634
        %v2640 = vlaneseq
        %v2641 = vshrl.u32 %v2640, 7
        %v2642 = vsub.s32 %v1631, %v2641
        %v2643 = vrot.slane %v2432, %v2642
        %v2644 = vlaneseq
        %v2645 = vshrl.u32 %v2644, 7
        %v2646 = vsub.s32 %v1636, %v2645
        %v2647 = vrot.slane %v2435, %v2646
        %v2648 = vsel %vm1641, %v2647, %v2643
        %v2649 = vlaneseq
        %v2650 = vshrl.u32 %v2649, 7
        %v2651 = vsub.s32 %v1631, %v2650
        %v2652 = vrot.slane %v2438, %v2651
        %v2653 = vlaneseq
        %v2654 = vshrl.u32 %v2653, 7
        %v2655 = vsub.s32 %v1636, %v2654
        %v2656 = vrot.slane %v2441, %v2655
        %v2657 = vsel %vm1641, %v2656, %v2652
        %v2658 = vlaneseq
        %v2659 = vshrl.u32 %v2658, 7
        %v2660 = vsub.s32 %v1631, %v2659
        %v2661 = vrot.slane %v2444, %v2660
        %v2662 = vlaneseq
        %v2663 = vshrl.u32 %v2662, 7
        %v2664 = vsub.s32 %v1636, %v2663
        %v2665 = vrot.slane %v2447, %v2664
        %v2666 = vsel %vm1641, %v2665, %v2661
        %v2667 = vlaneseq
        %v2668 = vshrl.u32 %v2667, 7
        %v2669 = vsub.s32 %v1631, %v2668
        %v2670 = vrot.slane %v2450, %v2669
        %v2671 = vlaneseq
        %v2672 = vshrl.u32 %v2671, 7
        %v2673 = vsub.s32 %v1636, %v2672
        %v2674 = vrot.slane %v2453, %v2673
        %v2675 = vsel %vm1641, %v2674, %v2670
        %v2676 = vlaneseq
        %v2677 = vshrl.u32 %v2676, 7
        %v2678 = vsub.s32 %v1631, %v2677
        %v2679 = vrot.slane %v2456, %v2678
        %v2680 = vlaneseq
        %v2681 = vshrl.u32 %v2680, 7
        %v2682 = vsub.s32 %v1636, %v2681
        %v2683 = vrot.slane %v2459, %v2682
        %v2684 = vsel %vm1641, %v2683, %v2679
        %v2685 = vlaneseq
        %v2686 = vshrl.u32 %v2685, 7
        %v2687 = vsub.s32 %v1631, %v2686
        %v2688 = vrot.slane %v2462, %v2687
        %v2689 = vlaneseq
        %v2690 = vshrl.u32 %v2689, 7
        %v2691 = vsub.s32 %v1636, %v2690
        %v2692 = vrot.slane %v2465, %v2691
        %v2693 = vsel %vm1641, %v2692, %v2688
        %v2694 = vlaneseq
        %v2695 = vshrl.u32 %v2694, 7
        %v2696 = vsub.s32 %v1631, %v2695
        %v2697 = vrot.slane %v2468, %v2696
        %v2698 = vlaneseq
        %v2699 = vshrl.u32 %v2698, 7
        %v2700 = vsub.s32 %v1636, %v2699
        %v2701 = vrot.slane %v2471, %v2700
        %v2702 = vsel %vm1641, %v2701, %v2697
        %v2703 = vlaneseq
        %v2704 = vshrl.u32 %v2703, 7
        %v2705 = vsub.s32 %v1631, %v2704
        %v2706 = vrot.slane %v2474, %v2705
        %v2707 = vlaneseq
        %v2708 = vshrl.u32 %v2707, 7
        %v2709 = vsub.s32 %v1636, %v2708
        %v2710 = vrot.slane %v2477, %v2709
        %v2711 = vsel %vm1641, %v2710, %v2706
        %v2712 = vlaneseq
        %v2713 = vshrl.u32 %v2712, 7
        %v2714 = vsub.s32 %v1631, %v2713
        %v2715 = vrot.slane %v2480, %v2714
        %v2716 = vlaneseq
        %v2717 = vshrl.u32 %v2716, 7
        %v2718 = vsub.s32 %v1636, %v2717
        %v2719 = vrot.slane %v2483, %v2718
        %v2720 = vsel %vm1641, %v2719, %v2715
        %v2721 = vlaneseq
        %v2722 = vshrl.u32 %v2721, 7
        %v2723 = vsub.s32 %v1631, %v2722
        %v2724 = vrot.slane %v2486, %v2723
        %v2725 = vlaneseq
        %v2726 = vshrl.u32 %v2725, 7
        %v2727 = vsub.s32 %v1636, %v2726
        %v2728 = vrot.slane %v2489, %v2727
        %v2729 = vsel %vm1641, %v2728, %v2724
        %v2730 = vlaneseq
        %v2731 = vshrl.u32 %v2730, 7
        %v2732 = vsub.s32 %v1631, %v2731
        %v2733 = vrot.slane %v2492, %v2732
        %v2734 = vlaneseq
        %v2735 = vshrl.u32 %v2734, 7
        %v2736 = vsub.s32 %v1636, %v2735
        %v2737 = vrot.slane %v2495, %v2736
        %v2738 = vsel %vm1641, %v2737, %v2733
        %v2739 = vlaneseq
        %v2740 = vshrl.u32 %v2739, 7
        %v2741 = vsub.s32 %v1631, %v2740
        %v2742 = vrot.slane %v2498, %v2741
        %v2743 = vlaneseq
        %v2744 = vshrl.u32 %v2743, 7
        %v2745 = vsub.s32 %v1636, %v2744
        %v2746 = vrot.slane %v2501, %v2745
        %v2747 = vsel %vm1641, %v2746, %v2742
        %v2748 = vlaneseq
        %v2749 = vshrl.u32 %v2748, 7
        %v2750 = vsub.s32 %v1631, %v2749
        %v2751 = vrot.slane %v2504, %v2750
        %v2752 = vlaneseq
        %v2753 = vshrl.u32 %v2752, 7
        %v2754 = vsub.s32 %v1636, %v2753
        %v2755 = vrot.slane %v2507, %v2754
        %v2756 = vsel %vm1641, %v2755, %v2751
        %v2757 = vlaneseq
        %v2758 = vshrl.u32 %v2757, 7
        %v2759 = vsub.s32 %v1631, %v2758
        %v2760 = vrot.slane %v2510, %v2759
        %v2761 = vlaneseq
        %v2762 = vshrl.u32 %v2761, 7
        %v2763 = vsub.s32 %v1636, %v2762
        %v2764 = vrot.slane %v2513, %v2763
        %v2765 = vsel %vm1641, %v2764, %v2760
        %v2766 = vlaneseq
        %v2767 = vshrl.u32 %v2766, 7
        %v2768 = vsub.s32 %v1631, %v2767
        %v2769 = vrot.slane %v2516, %v2768
        %v2770 = vlaneseq
        %v2771 = vshrl.u32 %v2770, 7
        %v2772 = vsub.s32 %v1636, %v2771
        %v2773 = vrot.slane %v2519, %v2772
        %v2774 = vsel %vm1641, %v2773, %v2769
        %v2775 = vlaneseq
        %v2776 = vshrl.u32 %v2775, 7
        %v2777 = vsub.s32 %v1631, %v2776
        %v2778 = vrot.slane %v2522, %v2777
        %v2779 = vlaneseq
        %v2780 = vshrl.u32 %v2779, 7
        %v2781 = vsub.s32 %v1636, %v2780
        %v2782 = vrot.slane %v2525, %v2781
        %v2783 = vsel %vm1641, %v2782, %v2778
        %v2784 = vlaneseq
        %v2785 = vshrl.u32 %v2784, 7
        %v2786 = vsub.s32 %v1631, %v2785
        %v2787 = vrot.slane %v2528, %v2786
        %v2788 = vlaneseq
        %v2789 = vshrl.u32 %v2788, 7
        %v2790 = vsub.s32 %v1636, %v2789
        %v2791 = vrot.slane %v2531, %v2790
        %v2792 = vsel %vm1641, %v2791, %v2787
        %v2793 = vlaneseq
        %v2794 = vshrl.u32 %v2793, 7
        %v2795 = vsub.s32 %v1631, %v2794
        %v2796 = vrot.slane %v2534, %v2795
        %v2797 = vlaneseq
        %v2798 = vshrl.u32 %v2797, 7
        %v2799 = vsub.s32 %v1636, %v2798
        %v2800 = vrot.slane %v2537, %v2799
        %v2801 = vsel %vm1641, %v2800, %v2796
        %v2802 = vlaneseq
        %v2803 = vshrl.u32 %v2802, 7
        %v2804 = vsub.s32 %v1631, %v2803
        %v2805 = vrot.slane %v2540, %v2804
        %v2806 = vlaneseq
        %v2807 = vshrl.u32 %v2806, 7
        %v2808 = vsub.s32 %v1636, %v2807
        %v2809 = vrot.slane %v2543, %v2808
        %v2810 = vsel %vm1641, %v2809, %v2805
        %v2811 = vlaneseq
        %v2812 = vshrl.u32 %v2811, 7
        %v2813 = vsub.s32 %v1631, %v2812
        %v2814 = vrot.slane %v2546, %v2813
        %v2815 = vlaneseq
        %v2816 = vshrl.u32 %v2815, 7
        %v2817 = vsub.s32 %v1636, %v2816
        %v2818 = vrot.slane %v2549, %v2817
        %v2819 = vsel %vm1641, %v2818, %v2814
        %v2820 = vlaneseq
        %v2821 = vshrl.u32 %v2820, 7
        %v2822 = vsub.s32 %v1631, %v2821
        %v2823 = vrot.slane %v2552, %v2822
        %v2824 = vlaneseq
        %v2825 = vshrl.u32 %v2824, 7
        %v2826 = vsub.s32 %v1636, %v2825
        %v2827 = vrot.slane %v2555, %v2826
        %v2828 = vsel %vm1641, %v2827, %v2823
        %v2829 = vlaneseq
        %v2830 = vshrl.u32 %v2829, 7
        %v2831 = vsub.s32 %v1631, %v2830
        %v2832 = vrot.slane %v2558, %v2831
        %v2833 = vlaneseq
        %v2834 = vshrl.u32 %v2833, 7
        %v2835 = vsub.s32 %v1636, %v2834
        %v2836 = vrot.slane %v2561, %v2835
        %v2837 = vsel %vm1641, %v2836, %v2832
        %v2838 = vlaneseq
        %v2839 = vshrl.u32 %v2838, 7
        %v2840 = vsub.s32 %v1631, %v2839
        %v2841 = vrot.slane %v2564, %v2840
        %v2842 = vlaneseq
        %v2843 = vshrl.u32 %v2842, 7
        %v2844 = vsub.s32 %v1636, %v2843
        %v2845 = vrot.slane %v2567, %v2844
        %v2846 = vsel %vm1641, %v2845, %v2841
        %v2847 = vlaneseq
        %v2848 = vshrl.u32 %v2847, 7
        %v2849 = vsub.s32 %v1631, %v2848
        %v2850 = vrot.slane %v2570, %v2849
        %v2851 = vlaneseq
        %v2852 = vshrl.u32 %v2851, 7
        %v2853 = vsub.s32 %v1636, %v2852
        %v2854 = vrot.slane %v2573, %v2853
        %v2855 = vsel %vm1641, %v2854, %v2850
        %v2856 = vlaneseq
        %v2857 = vshrl.u32 %v2856, 7
        %v2858 = vsub.s32 %v1631, %v2857
        %v2859 = vrot.slane %v2576, %v2858
        %v2860 = vlaneseq
        %v2861 = vshrl.u32 %v2860, 7
        %v2862 = vsub.s32 %v1636, %v2861
        %v2863 = vrot.slane %v2579, %v2862
        %v2864 = vsel %vm1641, %v2863, %v2859
        %v2865 = vlaneseq
        %v2866 = vshrl.u32 %v2865, 7
        %v2867 = vsub.s32 %v1631, %v2866
        %v2868 = vrot.slane %v2582, %v2867
        %v2869 = vlaneseq
        %v2870 = vshrl.u32 %v2869, 7
        %v2871 = vsub.s32 %v1636, %v2870
        %v2872 = vrot.slane %v2585, %v2871
        %v2873 = vsel %vm1641, %v2872, %v2868
        %v2874 = vsel %vm1922, %v2603, %v2594
        %v2875 = vsel %vm1924, %v2612, %v2874
        %v2876 = vsel %vm1926, %v2621, %v2875
        %v2877 = vsel %vm1928, %v2630, %v2876
        %v2878 = vsel %vm1930, %v2639, %v2877
        %v2879 = vsel %vm1932, %v2648, %v2878
        %v2880 = vsel %vm1934, %v2657, %v2879
        %v2881 = vsel %vm1922, %v2675, %v2666
        %v2882 = vsel %vm1924, %v2684, %v2881
        %v2883 = vsel %vm1926, %v2693, %v2882
        %v2884 = vsel %vm1928, %v2702, %v2883
        %v2885 = vsel %vm1930, %v2711, %v2884
        %v2886 = vsel %vm1932, %v2720, %v2885
        %v2887 = vsel %vm1934, %v2729, %v2886
        %v2888 = vsel %vm1922, %v2747, %v2738
        %v2889 = vsel %vm1924, %v2756, %v2888
        %v2890 = vsel %vm1926, %v2765, %v2889
        %v2891 = vsel %vm1928, %v2774, %v2890
        %v2892 = vsel %vm1930, %v2783, %v2891
        %v2893 = vsel %vm1932, %v2792, %v2892
        %v2894 = vsel %vm1934, %v2801, %v2893
        %v2895 = vsel %vm1922, %v2819, %v2810
        %v2896 = vsel %vm1924, %v2828, %v2895
        %v2897 = vsel %vm1926, %v2837, %v2896
        %v2898 = vsel %vm1928, %v2846, %v2897
        %v2899 = vsel %vm1930, %v2855, %v2898
        %v2900 = vsel %vm1932, %v2864, %v2899
        %v2901 = vsel %vm1934, %v2873, %v2900
        %v2906 = vsel %vm1961, %v2880, 0.0
        %2907 = vadd.xlane.f32.xlu0 %v2906
        %v2908 = vpop.xlane.xlu0 %2907
        %v2909 = vsel %vm1961, %v2887, 0.0
        %2910 = vadd.xlane.f32.xlu0 %v2909
        %v2911 = vpop.xlane.xlu0 %2910
        %v2912 = vsel %vm1961, %v2894, 0.0
        %2913 = vadd.xlane.f32.xlu0 %v2912
        %v2914 = vpop.xlane.xlu0 %2913
        %v2915 = vsel %vm1961, %v2901, 0.0
        %2916 = vadd.xlane.f32.xlu0 %v2915
        %v2917 = vpop.xlane.xlu0 %2916
        %v2918 = vrcp.pop %v2908
        %v2919 = vrcp.pop %v2911
        %v2920 = vrcp.pop %v2914
        %v2921 = vrcp.pop %v2917
        %v2926 = vlaneseq
        %v2927 = vshrl.u32 %v2926, 7
        %v2928 = vsub.s32 0, %v2927
        %v2929 = vrot.slane %v2918, %v2928
        %v2930 = vlaneseq
        %v2931 = vshrl.u32 %v2930, 7
        %v2932 = vsub.s32 1, %v2931
        %v2933 = vrot.slane %v2918, %v2932
        %v2934 = vlaneseq
        %v2935 = vshrl.u32 %v2934, 7
        %v2936 = vsub.s32 2, %v2935
        %v2937 = vrot.slane %v2918, %v2936
        %v2938 = vlaneseq
        %v2939 = vshrl.u32 %v2938, 7
        %v2940 = vsub.s32 3, %v2939
        %v2941 = vrot.slane %v2918, %v2940
        %v2942 = vlaneseq
        %v2943 = vshrl.u32 %v2942, 7
        %v2944 = vsub.s32 4, %v2943
        %v2945 = vrot.slane %v2918, %v2944
        %v2946 = vlaneseq
        %v2947 = vshrl.u32 %v2946, 7
        %v2948 = vsub.s32 5, %v2947
        %v2949 = vrot.slane %v2918, %v2948
        %v2950 = vlaneseq
        %v2951 = vshrl.u32 %v2950, 7
        %v2952 = vsub.s32 6, %v2951
        %v2953 = vrot.slane %v2918, %v2952
        %v2954 = vlaneseq
        %v2955 = vshrl.u32 %v2954, 7
        %v2956 = vsub.s32 7, %v2955
        %v2957 = vrot.slane %v2918, %v2956
        %v2958 = vlaneseq
        %v2959 = vshrl.u32 %v2958, 7
        %v2960 = vsub.s32 0, %v2959
        %v2961 = vrot.slane %v2919, %v2960
        %v2962 = vlaneseq
        %v2963 = vshrl.u32 %v2962, 7
        %v2964 = vsub.s32 1, %v2963
        %v2965 = vrot.slane %v2919, %v2964
        %v2966 = vlaneseq
        %v2967 = vshrl.u32 %v2966, 7
        %v2968 = vsub.s32 2, %v2967
        %v2969 = vrot.slane %v2919, %v2968
        %v2970 = vlaneseq
        %v2971 = vshrl.u32 %v2970, 7
        %v2972 = vsub.s32 3, %v2971
        %v2973 = vrot.slane %v2919, %v2972
        %v2974 = vlaneseq
        %v2975 = vshrl.u32 %v2974, 7
        %v2976 = vsub.s32 4, %v2975
        %v2977 = vrot.slane %v2919, %v2976
        %v2978 = vlaneseq
        %v2979 = vshrl.u32 %v2978, 7
        %v2980 = vsub.s32 5, %v2979
        %v2981 = vrot.slane %v2919, %v2980
        %v2982 = vlaneseq
        %v2983 = vshrl.u32 %v2982, 7
        %v2984 = vsub.s32 6, %v2983
        %v2985 = vrot.slane %v2919, %v2984
        %v2986 = vlaneseq
        %v2987 = vshrl.u32 %v2986, 7
        %v2988 = vsub.s32 7, %v2987
        %v2989 = vrot.slane %v2919, %v2988
        %v2990 = vlaneseq
        %v2991 = vshrl.u32 %v2990, 7
        %v2992 = vsub.s32 0, %v2991
        %v2993 = vrot.slane %v2920, %v2992
        %v2994 = vlaneseq
        %v2995 = vshrl.u32 %v2994, 7
        %v2996 = vsub.s32 1, %v2995
        %v2997 = vrot.slane %v2920, %v2996
        %v2998 = vlaneseq
        %v2999 = vshrl.u32 %v2998, 7
        %v3000 = vsub.s32 2, %v2999
        %v3001 = vrot.slane %v2920, %v3000
        %v3002 = vlaneseq
        %v3003 = vshrl.u32 %v3002, 7
        %v3004 = vsub.s32 3, %v3003
        %v3005 = vrot.slane %v2920, %v3004
        %v3006 = vlaneseq
        %v3007 = vshrl.u32 %v3006, 7
        %v3008 = vsub.s32 4, %v3007
        %v3009 = vrot.slane %v2920, %v3008
        %v3010 = vlaneseq
        %v3011 = vshrl.u32 %v3010, 7
        %v3012 = vsub.s32 5, %v3011
        %v3013 = vrot.slane %v2920, %v3012
        %v3014 = vlaneseq
        %v3015 = vshrl.u32 %v3014, 7
        %v3016 = vsub.s32 6, %v3015
        %v3017 = vrot.slane %v2920, %v3016
        %v3018 = vlaneseq
        %v3019 = vshrl.u32 %v3018, 7
        %v3020 = vsub.s32 7, %v3019
        %v3021 = vrot.slane %v2920, %v3020
        %v3022 = vlaneseq
        %v3023 = vshrl.u32 %v3022, 7
        %v3024 = vsub.s32 0, %v3023
        %v3025 = vrot.slane %v2921, %v3024
        %v3026 = vlaneseq
        %v3027 = vshrl.u32 %v3026, 7
        %v3028 = vsub.s32 1, %v3027
        %v3029 = vrot.slane %v2921, %v3028
        %v3030 = vlaneseq
        %v3031 = vshrl.u32 %v3030, 7
        %v3032 = vsub.s32 2, %v3031
        %v3033 = vrot.slane %v2921, %v3032
        %v3034 = vlaneseq
        %v3035 = vshrl.u32 %v3034, 7
        %v3036 = vsub.s32 3, %v3035
        %v3037 = vrot.slane %v2921, %v3036
        %v3038 = vlaneseq
        %v3039 = vshrl.u32 %v3038, 7
        %v3040 = vsub.s32 4, %v3039
        %v3041 = vrot.slane %v2921, %v3040
        %v3042 = vlaneseq
        %v3043 = vshrl.u32 %v3042, 7
        %v3044 = vsub.s32 5, %v3043
        %v3045 = vrot.slane %v2921, %v3044
        %v3046 = vlaneseq
        %v3047 = vshrl.u32 %v3046, 7
        %v3048 = vsub.s32 6, %v3047
        %v3049 = vrot.slane %v2921, %v3048
        %v3050 = vlaneseq
        %v3051 = vshrl.u32 %v3050, 7
        %v3052 = vsub.s32 7, %v3051
        %v3053 = vrot.slane %v2921, %v3052
        %v3086 = vmul.f32 %v2203, %v2929
        %v3087 = vmul.f32 %v2205, %v2929
        %v3088 = vmul.f32 %v2207, %v2933
        %v3089 = vmul.f32 %v2209, %v2933
        %v3090 = vmul.f32 %v2211, %v2937
        %v3091 = vmul.f32 %v2213, %v2937
        %v3092 = vmul.f32 %v2215, %v2941
        %v3093 = vmul.f32 %v2217, %v2941
        %v3094 = vmul.f32 %v2219, %v2945
        %v3095 = vmul.f32 %v2221, %v2945
        %v3096 = vmul.f32 %v2223, %v2949
        %v3097 = vmul.f32 %v2225, %v2949
        %v3098 = vmul.f32 %v2227, %v2953
        %v3099 = vmul.f32 %v2229, %v2953
        %v3100 = vmul.f32 %v2231, %v2957
        %v3101 = vmul.f32 %v2233, %v2957
        %v3102 = vmul.f32 %v2235, %v2961
        %v3103 = vmul.f32 %v2237, %v2961
        %v3104 = vmul.f32 %v2239, %v2965
        %v3105 = vmul.f32 %v2241, %v2965
        %v3106 = vmul.f32 %v2243, %v2969
        %v3107 = vmul.f32 %v2245, %v2969
        %v3108 = vmul.f32 %v2247, %v2973
        %v3109 = vmul.f32 %v2249, %v2973
        %v3110 = vmul.f32 %v2251, %v2977
        %v3111 = vmul.f32 %v2253, %v2977
        %v3112 = vmul.f32 %v2255, %v2981
        %v3113 = vmul.f32 %v2257, %v2981
        %v3114 = vmul.f32 %v2259, %v2985
        %v3115 = vmul.f32 %v2261, %v2985
        %v3116 = vmul.f32 %v2263, %v2989
        %v3117 = vmul.f32 %v2265, %v2989
        %v3118 = vmul.f32 %v2267, %v2993
        %v3119 = vmul.f32 %v2269, %v2993
        %v3120 = vmul.f32 %v2271, %v2997
        %v3121 = vmul.f32 %v2273, %v2997
        %v3122 = vmul.f32 %v2275, %v3001
        %v3123 = vmul.f32 %v2277, %v3001
        %v3124 = vmul.f32 %v2279, %v3005
        %v3125 = vmul.f32 %v2281, %v3005
        %v3126 = vmul.f32 %v2283, %v3009
        %v3127 = vmul.f32 %v2285, %v3009
        %v3128 = vmul.f32 %v2287, %v3013
        %v3129 = vmul.f32 %v2289, %v3013
        %v3130 = vmul.f32 %v2291, %v3017
        %v3131 = vmul.f32 %v2293, %v3017
        %v3132 = vmul.f32 %v2295, %v3021
        %v3133 = vmul.f32 %v2297, %v3021
        %v3134 = vmul.f32 %v2299, %v3025
        %v3135 = vmul.f32 %v2301, %v3025
        %v3136 = vmul.f32 %v2303, %v3029
        %v3137 = vmul.f32 %v2305, %v3029
        %v3138 = vmul.f32 %v2307, %v3033
        %v3139 = vmul.f32 %v2309, %v3033
        %v3140 = vmul.f32 %v2311, %v3037
        %v3141 = vmul.f32 %v2313, %v3037
        %v3142 = vmul.f32 %v2315, %v3041
        %v3143 = vmul.f32 %v2317, %v3041
        %v3144 = vmul.f32 %v2319, %v3045
        %v3145 = vmul.f32 %v2321, %v3045
        %v3146 = vmul.f32 %v2323, %v3049
        %v3147 = vmul.f32 %v2325, %v3049
        %v3148 = vmul.f32 %v2327, %v3053
        %v3149 = vmul.f32 %v2329, %v3053
        %v3150 = vunpack.c.l.bf16 %v297
        %v3151 = vunpack.c.l.bf16 %v298
        %v3152 = vunpack.c.l.bf16 %v299
        %v3153 = vunpack.c.l.bf16 %v300
        %v3154 = vunpack.c.l.bf16 %v301
        %v3155 = vunpack.c.l.bf16 %v302
        %v3156 = vunpack.c.l.bf16 %v303
        %v3157 = vunpack.c.l.bf16 %v304
        %v3158 = vunpack.c.l.bf16 %v305
        %v3159 = vunpack.c.l.bf16 %v306
        %v3160 = vunpack.c.l.bf16 %v307
        %v3161 = vunpack.c.l.bf16 %v308
        %v3162 = vunpack.c.l.bf16 %v309
        %v3163 = vunpack.c.l.bf16 %v310
        %v3164 = vunpack.c.l.bf16 %v311
        %v3165 = vunpack.c.l.bf16 %v312
        %v3166 = vunpack.c.l.bf16 %v313
        %v3167 = vunpack.c.l.bf16 %v314
        %v3168 = vunpack.c.l.bf16 %v315
        %v3169 = vunpack.c.l.bf16 %v316
        %v3170 = vunpack.c.l.bf16 %v317
        %v3171 = vunpack.c.l.bf16 %v318
        %v3172 = vunpack.c.l.bf16 %v319
        %v3173 = vunpack.c.l.bf16 %v320
        %v3174 = vunpack.c.l.bf16 %v321
        %v3175 = vunpack.c.l.bf16 %v322
        %v3176 = vunpack.c.l.bf16 %v323
        %v3177 = vunpack.c.l.bf16 %v324
        %v3178 = vunpack.c.l.bf16 %v325
        %v3179 = vunpack.c.l.bf16 %v326
        %v3180 = vunpack.c.l.bf16 %v327
        %v3181 = vunpack.c.l.bf16 %v328
        %v3182 = vunpack.c.l.bf16 %v329
        %v3183 = vunpack.c.l.bf16 %v330
        %v3184 = vunpack.c.l.bf16 %v331
        %v3185 = vunpack.c.l.bf16 %v332
        %v3186 = vunpack.c.l.bf16 %v333
        %v3187 = vunpack.c.l.bf16 %v334
        %v3188 = vunpack.c.l.bf16 %v335
        %v3189 = vunpack.c.l.bf16 %v336
        %v3190 = vunpack.c.l.bf16 %v337
        %v3191 = vunpack.c.l.bf16 %v338
        %v3192 = vunpack.c.l.bf16 %v339
        %v3193 = vunpack.c.l.bf16 %v340
        %v3194 = vunpack.c.l.bf16 %v341
        %v3195 = vunpack.c.l.bf16 %v342
        %v3196 = vunpack.c.l.bf16 %v343
        %v3197 = vunpack.c.l.bf16 %v344
        %v3198 = vunpack.c.l.bf16 %v345
        %v3199 = vunpack.c.l.bf16 %v346
        %v3200 = vunpack.c.l.bf16 %v347
        %v3201 = vunpack.c.l.bf16 %v348
        %v3202 = vunpack.c.l.bf16 %v349
        %v3203 = vunpack.c.l.bf16 %v350
        %v3204 = vunpack.c.l.bf16 %v351
        %v3205 = vunpack.c.l.bf16 %v352
        %v3206 = vunpack.c.l.bf16 %v353
        %v3207 = vunpack.c.l.bf16 %v354
        %v3208 = vunpack.c.l.bf16 %v355
        %v3209 = vunpack.c.l.bf16 %v356
        %v3210 = vunpack.c.l.bf16 %v357
        %v3211 = vunpack.c.l.bf16 %v358
        %v3212 = vunpack.c.l.bf16 %v359
        %v3213 = vunpack.c.l.bf16 %v360
        %3215 = vset.pattern.permute.xlu0 0
        %3216 = vperm.xlu0 %3215, %v3086
        %v3217 = vpop.permute.xlu0 %3216
        %3220 = vset.pattern.permute.xlu0 0
        %3221 = vperm.xlu0 %3220, %v3087
        %v3222 = vpop.permute.xlu0 %3221
        %3225 = vset.pattern.permute.xlu0 0
        %3226 = vperm.xlu0 %3225, %v3088
        %v3227 = vpop.permute.xlu0 %3226
        %3230 = vset.pattern.permute.xlu0 0
        %3231 = vperm.xlu0 %3230, %v3089
        %v3232 = vpop.permute.xlu0 %3231
        %3235 = vset.pattern.permute.xlu0 0
        %3236 = vperm.xlu0 %3235, %v3090
        %v3237 = vpop.permute.xlu0 %3236
        %3240 = vset.pattern.permute.xlu0 0
        %3241 = vperm.xlu0 %3240, %v3091
        %v3242 = vpop.permute.xlu0 %3241
        %3245 = vset.pattern.permute.xlu0 0
        %3246 = vperm.xlu0 %3245, %v3092
        %v3247 = vpop.permute.xlu0 %3246
        %3250 = vset.pattern.permute.xlu0 0
        %3251 = vperm.xlu0 %3250, %v3093
        %v3252 = vpop.permute.xlu0 %3251
        %3255 = vset.pattern.permute.xlu0 0
        %3256 = vperm.xlu0 %3255, %v3094
        %v3257 = vpop.permute.xlu0 %3256
        %3260 = vset.pattern.permute.xlu0 0
        %3261 = vperm.xlu0 %3260, %v3095
        %v3262 = vpop.permute.xlu0 %3261
        %3265 = vset.pattern.permute.xlu0 0
        %3266 = vperm.xlu0 %3265, %v3096
        %v3267 = vpop.permute.xlu0 %3266
        %3270 = vset.pattern.permute.xlu0 0
        %3271 = vperm.xlu0 %3270, %v3097
        %v3272 = vpop.permute.xlu0 %3271
        %3275 = vset.pattern.permute.xlu0 0
        %3276 = vperm.xlu0 %3275, %v3098
        %v3277 = vpop.permute.xlu0 %3276
        %3280 = vset.pattern.permute.xlu0 0
        %3281 = vperm.xlu0 %3280, %v3099
        %v3282 = vpop.permute.xlu0 %3281
        %3285 = vset.pattern.permute.xlu0 0
        %3286 = vperm.xlu0 %3285, %v3100
        %v3287 = vpop.permute.xlu0 %3286
        %3290 = vset.pattern.permute.xlu0 0
        %3291 = vperm.xlu0 %3290, %v3101
        %v3292 = vpop.permute.xlu0 %3291
        %3295 = vset.pattern.permute.xlu0 0
        %3296 = vperm.xlu0 %3295, %v3102
        %v3297 = vpop.permute.xlu0 %3296
        %3300 = vset.pattern.permute.xlu0 0
        %3301 = vperm.xlu0 %3300, %v3103
        %v3302 = vpop.permute.xlu0 %3301
        %3305 = vset.pattern.permute.xlu0 0
        %3306 = vperm.xlu0 %3305, %v3104
        %v3307 = vpop.permute.xlu0 %3306
        %3310 = vset.pattern.permute.xlu0 0
        %3311 = vperm.xlu0 %3310, %v3105
        %v3312 = vpop.permute.xlu0 %3311
        %3315 = vset.pattern.permute.xlu0 0
        %3316 = vperm.xlu0 %3315, %v3106
        %v3317 = vpop.permute.xlu0 %3316
        %3320 = vset.pattern.permute.xlu0 0
        %3321 = vperm.xlu0 %3320, %v3107
        %v3322 = vpop.permute.xlu0 %3321
        %3325 = vset.pattern.permute.xlu0 0
        %3326 = vperm.xlu0 %3325, %v3108
        %v3327 = vpop.permute.xlu0 %3326
        %3330 = vset.pattern.permute.xlu0 0
        %3331 = vperm.xlu0 %3330, %v3109
        %v3332 = vpop.permute.xlu0 %3331
        %3335 = vset.pattern.permute.xlu0 0
        %3336 = vperm.xlu0 %3335, %v3110
        %v3337 = vpop.permute.xlu0 %3336
        %3340 = vset.pattern.permute.xlu0 0
        %3341 = vperm.xlu0 %3340, %v3111
        %v3342 = vpop.permute.xlu0 %3341
        %3345 = vset.pattern.permute.xlu0 0
        %3346 = vperm.xlu0 %3345, %v3112
        %v3347 = vpop.permute.xlu0 %3346
        %3350 = vset.pattern.permute.xlu0 0
        %3351 = vperm.xlu0 %3350, %v3113
        %v3352 = vpop.permute.xlu0 %3351
        %3355 = vset.pattern.permute.xlu0 0
        %3356 = vperm.xlu0 %3355, %v3114
        %v3357 = vpop.permute.xlu0 %3356
        %3360 = vset.pattern.permute.xlu0 0
        %3361 = vperm.xlu0 %3360, %v3115
        %v3362 = vpop.permute.xlu0 %3361
        %3365 = vset.pattern.permute.xlu0 0
        %3366 = vperm.xlu0 %3365, %v3116
        %v3367 = vpop.permute.xlu0 %3366
        %3370 = vset.pattern.permute.xlu0 0
        %3371 = vperm.xlu0 %3370, %v3117
        %v3372 = vpop.permute.xlu0 %3371
        %3375 = vset.pattern.permute.xlu0 0
        %3376 = vperm.xlu0 %3375, %v3118
        %v3377 = vpop.permute.xlu0 %3376
        %3380 = vset.pattern.permute.xlu0 0
        %3381 = vperm.xlu0 %3380, %v3119
        %v3382 = vpop.permute.xlu0 %3381
        %3385 = vset.pattern.permute.xlu0 0
        %3386 = vperm.xlu0 %3385, %v3120
        %v3387 = vpop.permute.xlu0 %3386
        %3390 = vset.pattern.permute.xlu0 0
        %3391 = vperm.xlu0 %3390, %v3121
        %v3392 = vpop.permute.xlu0 %3391
        %3395 = vset.pattern.permute.xlu0 0
        %3396 = vperm.xlu0 %3395, %v3122
        %v3397 = vpop.permute.xlu0 %3396
        %3400 = vset.pattern.permute.xlu0 0
        %3401 = vperm.xlu0 %3400, %v3123
        %v3402 = vpop.permute.xlu0 %3401
        %3405 = vset.pattern.permute.xlu0 0
        %3406 = vperm.xlu0 %3405, %v3124
        %v3407 = vpop.permute.xlu0 %3406
        %3410 = vset.pattern.permute.xlu0 0
        %3411 = vperm.xlu0 %3410, %v3125
        %v3412 = vpop.permute.xlu0 %3411
        %3415 = vset.pattern.permute.xlu0 0
        %3416 = vperm.xlu0 %3415, %v3126
        %v3417 = vpop.permute.xlu0 %3416
        %3420 = vset.pattern.permute.xlu0 0
        %3421 = vperm.xlu0 %3420, %v3127
        %v3422 = vpop.permute.xlu0 %3421
        %3425 = vset.pattern.permute.xlu0 0
        %3426 = vperm.xlu0 %3425, %v3128
        %v3427 = vpop.permute.xlu0 %3426
        %3430 = vset.pattern.permute.xlu0 0
        %3431 = vperm.xlu0 %3430, %v3129
        %v3432 = vpop.permute.xlu0 %3431
        %3435 = vset.pattern.permute.xlu0 0
        %3436 = vperm.xlu0 %3435, %v3130
        %v3437 = vpop.permute.xlu0 %3436
        %3440 = vset.pattern.permute.xlu0 0
        %3441 = vperm.xlu0 %3440, %v3131
        %v3442 = vpop.permute.xlu0 %3441
        %3445 = vset.pattern.permute.xlu0 0
        %3446 = vperm.xlu0 %3445, %v3132
        %v3447 = vpop.permute.xlu0 %3446
        %3450 = vset.pattern.permute.xlu0 0
        %3451 = vperm.xlu0 %3450, %v3133
        %v3452 = vpop.permute.xlu0 %3451
        %3455 = vset.pattern.permute.xlu0 0
        %3456 = vperm.xlu0 %3455, %v3134
        %v3457 = vpop.permute.xlu0 %3456
        %3460 = vset.pattern.permute.xlu0 0
        %3461 = vperm.xlu0 %3460, %v3135
        %v3462 = vpop.permute.xlu0 %3461
        %3465 = vset.pattern.permute.xlu0 0
        %3466 = vperm.xlu0 %3465, %v3136
        %v3467 = vpop.permute.xlu0 %3466
        %3470 = vset.pattern.permute.xlu0 0
        %3471 = vperm.xlu0 %3470, %v3137
        %v3472 = vpop.permute.xlu0 %3471
        %3475 = vset.pattern.permute.xlu0 0
        %3476 = vperm.xlu0 %3475, %v3138
        %v3477 = vpop.permute.xlu0 %3476
        %3480 = vset.pattern.permute.xlu0 0
        %3481 = vperm.xlu0 %3480, %v3139
        %v3482 = vpop.permute.xlu0 %3481
        %3485 = vset.pattern.permute.xlu0 0
        %3486 = vperm.xlu0 %3485, %v3140
        %v3487 = vpop.permute.xlu0 %3486
        %3490 = vset.pattern.permute.xlu0 0
        %3491 = vperm.xlu0 %3490, %v3141
        %v3492 = vpop.permute.xlu0 %3491
        %3495 = vset.pattern.permute.xlu0 0
        %3496 = vperm.xlu0 %3495, %v3142
        %v3497 = vpop.permute.xlu0 %3496
        %3500 = vset.pattern.permute.xlu0 0
        %3501 = vperm.xlu0 %3500, %v3143
        %v3502 = vpop.permute.xlu0 %3501
        %3505 = vset.pattern.permute.xlu0 0
        %3506 = vperm.xlu0 %3505, %v3144
        %v3507 = vpop.permute.xlu0 %3506
        %3510 = vset.pattern.permute.xlu0 0
        %3511 = vperm.xlu0 %3510, %v3145
        %v3512 = vpop.permute.xlu0 %3511
        %3515 = vset.pattern.permute.xlu0 0
        %3516 = vperm.xlu0 %3515, %v3146
        %v3517 = vpop.permute.xlu0 %3516
        %3520 = vset.pattern.permute.xlu0 0
        %3521 = vperm.xlu0 %3520, %v3147
        %v3522 = vpop.permute.xlu0 %3521
        %3525 = vset.pattern.permute.xlu0 0
        %3526 = vperm.xlu0 %3525, %v3148
        %v3527 = vpop.permute.xlu0 %3526
        %3530 = vset.pattern.permute.xlu0 0
        %3531 = vperm.xlu0 %3530, %v3149
        %v3532 = vpop.permute.xlu0 %3531
        %v3534 = vmul.f32 %v3150, %v3217
        %v3535 = vmul.f32 %v3151, %v3222
        %v3536 = vmul.f32 %v3152, %v3227
        %v3537 = vmul.f32 %v3153, %v3232
        %v3538 = vmul.f32 %v3154, %v3237
        %v3539 = vmul.f32 %v3155, %v3242
        %v3540 = vmul.f32 %v3156, %v3247
        %v3541 = vmul.f32 %v3157, %v3252
        %v3542 = vmul.f32 %v3158, %v3257
        %v3543 = vmul.f32 %v3159, %v3262
        %v3544 = vmul.f32 %v3160, %v3267
        %v3545 = vmul.f32 %v3161, %v3272
        %v3546 = vmul.f32 %v3162, %v3277
        %v3547 = vmul.f32 %v3163, %v3282
        %v3548 = vmul.f32 %v3164, %v3287
        %v3549 = vmul.f32 %v3165, %v3292
        %v3550 = vmul.f32 %v3166, %v3297
        %v3551 = vmul.f32 %v3167, %v3302
        %v3552 = vmul.f32 %v3168, %v3307
        %v3553 = vmul.f32 %v3169, %v3312
        %v3554 = vmul.f32 %v3170, %v3317
        %v3555 = vmul.f32 %v3171, %v3322
        %v3556 = vmul.f32 %v3172, %v3327
        %v3557 = vmul.f32 %v3173, %v3332
        %v3558 = vmul.f32 %v3174, %v3337
        %v3559 = vmul.f32 %v3175, %v3342
        %v3560 = vmul.f32 %v3176, %v3347
        %v3561 = vmul.f32 %v3177, %v3352
        %v3562 = vmul.f32 %v3178, %v3357
        %v3563 = vmul.f32 %v3179, %v3362
        %v3564 = vmul.f32 %v3180, %v3367
        %v3565 = vmul.f32 %v3181, %v3372
        %v3566 = vmul.f32 %v3182, %v3377
        %v3567 = vmul.f32 %v3183, %v3382
        %v3568 = vmul.f32 %v3184, %v3387
        %v3569 = vmul.f32 %v3185, %v3392
        %v3570 = vmul.f32 %v3186, %v3397
        %v3571 = vmul.f32 %v3187, %v3402
        %v3572 = vmul.f32 %v3188, %v3407
        %v3573 = vmul.f32 %v3189, %v3412
        %v3574 = vmul.f32 %v3190, %v3417
        %v3575 = vmul.f32 %v3191, %v3422
        %v3576 = vmul.f32 %v3192, %v3427
        %v3577 = vmul.f32 %v3193, %v3432
        %v3578 = vmul.f32 %v3194, %v3437
        %v3579 = vmul.f32 %v3195, %v3442
        %v3580 = vmul.f32 %v3196, %v3447
        %v3581 = vmul.f32 %v3197, %v3452
        %v3582 = vmul.f32 %v3198, %v3457
        %v3583 = vmul.f32 %v3199, %v3462
        %v3584 = vmul.f32 %v3200, %v3467
        %v3585 = vmul.f32 %v3201, %v3472
        %v3586 = vmul.f32 %v3202, %v3477
        %v3587 = vmul.f32 %v3203, %v3482
        %v3588 = vmul.f32 %v3204, %v3487
        %v3589 = vmul.f32 %v3205, %v3492
        %v3590 = vmul.f32 %v3206, %v3497
        %v3591 = vmul.f32 %v3207, %v3502
        %v3592 = vmul.f32 %v3208, %v3507
        %v3593 = vmul.f32 %v3209, %v3512
        %v3594 = vmul.f32 %v3210, %v3517
        %v3595 = vmul.f32 %v3211, %v3522
        %v3596 = vmul.f32 %v3212, %v3527
        %v3597 = vmul.f32 %v3213, %v3532
        %v3598 = vadd.f32 %v3534, %v3535
        %v3599 = vrot.slane %v3598, 4
        %v3600 = vadd.f32 %v3598, %v3599
        %v3601 = vrot.slane %v3600, 2
        %v3602 = vadd.f32 %v3600, %v3601
        %v3603 = vrot.slane %v3602, 1
        %v3604 = vadd.f32 %v3602, %v3603
        %v3605 = vadd.f32 %v3536, %v3537
        %v3606 = vrot.slane %v3605, 4
        %v3607 = vadd.f32 %v3605, %v3606
        %v3608 = vrot.slane %v3607, 2
        %v3609 = vadd.f32 %v3607, %v3608
        %v3610 = vrot.slane %v3609, 1
        %v3611 = vadd.f32 %v3609, %v3610
        %v3612 = vadd.f32 %v3538, %v3539
        %v3613 = vrot.slane %v3612, 4
        %v3614 = vadd.f32 %v3612, %v3613
        %v3615 = vrot.slane %v3614, 2
        %v3616 = vadd.f32 %v3614, %v3615
        %v3617 = vrot.slane %v3616, 1
        %v3618 = vadd.f32 %v3616, %v3617
        %v3619 = vadd.f32 %v3540, %v3541
        %v3620 = vrot.slane %v3619, 4
        %v3621 = vadd.f32 %v3619, %v3620
        %v3622 = vrot.slane %v3621, 2
        %v3623 = vadd.f32 %v3621, %v3622
        %v3624 = vrot.slane %v3623, 1
        %v3625 = vadd.f32 %v3623, %v3624
        %v3626 = vadd.f32 %v3542, %v3543
        %v3627 = vrot.slane %v3626, 4
        %v3628 = vadd.f32 %v3626, %v3627
        %v3629 = vrot.slane %v3628, 2
        %v3630 = vadd.f32 %v3628, %v3629
        %v3631 = vrot.slane %v3630, 1
        %v3632 = vadd.f32 %v3630, %v3631
        %v3633 = vadd.f32 %v3544, %v3545
        %v3634 = vrot.slane %v3633, 4
        %v3635 = vadd.f32 %v3633, %v3634
        %v3636 = vrot.slane %v3635, 2
        %v3637 = vadd.f32 %v3635, %v3636
        %v3638 = vrot.slane %v3637, 1
        %v3639 = vadd.f32 %v3637, %v3638
        %v3640 = vadd.f32 %v3546, %v3547
        %v3641 = vrot.slane %v3640, 4
        %v3642 = vadd.f32 %v3640, %v3641
        %v3643 = vrot.slane %v3642, 2
        %v3644 = vadd.f32 %v3642, %v3643
        %v3645 = vrot.slane %v3644, 1
        %v3646 = vadd.f32 %v3644, %v3645
        %v3647 = vadd.f32 %v3548, %v3549
        %v3648 = vrot.slane %v3647, 4
        %v3649 = vadd.f32 %v3647, %v3648
        %v3650 = vrot.slane %v3649, 2
        %v3651 = vadd.f32 %v3649, %v3650
        %v3652 = vrot.slane %v3651, 1
        %v3653 = vadd.f32 %v3651, %v3652
        %v3654 = vadd.f32 %v3550, %v3551
        %v3655 = vrot.slane %v3654, 4
        %v3656 = vadd.f32 %v3654, %v3655
        %v3657 = vrot.slane %v3656, 2
        %v3658 = vadd.f32 %v3656, %v3657
        %v3659 = vrot.slane %v3658, 1
        %v3660 = vadd.f32 %v3658, %v3659
        %v3661 = vadd.f32 %v3552, %v3553
        %v3662 = vrot.slane %v3661, 4
        %v3663 = vadd.f32 %v3661, %v3662
        %v3664 = vrot.slane %v3663, 2
        %v3665 = vadd.f32 %v3663, %v3664
        %v3666 = vrot.slane %v3665, 1
        %v3667 = vadd.f32 %v3665, %v3666
        %v3668 = vadd.f32 %v3554, %v3555
        %v3669 = vrot.slane %v3668, 4
        %v3670 = vadd.f32 %v3668, %v3669
        %v3671 = vrot.slane %v3670, 2
        %v3672 = vadd.f32 %v3670, %v3671
        %v3673 = vrot.slane %v3672, 1
        %v3674 = vadd.f32 %v3672, %v3673
        %v3675 = vadd.f32 %v3556, %v3557
        %v3676 = vrot.slane %v3675, 4
        %v3677 = vadd.f32 %v3675, %v3676
        %v3678 = vrot.slane %v3677, 2
        %v3679 = vadd.f32 %v3677, %v3678
        %v3680 = vrot.slane %v3679, 1
        %v3681 = vadd.f32 %v3679, %v3680
        %v3682 = vadd.f32 %v3558, %v3559
        %v3683 = vrot.slane %v3682, 4
        %v3684 = vadd.f32 %v3682, %v3683
        %v3685 = vrot.slane %v3684, 2
        %v3686 = vadd.f32 %v3684, %v3685
        %v3687 = vrot.slane %v3686, 1
        %v3688 = vadd.f32 %v3686, %v3687
        %v3689 = vadd.f32 %v3560, %v3561
        %v3690 = vrot.slane %v3689, 4
        %v3691 = vadd.f32 %v3689, %v3690
        %v3692 = vrot.slane %v3691, 2
        %v3693 = vadd.f32 %v3691, %v3692
        %v3694 = vrot.slane %v3693, 1
        %v3695 = vadd.f32 %v3693, %v3694
        %v3696 = vadd.f32 %v3562, %v3563
        %v3697 = vrot.slane %v3696, 4
        %v3698 = vadd.f32 %v3696, %v3697
        %v3699 = vrot.slane %v3698, 2
        %v3700 = vadd.f32 %v3698, %v3699
        %v3701 = vrot.slane %v3700, 1
        %v3702 = vadd.f32 %v3700, %v3701
        %v3703 = vadd.f32 %v3564, %v3565
        %v3704 = vrot.slane %v3703, 4
        %v3705 = vadd.f32 %v3703, %v3704
        %v3706 = vrot.slane %v3705, 2
        %v3707 = vadd.f32 %v3705, %v3706
        %v3708 = vrot.slane %v3707, 1
        %v3709 = vadd.f32 %v3707, %v3708
        %v3710 = vadd.f32 %v3566, %v3567
        %v3711 = vrot.slane %v3710, 4
        %v3712 = vadd.f32 %v3710, %v3711
        %v3713 = vrot.slane %v3712, 2
        %v3714 = vadd.f32 %v3712, %v3713
        %v3715 = vrot.slane %v3714, 1
        %v3716 = vadd.f32 %v3714, %v3715
        %v3717 = vadd.f32 %v3568, %v3569
        %v3718 = vrot.slane %v3717, 4
        %v3719 = vadd.f32 %v3717, %v3718
        %v3720 = vrot.slane %v3719, 2
        %v3721 = vadd.f32 %v3719, %v3720
        %v3722 = vrot.slane %v3721, 1
        %v3723 = vadd.f32 %v3721, %v3722
        %v3724 = vadd.f32 %v3570, %v3571
        %v3725 = vrot.slane %v3724, 4
        %v3726 = vadd.f32 %v3724, %v3725
        %v3727 = vrot.slane %v3726, 2
        %v3728 = vadd.f32 %v3726, %v3727
        %v3729 = vrot.slane %v3728, 1
        %v3730 = vadd.f32 %v3728, %v3729
        %v3731 = vadd.f32 %v3572, %v3573
        %v3732 = vrot.slane %v3731, 4
        %v3733 = vadd.f32 %v3731, %v3732
        %v3734 = vrot.slane %v3733, 2
        %v3735 = vadd.f32 %v3733, %v3734
        %v3736 = vrot.slane %v3735, 1
        %v3737 = vadd.f32 %v3735, %v3736
        %v3738 = vadd.f32 %v3574, %v3575
        %v3739 = vrot.slane %v3738, 4
        %v3740 = vadd.f32 %v3738, %v3739
        %v3741 = vrot.slane %v3740, 2
        %v3742 = vadd.f32 %v3740, %v3741
        %v3743 = vrot.slane %v3742, 1
        %v3744 = vadd.f32 %v3742, %v3743
        %v3745 = vadd.f32 %v3576, %v3577
        %v3746 = vrot.slane %v3745, 4
        %v3747 = vadd.f32 %v3745, %v3746
        %v3748 = vrot.slane %v3747, 2
        %v3749 = vadd.f32 %v3747, %v3748
        %v3750 = vrot.slane %v3749, 1
        %v3751 = vadd.f32 %v3749, %v3750
        %v3752 = vadd.f32 %v3578, %v3579
        %v3753 = vrot.slane %v3752, 4
        %v3754 = vadd.f32 %v3752, %v3753
        %v3755 = vrot.slane %v3754, 2
        %v3756 = vadd.f32 %v3754, %v3755
        %v3757 = vrot.slane %v3756, 1
        %v3758 = vadd.f32 %v3756, %v3757
        %v3759 = vadd.f32 %v3580, %v3581
        %v3760 = vrot.slane %v3759, 4
        %v3761 = vadd.f32 %v3759, %v3760
        %v3762 = vrot.slane %v3761, 2
        %v3763 = vadd.f32 %v3761, %v3762
        %v3764 = vrot.slane %v3763, 1
        %v3765 = vadd.f32 %v3763, %v3764
        %v3766 = vadd.f32 %v3582, %v3583
        %v3767 = vrot.slane %v3766, 4
        %v3768 = vadd.f32 %v3766, %v3767
        %v3769 = vrot.slane %v3768, 2
        %v3770 = vadd.f32 %v3768, %v3769
        %v3771 = vrot.slane %v3770, 1
        %v3772 = vadd.f32 %v3770, %v3771
        %v3773 = vadd.f32 %v3584, %v3585
        %v3774 = vrot.slane %v3773, 4
        %v3775 = vadd.f32 %v3773, %v3774
        %v3776 = vrot.slane %v3775, 2
        %v3777 = vadd.f32 %v3775, %v3776
        %v3778 = vrot.slane %v3777, 1
        %v3779 = vadd.f32 %v3777, %v3778
        %v3780 = vadd.f32 %v3586, %v3587
        %v3781 = vrot.slane %v3780, 4
        %v3782 = vadd.f32 %v3780, %v3781
        %v3783 = vrot.slane %v3782, 2
        %v3784 = vadd.f32 %v3782, %v3783
        %v3785 = vrot.slane %v3784, 1
        %v3786 = vadd.f32 %v3784, %v3785
        %v3787 = vadd.f32 %v3588, %v3589
        %v3788 = vrot.slane %v3787, 4
        %v3789 = vadd.f32 %v3787, %v3788
        %v3790 = vrot.slane %v3789, 2
        %v3791 = vadd.f32 %v3789, %v3790
        %v3792 = vrot.slane %v3791, 1
        %v3793 = vadd.f32 %v3791, %v3792
        %v3794 = vadd.f32 %v3590, %v3591
        %v3795 = vrot.slane %v3794, 4
        %v3796 = vadd.f32 %v3794, %v3795
        %v3797 = vrot.slane %v3796, 2
        %v3798 = vadd.f32 %v3796, %v3797
        %v3799 = vrot.slane %v3798, 1
        %v3800 = vadd.f32 %v3798, %v3799
        %v3801 = vadd.f32 %v3592, %v3593
        %v3802 = vrot.slane %v3801, 4
        %v3803 = vadd.f32 %v3801, %v3802
        %v3804 = vrot.slane %v3803, 2
        %v3805 = vadd.f32 %v3803, %v3804
        %v3806 = vrot.slane %v3805, 1
        %v3807 = vadd.f32 %v3805, %v3806
        %v3808 = vadd.f32 %v3594, %v3595
        %v3809 = vrot.slane %v3808, 4
        %v3810 = vadd.f32 %v3808, %v3809
        %v3811 = vrot.slane %v3810, 2
        %v3812 = vadd.f32 %v3810, %v3811
        %v3813 = vrot.slane %v3812, 1
        %v3814 = vadd.f32 %v3812, %v3813
        %v3815 = vadd.f32 %v3596, %v3597
        %v3816 = vrot.slane %v3815, 4
        %v3817 = vadd.f32 %v3815, %v3816
        %v3818 = vrot.slane %v3817, 2
        %v3819 = vadd.f32 %v3817, %v3818
        %v3820 = vrot.slane %v3819, 1
        %v3821 = vadd.f32 %v3819, %v3820
        %v3854 = vsel %vm1922, %v3611, %v3604
        %v3855 = vsel %vm1924, %v3618, %v3854
        %v3856 = vsel %vm1926, %v3625, %v3855
        %v3857 = vsel %vm1928, %v3632, %v3856
        %v3858 = vsel %vm1930, %v3639, %v3857
        %v3859 = vsel %vm1932, %v3646, %v3858
        %v3860 = vsel %vm1934, %v3653, %v3859
        %v3861 = vsel %vm1922, %v3667, %v3660
        %v3862 = vsel %vm1924, %v3674, %v3861
        %v3863 = vsel %vm1926, %v3681, %v3862
        %v3864 = vsel %vm1928, %v3688, %v3863
        %v3865 = vsel %vm1930, %v3695, %v3864
        %v3866 = vsel %vm1932, %v3702, %v3865
        %v3867 = vsel %vm1934, %v3709, %v3866
        %v3868 = vsel %vm1922, %v3723, %v3716
        %v3869 = vsel %vm1924, %v3730, %v3868
        %v3870 = vsel %vm1926, %v3737, %v3869
        %v3871 = vsel %vm1928, %v3744, %v3870
        %v3872 = vsel %vm1930, %v3751, %v3871
        %v3873 = vsel %vm1932, %v3758, %v3872
        %v3874 = vsel %vm1934, %v3765, %v3873
        %v3875 = vsel %vm1922, %v3779, %v3772
        %v3876 = vsel %vm1924, %v3786, %v3875
        %v3877 = vsel %vm1926, %v3793, %v3876
        %v3878 = vsel %vm1928, %v3800, %v3877
        %v3879 = vsel %vm1930, %v3807, %v3878
        %v3880 = vsel %vm1932, %v3814, %v3879
        %v3881 = vsel %vm1934, %v3821, %v3880
        %3886 = vst [vmem:[%s287] sm:$0xff] %v3860
        %3887 = vst [vmem:[%s287 + $0x8] sm:$0xff] %v3867
        %3888 = vst [vmem:[%s287 + $0x10] sm:$0xff] %v3874
        %3889 = vst [vmem:[%s287 + $0x18] sm:$0xff] %v3881
        %s3890 = sand.u32 %s168, 1
        %s3891 = scalar_lea.sflag [#allocation5], %s3890
        %s3892 = sand.u32 %s168, 1
        %s3893 = smul.addr %s3892, 32
        %s3894 = scalar_lea.vmem [#allocation6], %s3893
        // Predicated region
        $region49: #{tpu_custom_call.1} parent=43 // pred_check
          %p3895 = pneg %p178
        $region50: #{tpu_custom_call.1} parent=43 // pred_check_branch
          %3897 = sbr.rel (%p3895) target = $region52
        $region51: #{tpu_custom_call.1} parent=43 // pred_region
          %s3898 = smul.u32 4, %s24
          %s3900 = ssub.s32 512, 512
          %3901 = vsyncadd %s3891, %s3900
          %s3902 = smul.addr %s3898, 128
          %s3903 = scalar_lea.hbm %s6, %s3902
          %s3904 = sshll.u32 %s3894, 4
          %s3905 = int_to_ptr.vmem [resolvable:$true] %s3904
          %3910 = dma.vmem_to_hbm [thread:$0]  %s3905, 512, %s3903, %s3891, 128, 128, 8
        $region52: #{tpu_custom_call.1} parent=43 // pred_fallthru
          _
      $region44: #{tpu_custom_call.1} parent=5 // pred_fallthru
        _
      %p3911 = scmp.le.s32.totalorder 2, %s19
      // Predicated region
      $region53: #{tpu_custom_call.1} parent=5 // pred_check
        %p3912 = pneg %p3911
      $region54: #{tpu_custom_call.1} parent=5 // pred_check_branch
        %3914 = sbr.rel (%p3912) target = $region56
      $region55: #{tpu_custom_call.1} parent=5 // pred_region
        %s3915 = ssub.s32 %s19, 2
        // Predicated region
        $region57: #{tpu_custom_call.1} parent=55 // pred_check
          %p3916 = pneg %p184
        $region58: #{tpu_custom_call.1} parent=55 // pred_check_branch
          %3918 = sbr.rel (%p3916) target = $region60
        $region59: #{tpu_custom_call.1} parent=55 // pred_region
          %s3919 = sand.u32 %s169, 1
          %s3920 = scalar_lea.sflag [#allocation5], %s3919
          %s3921 = sand.u32 %s169, 1
          %s3922 = smul.addr %s3921, 32
          %s3923 = scalar_lea.vmem [#allocation6], %s3922
          %3924 = dma.done %s3920, 512
        $region60: #{tpu_custom_call.1} parent=55 // pred_fallthru
          _
      $region56: #{tpu_custom_call.1} parent=5 // pred_fallthru
        _
    $region6: #{tpu_custom_call.1} parent=1 // loop_footer
      %s23 = sadd.s32 1, %s19
    $region7: #{tpu_custom_call.1} parent=1 // loop_footer_branch
      %18 = sbr.rel target = $region3
    $region8: #{tpu_custom_call.1} parent=1 // loop_exit
      _
    %3925 = vsyncpa [#allocation4], 1
    %s3926 = scalar_lea.sflag [#allocation4], 1
    %3927 = vsyncpa %s3926, 1
    %3928 = vsyncpa [#allocation5], 1
    %s3929 = scalar_lea.sflag [#allocation5], 1
    %3930 = vsyncpa %s3929, 1

</llo_original>
